<compile_context>
chip_gen: v7x
topology: tpu7x:2x2x1
jax: 0.10.0
libtpu: 0.0.40
codegen_flags: <defaults>
</compile_context>

<pallas_src>
import functools
import numpy as np

import jax
import jax.numpy as jnp
from jax import lax
from jax.experimental import pallas as pl
from jax.experimental.pallas import tpu as pltpu

# ----------------------------- configuration -------------------------------
DIM = 32
NUM_HEADS = 4
WINDOW_SIZE = 4
SHIFT_SIZE = 0          # shift_size == 0 -> attn_mask is None inside forward (as in PyTorch)
MLP_RATIO = 4.0
H = W = 8
B = 2
LN_EPS = 1e-5
NEG_INF = -1e9
QKV_PAD = 128           # fused qkv output padded from 3*DIM=96 to a full lane tile


# ------------------------------ shared math ---------------------------------
def _layernorm(x, g, b, eps=LN_EPS):
    # g, b have shape (1, C); x has shape (T, C)
    mu = jnp.mean(x, axis=-1, keepdims=True)
    var = jnp.mean(jnp.square(x - mu), axis=-1, keepdims=True)
    return (x - mu) * lax.rsqrt(var + eps) * g + b


# ------------------------------- fused kernel --------------------------------
def swin_block_kernel(xw_ref, qkvw_ref, qkvb_ref, projw_ref, projb_ref,
                      bias_ref, hmask_ref,
                      ln1g_ref, ln1b_ref, ln2g_ref, ln2b_ref,
                      w1_ref, b1_ref, w2_ref, b2_ref,
                      o_ref, *, n_win, win_len):
    """Entire Swin block on rows that are already in windowed order.

    xw_ref   : (R, C) with R = num_windows * window_size**2 (rows grouped by window)
    qkvw_ref : (C, QKV_PAD) bf16 fused qkv weight (scale folded into q columns)
    bias_ref : (heads, N, R) f32 relative-position bias, lane-tiled per window
    hmask_ref: (heads, C) f32 one-hot channel masks selecting each head's channels
    """
    x = xw_ref[...]                                        # (R, C) f32
    R, C = x.shape
    heads = hmask_ref.shape[0]

    # ---- LN1 (row-wise; commutes with the window permutation) ----
    xn = _layernorm(x, ln1g_ref[...], ln1b_ref[...])

    # ---- fused QKV: one lane-dense bf16 MXU matmul (scale pre-folded) ----
    qkv = jnp.dot(xn.astype(jnp.bfloat16), qkvw_ref[...],
                  preferred_element_type=jnp.float32) + qkvb_ref[...]     # (R, QKV_PAD)
    q = qkv[:, :C]                                          # static lane slices
    k = qkv[:, C:2 * C]
    v = qkv[:, 2 * C:3 * C]

    # ---- per-head q / v via one-hot channel masks; k stays unmasked (shared RHS)
    hm = hmask_ref[...]                                     # (heads, C)
    qm = (q[None, :, :] * hm[:, None, :]).astype(jnp.bfloat16)   # (heads, R, C)
    vm = (v[None, :, :] * hm[:, None, :]).astype(jnp.bfloat16)   # (heads, R, C)
    k_bf = k.astype(jnp.bfloat16)

    # scores for all heads with ONE 2-D MXU matmul: collapse (heads, R) rows
    s = lax.dot_general(qm.reshape(heads * R, C), k_bf,
                        (((1,), (1,)), ((), ())),
                        preferred_element_type=jnp.float32)       # (heads*R, R)
    s = s.reshape(heads, R, R)

    # ---- relative-position bias + block-diagonal window mask, built in-kernel ----
    # wmask[w, j] = 0 if column j belongs to window w, else NEG_INF (mul/cmp only).
    wid = lax.broadcasted_iota(jnp.int32, (n_win, R), 0)
    cid = lax.broadcasted_iota(jnp.int32, (n_win, R), 1)
    in_win = (cid >= wid * win_len) & (cid < (wid + 1) * win_len)
    wmask = jnp.where(in_win, 0.0, NEG_INF)                       # (n_win, R)
    s = (s.reshape(heads, n_win, win_len, R)
         + bias_ref[...][:, None, :, :]
         + wmask[None, :, None, :]).reshape(heads, R, R)

    # ---- softmax (row-wise); masked entries underflow to exactly 0 ----
    s = s - jnp.max(s, axis=-1, keepdims=True)
    p = jnp.exp(s)
    p = p * pl.reciprocal(jnp.sum(p, axis=-1, keepdims=True), approx=True)

    # ---- context: each head's output lands in its own channel block (vm masked) ----
    ctx = lax.dot_general(p.astype(jnp.bfloat16), vm,
                          (((2,), (1,)), ((0,), (0,))),
                          preferred_element_type=jnp.float32)     # (heads, R, C)
    attn = jnp.sum(ctx, axis=0)                             # (R, C), heads concatenated

    y = jnp.dot(attn.astype(jnp.bfloat16), projw_ref[...],
                preferred_element_type=jnp.float32) + projb_ref[...]
    x1 = x + y                                              # residual 1

    # ---- LN2 + MLP + residual 2 ----
    xn2 = _layernorm(x1, ln2g_ref[...], ln2b_ref[...])
    h1 = jnp.dot(xn2.astype(jnp.bfloat16), w1_ref[...],
                 preferred_element_type=jnp.float32) + b1_ref[...]
    # TODO(synk): PyTorch nn.GELU defaults to the exact erf formulation; the tanh
    # approximation is used here (erf lowering is not guaranteed in Mosaic).
    h1 = jax.nn.gelu(h1, approximate=True)
    y2 = jnp.dot(h1.astype(jnp.bfloat16), w2_ref[...],
                 preferred_element_type=jnp.float32) + b2_ref[...]

    o_ref[...] = (x1 + y2).astype(o_ref.dtype)


# ------------------------------ pallas wrapper --------------------------------
def swin_block_pallas(xw, kp):
    R, C = xw.shape
    n_win = kp["n_windows"]
    N = kp["win_len"]
    Hd = kp["w1"].shape[1]
    heads = kp["head_mask"].shape[0]

    def full(shape):
        return pl.BlockSpec(shape, lambda i, _s=shape: (0,) * len(_s))

    kernel = functools.partial(swin_block_kernel, n_win=n_win, win_len=N)
    return pl.pallas_call(
        kernel,
        out_shape=jax.ShapeDtypeStruct((R, C), xw.dtype),
        grid=(1,),
        in_specs=[
            full((R, C)),                                   # xw (windowed row order)
            full((C, QKV_PAD)), full((1, QKV_PAD)),         # fused qkv weight / bias
            full((C, C)), full((1, C)),                     # proj w, b
            full((heads, N, R)),                            # rel-pos bias, lane-tiled
            full((heads, C)),                               # head one-hot masks
            full((1, C)), full((1, C)),                     # ln1 g, b
            full((1, C)), full((1, C)),                     # ln2 g, b
            full((C, Hd)), full((1, Hd)),                   # fc1 w, b
            full((Hd, C)), full((1, C)),                    # fc2 w, b
        ],
        out_specs=full((R, C)),
        compiler_params=pltpu.CompilerParams(dimension_semantics=("arbitrary",)),
    )(xw, kp["qkv_w"], kp["qkv_b"], kp["proj_w"], kp["proj_b"],
      kp["bias_lane"], kp["head_mask"],
      kp["ln1_g"], kp["ln1_b"], kp["ln2_g"], kp["ln2_b"],
      kp["w1"], kp["b1"], kp["w2"], kp["b2"])


# ------------------------------ glue (plain JAX / numpy) ----------------------
def window_partition(x, ws):
    Bz, Hh, Ww, C = x.shape
    x = x.reshape(Bz, Hh // ws, ws, Ww // ws, ws, C)
    return x.transpose(0, 1, 3, 2, 4, 5).reshape(-1, ws, ws, C)


def window_reverse(windows, ws, Hh, Ww):
    Bz = windows.shape[0] // ((Hh // ws) * (Ww // ws))
    x = windows.reshape(Bz, Hh // ws, Ww // ws, ws, ws, -1)
    return x.transpose(0, 1, 3, 2, 4, 5).reshape(Bz, Hh, Ww, -1)


def make_relative_position_index(ws):
    coords = np.stack(np.meshgrid(np.arange(ws), np.arange(ws), indexing="ij"))  # (2, ws, ws)
    coords_flatten = coords.reshape(2, -1)
    rel = coords_flatten[:, :, None] - coords_flatten[:, None, :]
    rel = rel.transpose(1, 2, 0).copy()
    rel[:, :, 0] += ws - 1
    rel[:, :, 1] += ws - 1
    rel[:, :, 0] *= 2 * ws - 1
    return rel.sum(-1)                                      # (N, N) int


def prepare_kernel_params(params, *, num_heads, window_size, n_windows):
    """One-time host-side weight prep:
    fused+padded qkv weight with the attention scale folded into q, bf16 matmul
    weights, per-window relative-position bias tiled only along the lane dim, and
    head one-hot channel masks."""
    C = params["qkv_w"].shape[0]
    Hd = params["w1"].shape[1]
    hd = C // num_heads
    scale = float(hd ** (-0.5))
    N = window_size * window_size

    qkv_w = np.zeros((C, QKV_PAD), np.float32)
    qkv_w[:, :3 * C] = np.asarray(params["qkv_w"], np.float32)
    qkv_w[:, :C] *= scale                                   # fold scale into q weights
    qkv_b = np.zeros((QKV_PAD,), np.float32)
    qkv_b[:3 * C] = np.asarray(params["qkv_b"], np.float32)
    qkv_b[:C] *= scale                                      # ...and q bias

    rel_index = make_relative_position_index(window_size)
    rel_bias = np.asarray(params["rel_bias_table"], np.float32)[rel_index.reshape(-1)]
    rel_bias = rel_bias.reshape(N, N, num_heads).transpose(2, 0, 1)        # (heads, N, N)
    bias_lane = np.tile(rel_bias, (1, 1, n_windows)).astype(np.float32)    # (heads, N, R)

    head_mask = np.zeros((num_heads, C), np.float32)
    for h in range(num_heads):
        head_mask[h, h * hd:(h + 1) * hd] = 1.0

    bf16 = lambda a: jnp.asarray(np.asarray(a, np.float32), jnp.bfloat16)
    f32 = lambda a: jnp.asarray(np.asarray(a, np.float32), jnp.float32)
    return dict(
        qkv_w=bf16(qkv_w), qkv_b=f32(qkv_b.reshape(1, QKV_PAD)),
        proj_w=bf16(params["proj_w"]),
        proj_b=f32(np.asarray(params["proj_b"]).reshape(1, C)),
        bias_lane=f32(bias_lane), head_mask=f32(head_mask),
        ln1_g=f32(np.asarray(params["ln1_g"]).reshape(1, C)),
        ln1_b=f32(np.asarray(params["ln1_b"]).reshape(1, C)),
        ln2_g=f32(np.asarray(params["ln2_g"]).reshape(1, C)),
        ln2_b=f32(np.asarray(params["ln2_b"]).reshape(1, C)),
        w1=bf16(params["w1"]), b1=f32(np.asarray(params["b1"]).reshape(1, Hd)),
        w2=bf16(params["w2"]), b2=f32(np.asarray(params["b2"]).reshape(1, C)),
        n_windows=n_windows, win_len=N,
    )


def swin_block_forward(x, kparams, *, H, W, window_size, shift_size=0):
    Bz, L, C = x.shape
    ws = window_size
    if shift_size > 0:
        # TODO(synk): shifted-window path (torch.roll + additive attention mask) not
        # implemented; this script exercises the shift_size=0 config where PyTorch
        # itself sets attn_mask=None.
        raise NotImplementedError("shift_size > 0 not implemented")
    pad_r = (ws - W % ws) % ws
    pad_d = (ws - H % ws) % ws
    if pad_r or pad_d:
        # TODO(synk): padding path not needed here (H, W divisible by window_size).
        raise NotImplementedError("padding path not implemented")

    # window_partition is a pure row permutation; run the fused kernel in windowed
    # row order and invert the permutation at the end.
    xw = window_partition(x.reshape(Bz, H, W, C), ws).reshape(-1, C)        # (nW*N, C)
    yw = swin_block_pallas(xw, kparams)
    y = window_reverse(yw.reshape(-1, ws, ws, C), ws, H, W)
    return y.reshape(Bz, L, C)


# ------------------------------ pure-JAX reference ---------------------------
def swin_block_reference(x, params, *, H, W, num_heads, window_size):
    Bz, L, C = x.shape
    hd = C // num_heads
    scale = hd ** (-0.5)
    hi = jax.lax.Precision.HIGHEST

    def ln(v, g, b):
        mu = jnp.mean(v, axis=-1, keepdims=True)
        var = jnp.mean(jnp.square(v - mu), axis=-1, keepdims=True)
        return (v - mu) * jax.lax.rsqrt(var + LN_EPS) * g + b

    shortcut = x
    xn = ln(x, params["ln1_g"], params["ln1_b"]).reshape(Bz, H, W, C)
    N = window_size * window_size
    xw = window_partition(xn, window_size).reshape(-1, N, C)

    qkv = jnp.einsum("wnc,cd->wnd", xw, params["qkv_w"], precision=hi) + params["qkv_b"]
    q, k, v = qkv[..., :C], qkv[..., C:2 * C], qkv[..., 2 * C:]
    sh = lambda t: t.reshape(t.shape[0], N, num_heads, hd).transpose(0, 2, 1, 3)
    q, k, v = sh(q) * scale, sh(k), sh(v)
    attn = jnp.einsum("whnd,whmd->whnm", q, k, precision=hi)
    rel_index = make_relative_position_index(window_size)
    rel_bias = params["rel_bias_table"][rel_index.reshape(-1)].reshape(N, N, num_heads)
    attn = attn + jnp.transpose(rel_bias, (2, 0, 1))[None]
    attn = jax.nn.softmax(attn, axis=-1)
    out = jnp.einsum("whnm,whmd->whnd", attn, v, precision=hi)
    out = out.transpose(0, 2, 1, 3).reshape(-1, N, C)
    out = jnp.einsum("wnc,cd->wnd", out, params["proj_w"], precision=hi) + params["proj_b"]
    out = window_reverse(out.reshape(-1, window_size, window_size, C), window_size, H, W)

    xr = shortcut + out.reshape(Bz, L, C)
    xm = ln(xr, params["ln2_g"], params["ln2_b"])
    h = jax.nn.gelu(jnp.einsum("blc,ch->blh", xm, params["w1"], precision=hi) + params["b1"],
                    approximate=True)
    y = jnp.einsum("blh,hc->blc", h, params["w2"], precision=hi) + params["b2"]
    return xr + y


# ------------------------------ params ---------------------------------------
def init_params(key, dim, num_heads, window_size, mlp_hidden):
    ks = jax.random.split(key, 5)

    def tn(k, shape, std=0.02):
        return (std * jax.random.truncated_normal(k, -2.0, 2.0, shape)).astype(jnp.float32)

    return dict(
        ln1_g=jnp.ones((dim,), jnp.float32), ln1_b=jnp.zeros((dim,), jnp.float32),
        ln2_g=jnp.ones((dim,), jnp.float32), ln2_b=jnp.zeros((dim,), jnp.float32),
        qkv_w=tn(ks[0], (dim, 3 * dim)), qkv_b=jnp.zeros((3 * dim,), jnp.float32),
        proj_w=tn(ks[1], (dim, dim)), proj_b=jnp.zeros((dim,), jnp.float32),
        rel_bias_table=tn(ks[2], ((2 * window_size - 1) ** 2, num_heads)),
        w1=tn(ks[3], (dim, mlp_hidden)), b1=jnp.zeros((mlp_hidden,), jnp.float32),
        w2=tn(ks[4], (mlp_hidden, dim)), b2=jnp.zeros((dim,), jnp.float32),
    )


# ------------------------------ main ------------------------------------------
if __name__ == "__main__":
    key = jax.random.PRNGKey(0)
    kx, kparam = jax.random.split(key)
    x = jax.random.normal(kx, (B, H * W, DIM), jnp.float32)
    params = init_params(kparam, DIM, NUM_HEADS, WINDOW_SIZE, int(DIM * MLP_RATIO))

    n_windows = B * (H // WINDOW_SIZE) * (W // WINDOW_SIZE)
    kernel_params = prepare_kernel_params(
        params, num_heads=NUM_HEADS, window_size=WINDOW_SIZE, n_windows=n_windows)

    out = swin_block_forward(x, kernel_params, H=H, W=W,
                             window_size=WINDOW_SIZE, shift_size=SHIFT_SIZE)
    out = jax.block_until_ready(out)

    ref = swin_block_reference(x, params, H=H, W=W, num_heads=NUM_HEADS,
                               window_size=WINDOW_SIZE)

    assert out.shape == (B, H * W, DIM)
    assert bool(jnp.all(jnp.isfinite(out)))
    np.testing.assert_allclose(np.asarray(out), np.asarray(ref), rtol=1e-2, atol=1e-2)
    print("KERNEL_OK")
</pallas_src>

<mosaic_0001>
module attributes {stable_mosaic.version = 11 : i64} {
  func.func @swin_block_kernel(%arg0: i32, %arg1: memref<128x32xf32, #tpu.memory_space<vmem>>, %arg2: memref<32x128xbf16, #tpu.memory_space<vmem>>, %arg3: memref<1x128xf32, #tpu.memory_space<vmem>>, %arg4: memref<32x32xbf16, #tpu.memory_space<vmem>>, %arg5: memref<1x32xf32, #tpu.memory_space<vmem>>, %arg6: memref<4x16x128xf32, #tpu.memory_space<vmem>>, %arg7: memref<4x32xf32, #tpu.memory_space<vmem>>, %arg8: memref<1x32xf32, #tpu.memory_space<vmem>>, %arg9: memref<1x32xf32, #tpu.memory_space<vmem>>, %arg10: memref<1x32xf32, #tpu.memory_space<vmem>>, %arg11: memref<1x32xf32, #tpu.memory_space<vmem>>, %arg12: memref<32x128xbf16, #tpu.memory_space<vmem>>, %arg13: memref<1x128xf32, #tpu.memory_space<vmem>>, %arg14: memref<128x32xbf16, #tpu.memory_space<vmem>>, %arg15: memref<1x32xf32, #tpu.memory_space<vmem>>, %arg16: memref<128x32xf32, #tpu.memory_space<vmem>>) attributes {dimension_semantics = [#tpu.dimension_semantics<arbitrary>], iteration_bounds = array<i64: 1>, scalar_prefetch = 0 : i64, scratch_operands = 0 : i64, tpu.core_type = #tpu.core_type<tc>, window_params = [{pipeline_mode = #tpu.pipeline_mode<synchronous>, transform_indices = @transform_0, window_bounds = array<i64: 128, 32>}, {pipeline_mode = #tpu.pipeline_mode<synchronous>, transform_indices = @transform_1, window_bounds = array<i64: 32, 128>}, {pipeline_mode = #tpu.pipeline_mode<synchronous>, transform_indices = @transform_2, window_bounds = array<i64: 1, 128>}, {pipeline_mode = #tpu.pipeline_mode<synchronous>, transform_indices = @transform_3, window_bounds = array<i64: 32, 32>}, {pipeline_mode = #tpu.pipeline_mode<synchronous>, transform_indices = @transform_4, window_bounds = array<i64: 1, 32>}, {pipeline_mode = #tpu.pipeline_mode<synchronous>, transform_indices = @transform_5, window_bounds = array<i64: 4, 16, 128>}, {pipeline_mode = #tpu.pipeline_mode<synchronous>, transform_indices = @transform_6, window_bounds = array<i64: 4, 32>}, {pipeline_mode = #tpu.pipeline_mode<synchronous>, transform_indices = @transform_7, window_bounds = array<i64: 1, 32>}, {pipeline_mode = #tpu.pipeline_mode<synchronous>, transform_indices = @transform_8, window_bounds = array<i64: 1, 32>}, {pipeline_mode = #tpu.pipeline_mode<synchronous>, transform_indices = @transform_9, window_bounds = array<i64: 1, 32>}, {pipeline_mode = #tpu.pipeline_mode<synchronous>, transform_indices = @transform_10, window_bounds = array<i64: 1, 32>}, {pipeline_mode = #tpu.pipeline_mode<synchronous>, transform_indices = @transform_11, window_bounds = array<i64: 32, 128>}, {pipeline_mode = #tpu.pipeline_mode<synchronous>, transform_indices = @transform_12, window_bounds = array<i64: 1, 128>}, {pipeline_mode = #tpu.pipeline_mode<synchronous>, transform_indices = @transform_13, window_bounds = array<i64: 128, 32>}, {pipeline_mode = #tpu.pipeline_mode<synchronous>, transform_indices = @transform_14, window_bounds = array<i64: 1, 32>}, {pipeline_mode = #tpu.pipeline_mode<synchronous>, transform_indices = @transform_15, window_bounds = array<i64: 128, 32>}]} {
    %c0 = arith.constant 0 : index
    %c0_0 = arith.constant 0 : index
    %0 = vector.load %arg1[%c0, %c0_0] : memref<128x32xf32, #tpu.memory_space<vmem>>, vector<128x32xf32>
    %c0_1 = arith.constant 0 : index
    %c0_2 = arith.constant 0 : index
    %1 = vector.load %arg8[%c0_1, %c0_2] : memref<1x32xf32, #tpu.memory_space<vmem>>, vector<1x32xf32>
    %c0_3 = arith.constant 0 : index
    %c0_4 = arith.constant 0 : index
    %2 = vector.load %arg9[%c0_3, %c0_4] : memref<1x32xf32, #tpu.memory_space<vmem>>, vector<1x32xf32>
    %cst = arith.constant dense<0.000000e+00> : vector<128xf32>
    %3 = vector.multi_reduction <add>, %0, %cst [1] : vector<128x32xf32> to vector<128xf32>
    %4 = vector.shape_cast %3 : vector<128xf32> to vector<128x1xf32>
    %cst_5 = arith.constant 3.200000e+01 : f32
    %5 = vector.broadcast %cst_5 : f32 to vector<128x1xf32>
    %6 = arith.divf %4, %5 : vector<128x1xf32>
    %7 = vector.broadcast %6 : vector<128x1xf32> to vector<128x32xf32>
    %8 = arith.subf %0, %7 : vector<128x32xf32>
    %9 = arith.mulf %8, %8 : vector<128x32xf32>
    %cst_6 = arith.constant dense<0.000000e+00> : vector<128xf32>
    %10 = vector.multi_reduction <add>, %9, %cst_6 [1] : vector<128x32xf32> to vector<128xf32>
    %11 = vector.shape_cast %10 : vector<128xf32> to vector<128x1xf32>
    %cst_7 = arith.constant 3.200000e+01 : f32
    %12 = vector.broadcast %cst_7 : f32 to vector<128x1xf32>
    %13 = arith.divf %11, %12 : vector<128x1xf32>
    %14 = vector.broadcast %6 : vector<128x1xf32> to vector<128x32xf32>
    %15 = arith.subf %0, %14 : vector<128x32xf32>
    %cst_8 = arith.constant 9.99999974E-6 : f32
    %16 = vector.broadcast %cst_8 : f32 to vector<128x1xf32>
    %17 = arith.addf %13, %16 : vector<128x1xf32>
    %18 = math.rsqrt %17 : vector<128x1xf32>
    %19 = vector.broadcast %18 : vector<128x1xf32> to vector<128x32xf32>
    %20 = arith.mulf %15, %19 : vector<128x32xf32>
    %21 = vector.broadcast %1 : vector<1x32xf32> to vector<128x32xf32>
    %22 = arith.mulf %20, %21 : vector<128x32xf32>
    %23 = vector.broadcast %2 : vector<1x32xf32> to vector<128x32xf32>
    %24 = arith.addf %22, %23 : vector<128x32xf32>
    %25 = arith.truncf %24 : vector<128x32xf32> to vector<128x32xbf16>
    %c0_9 = arith.constant 0 : index
    %c0_10 = arith.constant 0 : index
    %26 = vector.load %arg2[%c0_9, %c0_10] : memref<32x128xbf16, #tpu.memory_space<vmem>>, vector<32x128xbf16>
    %cst_11 = arith.constant dense<0.000000e+00> : vector<128x128xf32>
    %27 = tpu.matmul %25, %26, %cst_11 {dimension_numbers = #tpu.dot_dimension_numbers<[1], [0], [0], [1], [0, 0, 1, 1], [], []>} : vector<128x32xbf16>, vector<32x128xbf16>, vector<128x128xf32> -> vector<128x128xf32>
    %c0_12 = arith.constant 0 : index
    %c0_13 = arith.constant 0 : index
    %28 = vector.load %arg3[%c0_12, %c0_13] : memref<1x128xf32, #tpu.memory_space<vmem>>, vector<1x128xf32>
    %29 = vector.broadcast %28 : vector<1x128xf32> to vector<128x128xf32>
    %30 = arith.addf %27, %29 : vector<128x128xf32>
    %31 = vector.extract_strided_slice %30 {offsets = [0, 0], sizes = [128, 32], strides = [1, 1]} : vector<128x128xf32> to vector<128x32xf32>
    %32 = vector.extract_strided_slice %30 {offsets = [0, 32], sizes = [128, 32], strides = [1, 1]} : vector<128x128xf32> to vector<128x32xf32>
    %33 = vector.extract_strided_slice %30 {offsets = [0, 64], sizes = [128, 32], strides = [1, 1]} : vector<128x128xf32> to vector<128x32xf32>
    %c0_14 = arith.constant 0 : index
    %c0_15 = arith.constant 0 : index
    %34 = vector.load %arg7[%c0_14, %c0_15] : memref<4x32xf32, #tpu.memory_space<vmem>>, vector<4x32xf32>
    %35 = vector.shape_cast %31 : vector<128x32xf32> to vector<1x128x32xf32>
    %36 = vector.shape_cast %34 : vector<4x32xf32> to vector<4x1x32xf32>
    %37 = vector.broadcast %35 : vector<1x128x32xf32> to vector<4x128x32xf32>
    %38 = vector.broadcast %36 : vector<4x1x32xf32> to vector<4x128x32xf32>
    %39 = arith.mulf %37, %38 : vector<4x128x32xf32>
    %40 = arith.truncf %39 : vector<4x128x32xf32> to vector<4x128x32xbf16>
    %41 = vector.shape_cast %33 : vector<128x32xf32> to vector<1x128x32xf32>
    %42 = vector.shape_cast %34 : vector<4x32xf32> to vector<4x1x32xf32>
    %43 = vector.broadcast %41 : vector<1x128x32xf32> to vector<4x128x32xf32>
    %44 = vector.broadcast %42 : vector<4x1x32xf32> to vector<4x128x32xf32>
    %45 = arith.mulf %43, %44 : vector<4x128x32xf32>
    %46 = arith.truncf %45 : vector<4x128x32xf32> to vector<4x128x32xbf16>
    %47 = arith.truncf %32 : vector<128x32xf32> to vector<128x32xbf16>
    %48 = vector.shape_cast %40 : vector<4x128x32xbf16> to vector<512x32xbf16>
    %cst_16 = arith.constant dense<0.000000e+00> : vector<512x128xf32>
    %49 = tpu.matmul %48, %47, %cst_16 {dimension_numbers = #tpu.dot_dimension_numbers<[1], [1], [0], [0], [0, 0, 1, 0], [], []>} : vector<512x32xbf16>, vector<128x32xbf16>, vector<512x128xf32> -> vector<512x128xf32>
    %50 = vector.shape_cast %49 : vector<512x128xf32> to vector<4x128x128xf32>
    %51 = tpu.iota {dimensions = array<i32: 0>} : vector<8x128xi32>
    %52 = tpu.iota {dimensions = array<i32: 1>} : vector<8x128xi32>
    %c16_i32 = arith.constant 16 : i32
    %53 = vector.broadcast %c16_i32 : i32 to vector<8x128xi32>
    %54 = arith.muli %51, %53 : vector<8x128xi32>
    %55 = arith.cmpi sge, %52, %54 : vector<8x128xi32>
    %c1_i32 = arith.constant 1 : i32
    %56 = vector.broadcast %c1_i32 : i32 to vector<8x128xi32>
    %57 = arith.addi %51, %56 : vector<8x128xi32>
    %c16_i32_17 = arith.constant 16 : i32
    %58 = vector.broadcast %c16_i32_17 : i32 to vector<8x128xi32>
    %59 = arith.muli %57, %58 : vector<8x128xi32>
    %60 = arith.cmpi slt, %52, %59 : vector<8x128xi32>
    %61 = arith.andi %55, %60 : vector<8x128xi1>
    %cst_18 = arith.constant 0.000000e+00 : f32
    %cst_19 = arith.constant -1.000000e+09 : f32
    %62 = vector.broadcast %cst_18 : f32 to vector<8x128xf32>
    %63 = vector.broadcast %cst_19 : f32 to vector<8x128xf32>
    %64 = arith.select %61, %62, %63 : vector<8x128xi1>, vector<8x128xf32>
    %65 = vector.shape_cast %50 : vector<4x128x128xf32> to vector<4x8x16x128xf32>
    %c0_20 = arith.constant 0 : index
    %c0_21 = arith.constant 0 : index
    %c0_22 = arith.constant 0 : index
    %66 = vector.load %arg6[%c0_20, %c0_21, %c0_22] : memref<4x16x128xf32, #tpu.memory_space<vmem>>, vector<4x16x128xf32>
    %67 = vector.shape_cast %66 : vector<4x16x128xf32> to vector<4x1x16x128xf32>
    %68 = vector.broadcast %67 : vector<4x1x16x128xf32> to vector<4x8x16x128xf32>
    %69 = arith.addf %65, %68 : vector<4x8x16x128xf32>
    %70 = vector.shape_cast %64 : vector<8x128xf32> to vector<1x8x1x128xf32>
    %71 = vector.broadcast %70 : vector<1x8x1x128xf32> to vector<4x8x16x128xf32>
    %72 = arith.addf %69, %71 : vector<4x8x16x128xf32>
    %73 = vector.shape_cast %72 : vector<4x8x16x128xf32> to vector<4x128x128xf32>
    %cst_23 = arith.constant dense<0xFF800000> : vector<4x128xf32>
    %74 = vector.multi_reduction <maximumf>, %73, %cst_23 [2] : vector<4x128x128xf32> to vector<4x128xf32>
    %75 = vector.shape_cast %74 : vector<4x128xf32> to vector<4x128x1xf32>
    %76 = vector.broadcast %75 : vector<4x128x1xf32> to vector<4x128x128xf32>
    %77 = arith.subf %73, %76 : vector<4x128x128xf32>
    %78 = math.exp %77 : vector<4x128x128xf32>
    %cst_24 = arith.constant dense<0.000000e+00> : vector<4x128xf32>
    %79 = vector.multi_reduction <add>, %78, %cst_24 [2] : vector<4x128x128xf32> to vector<4x128xf32>
    %80 = vector.shape_cast %79 : vector<4x128xf32> to vector<4x128x1xf32>
    %81 = tpu.reciprocal %80 {approx = true} : vector<4x128x1xf32> -> vector<4x128x1xf32>
    %82 = vector.broadcast %81 : vector<4x128x1xf32> to vector<4x128x128xf32>
    %83 = arith.mulf %78, %82 : vector<4x128x128xf32>
    %84 = arith.truncf %83 : vector<4x128x128xf32> to vector<4x128x128xbf16>
    %cst_25 = arith.constant dense<0.000000e+00> : vector<4x128x32xf32>
    %85 = tpu.matmul %84, %46, %cst_25 {dimension_numbers = #tpu.dot_dimension_numbers<[2], [1], [1], [2], [0, 0, 0, 1, 1, 2], [0], [0]>} : vector<4x128x128xbf16>, vector<4x128x32xbf16>, vector<4x128x32xf32> -> vector<4x128x32xf32>
    %cst_26 = arith.constant dense<0.000000e+00> : vector<128x32xf32>
    %86 = vector.multi_reduction <add>, %85, %cst_26 [0] : vector<4x128x32xf32> to vector<128x32xf32>
    %87 = arith.truncf %86 : vector<128x32xf32> to vector<128x32xbf16>
    %c0_27 = arith.constant 0 : index
    %c0_28 = arith.constant 0 : index
    %88 = vector.load %arg4[%c0_27, %c0_28] : memref<32x32xbf16, #tpu.memory_space<vmem>>, vector<32x32xbf16>
    %cst_29 = arith.constant dense<0.000000e+00> : vector<128x32xf32>
    %89 = tpu.matmul %87, %88, %cst_29 {dimension_numbers = #tpu.dot_dimension_numbers<[1], [0], [0], [1], [0, 0, 1, 1], [], []>} : vector<128x32xbf16>, vector<32x32xbf16>, vector<128x32xf32> -> vector<128x32xf32>
    %c0_30 = arith.constant 0 : index
    %c0_31 = arith.constant 0 : index
    %90 = vector.load %arg5[%c0_30, %c0_31] : memref<1x32xf32, #tpu.memory_space<vmem>>, vector<1x32xf32>
    %91 = vector.broadcast %90 : vector<1x32xf32> to vector<128x32xf32>
    %92 = arith.addf %89, %91 : vector<128x32xf32>
    %93 = arith.addf %0, %92 : vector<128x32xf32>
    %c0_32 = arith.constant 0 : index
    %c0_33 = arith.constant 0 : index
    %94 = vector.load %arg10[%c0_32, %c0_33] : memref<1x32xf32, #tpu.memory_space<vmem>>, vector<1x32xf32>
    %c0_34 = arith.constant 0 : index
    %c0_35 = arith.constant 0 : index
    %95 = vector.load %arg11[%c0_34, %c0_35] : memref<1x32xf32, #tpu.memory_space<vmem>>, vector<1x32xf32>
    %cst_36 = arith.constant dense<0.000000e+00> : vector<128xf32>
    %96 = vector.multi_reduction <add>, %93, %cst_36 [1] : vector<128x32xf32> to vector<128xf32>
    %97 = vector.shape_cast %96 : vector<128xf32> to vector<128x1xf32>
    %cst_37 = arith.constant 3.200000e+01 : f32
    %98 = vector.broadcast %cst_37 : f32 to vector<128x1xf32>
    %99 = arith.divf %97, %98 : vector<128x1xf32>
    %100 = vector.broadcast %99 : vector<128x1xf32> to vector<128x32xf32>
    %101 = arith.subf %93, %100 : vector<128x32xf32>
    %102 = arith.mulf %101, %101 : vector<128x32xf32>
    %cst_38 = arith.constant dense<0.000000e+00> : vector<128xf32>
    %103 = vector.multi_reduction <add>, %102, %cst_38 [1] : vector<128x32xf32> to vector<128xf32>
    %104 = vector.shape_cast %103 : vector<128xf32> to vector<128x1xf32>
    %cst_39 = arith.constant 3.200000e+01 : f32
    %105 = vector.broadcast %cst_39 : f32 to vector<128x1xf32>
    %106 = arith.divf %104, %105 : vector<128x1xf32>
    %107 = vector.broadcast %99 : vector<128x1xf32> to vector<128x32xf32>
    %108 = arith.subf %93, %107 : vector<128x32xf32>
    %cst_40 = arith.constant 9.99999974E-6 : f32
    %109 = vector.broadcast %cst_40 : f32 to vector<128x1xf32>
    %110 = arith.addf %106, %109 : vector<128x1xf32>
    %111 = math.rsqrt %110 : vector<128x1xf32>
    %112 = vector.broadcast %111 : vector<128x1xf32> to vector<128x32xf32>
    %113 = arith.mulf %108, %112 : vector<128x32xf32>
    %114 = vector.broadcast %94 : vector<1x32xf32> to vector<128x32xf32>
    %115 = arith.mulf %113, %114 : vector<128x32xf32>
    %116 = vector.broadcast %95 : vector<1x32xf32> to vector<128x32xf32>
    %117 = arith.addf %115, %116 : vector<128x32xf32>
    %118 = arith.truncf %117 : vector<128x32xf32> to vector<128x32xbf16>
    %c0_41 = arith.constant 0 : index
    %c0_42 = arith.constant 0 : index
    %119 = vector.load %arg12[%c0_41, %c0_42] : memref<32x128xbf16, #tpu.memory_space<vmem>>, vector<32x128xbf16>
    %cst_43 = arith.constant dense<0.000000e+00> : vector<128x128xf32>
    %120 = tpu.matmul %118, %119, %cst_43 {dimension_numbers = #tpu.dot_dimension_numbers<[1], [0], [0], [1], [0, 0, 1, 1], [], []>} : vector<128x32xbf16>, vector<32x128xbf16>, vector<128x128xf32> -> vector<128x128xf32>
    %c0_44 = arith.constant 0 : index
    %c0_45 = arith.constant 0 : index
    %121 = vector.load %arg13[%c0_44, %c0_45] : memref<1x128xf32, #tpu.memory_space<vmem>>, vector<1x128xf32>
    %122 = vector.broadcast %121 : vector<1x128xf32> to vector<128x128xf32>
    %123 = arith.addf %120, %122 : vector<128x128xf32>
    %124 = arith.mulf %123, %123 : vector<128x128xf32>
    %125 = arith.mulf %123, %124 : vector<128x128xf32>
    %cst_46 = arith.constant 4.471500e-02 : f32
    %126 = vector.broadcast %cst_46 : f32 to vector<128x128xf32>
    %127 = arith.mulf %126, %125 : vector<128x128xf32>
    %128 = arith.addf %123, %127 : vector<128x128xf32>
    %cst_47 = arith.constant 0.797884583 : f32
    %129 = vector.broadcast %cst_47 : f32 to vector<128x128xf32>
    %130 = arith.mulf %129, %128 : vector<128x128xf32>
    %131 = math.tanh %130 : vector<128x128xf32>
    %cst_48 = arith.constant 1.000000e+00 : f32
    %132 = vector.broadcast %cst_48 : f32 to vector<128x128xf32>
    %133 = arith.addf %132, %131 : vector<128x128xf32>
    %cst_49 = arith.constant 5.000000e-01 : f32
    %134 = vector.broadcast %cst_49 : f32 to vector<128x128xf32>
    %135 = arith.mulf %134, %133 : vector<128x128xf32>
    %136 = arith.mulf %123, %135 : vector<128x128xf32>
    %137 = arith.truncf %136 : vector<128x128xf32> to vector<128x128xbf16>
    %c0_50 = arith.constant 0 : index
    %c0_51 = arith.constant 0 : index
    %138 = vector.load %arg14[%c0_50, %c0_51] : memref<128x32xbf16, #tpu.memory_space<vmem>>, vector<128x32xbf16>
    %cst_52 = arith.constant dense<0.000000e+00> : vector<128x32xf32>
    %139 = tpu.matmul %137, %138, %cst_52 {dimension_numbers = #tpu.dot_dimension_numbers<[1], [0], [0], [1], [0, 0, 1, 1], [], []>} : vector<128x128xbf16>, vector<128x32xbf16>, vector<128x32xf32> -> vector<128x32xf32>
    %c0_53 = arith.constant 0 : index
    %c0_54 = arith.constant 0 : index
    %140 = vector.load %arg15[%c0_53, %c0_54] : memref<1x32xf32, #tpu.memory_space<vmem>>, vector<1x32xf32>
    %141 = vector.broadcast %140 : vector<1x32xf32> to vector<128x32xf32>
    %142 = arith.addf %139, %141 : vector<128x32xf32>
    %143 = arith.addf %93, %142 : vector<128x32xf32>
    %c0_55 = arith.constant 0 : index
    %c0_56 = arith.constant 0 : index
    %144 = vector.load %arg16[%c0_55, %c0_56] : memref<128x32xf32, #tpu.memory_space<vmem>>, vector<128x32xf32>
    tpu.vector_store %arg16[%c0_55, %c0_56], %143 {strides = array<i32>} : memref<128x32xf32, #tpu.memory_space<vmem>>, vector<128x32xf32>,
    return
  }
  func.func @transform_0(%arg0: i32) -> (i32, i32) {
    %c0_i32 = arith.constant 0 : i32
    %c0_i32_0 = arith.constant 0 : i32
    %c0_i32_1 = arith.constant 0 : i32
    return %c0_i32, %c0_i32_0 : i32, i32
  }
  func.func @transform_1(%arg0: i32) -> (i32, i32) {
    %c0_i32 = arith.constant 0 : i32
    %c0_i32_0 = arith.constant 0 : i32
    %c0_i32_1 = arith.constant 0 : i32
    return %c0_i32, %c0_i32_0 : i32, i32
  }
  func.func @transform_2(%arg0: i32) -> (i32, i32) {
    %c0_i32 = arith.constant 0 : i32
    %c0_i32_0 = arith.constant 0 : i32
    %c0_i32_1 = arith.constant 0 : i32
    return %c0_i32, %c0_i32_0 : i32, i32
  }
  func.func @transform_3(%arg0: i32) -> (i32, i32) {
    %c0_i32 = arith.constant 0 : i32
    %c0_i32_0 = arith.constant 0 : i32
    %c0_i32_1 = arith.constant 0 : i32
    return %c0_i32, %c0_i32_0 : i32, i32
  }
  func.func @transform_4(%arg0: i32) -> (i32, i32) {
    %c0_i32 = arith.constant 0 : i32
    %c0_i32_0 = arith.constant 0 : i32
    %c0_i32_1 = arith.constant 0 : i32
    return %c0_i32, %c0_i32_0 : i32, i32
  }
  func.func @transform_5(%arg0: i32) -> (i32, i32, i32) {
    %c0_i32 = arith.constant 0 : i32
    %c0_i32_0 = arith.constant 0 : i32
    %c0_i32_1 = arith.constant 0 : i32
    %c0_i32_2 = arith.constant 0 : i32
    return %c0_i32, %c0_i32_0, %c0_i32_1 : i32, i32, i32
  }
  func.func @transform_6(%arg0: i32) -> (i32, i32) {
    %c0_i32 = arith.constant 0 : i32
    %c0_i32_0 = arith.constant 0 : i32
    %c0_i32_1 = arith.constant 0 : i32
    return %c0_i32, %c0_i32_0 : i32, i32
  }
  func.func @transform_7(%arg0: i32) -> (i32, i32) {
    %c0_i32 = arith.constant 0 : i32
    %c0_i32_0 = arith.constant 0 : i32
    %c0_i32_1 = arith.constant 0 : i32
    return %c0_i32, %c0_i32_0 : i32, i32
  }
  func.func @transform_8(%arg0: i32) -> (i32, i32) {
    %c0_i32 = arith.constant 0 : i32
    %c0_i32_0 = arith.constant 0 : i32
    %c0_i32_1 = arith.constant 0 : i32
    return %c0_i32, %c0_i32_0 : i32, i32
  }
  func.func @transform_9(%arg0: i32) -> (i32, i32) {
    %c0_i32 = arith.constant 0 : i32
    %c0_i32_0 = arith.constant 0 : i32
    %c0_i32_1 = arith.constant 0 : i32
    return %c0_i32, %c0_i32_0 : i32, i32
  }
  func.func @transform_10(%arg0: i32) -> (i32, i32) {
    %c0_i32 = arith.constant 0 : i32
    %c0_i32_0 = arith.constant 0 : i32
    %c0_i32_1 = arith.constant 0 : i32
    return %c0_i32, %c0_i32_0 : i32, i32
  }
  func.func @transform_11(%arg0: i32) -> (i32, i32) {
    %c0_i32 = arith.constant 0 : i32
    %c0_i32_0 = arith.constant 0 : i32
    %c0_i32_1 = arith.constant 0 : i32
    return %c0_i32, %c0_i32_0 : i32, i32
  }
  func.func @transform_12(%arg0: i32) -> (i32, i32) {
    %c0_i32 = arith.constant 0 : i32
    %c0_i32_0 = arith.constant 0 : i32
    %c0_i32_1 = arith.constant 0 : i32
    return %c0_i32, %c0_i32_0 : i32, i32
  }
  func.func @transform_13(%arg0: i32) -> (i32, i32) {
    %c0_i32 = arith.constant 0 : i32
    %c0_i32_0 = arith.constant 0 : i32
    %c0_i32_1 = arith.constant 0 : i32
    return %c0_i32, %c0_i32_0 : i32, i32
  }
  func.func @transform_14(%arg0: i32) -> (i32, i32) {
    %c0_i32 = arith.constant 0 : i32
    %c0_i32_0 = arith.constant 0 : i32
    %c0_i32_1 = arith.constant 0 : i32
    return %c0_i32, %c0_i32_0 : i32, i32
  }
  func.func @transform_15(%arg0: i32) -> (i32, i32) {
    %c0_i32 = arith.constant 0 : i32
    %c0_i32_0 = arith.constant 0 : i32
    %c0_i32_1 = arith.constant 0 : i32
    return %c0_i32, %c0_i32_0 : i32, i32
  }
}

</mosaic_0001>

<llo_original>
// kernel: tpu_custom_call.1
$region0: #{tpu_custom_call.1}
  #allocation0 [shape = 'u32[]', space=smem, size = 0x4, offset = 0x4, fixed_abs, tag = 'smem constant byte address 0x4 - core index']
  #allocation1 [shape = 'u32[144,128]{1,0:T(1,128)}', space=vmem, size = 0x12000, scoped, tag = 'internal scratch']
  %s0 = inlined_call_operand.vmem [shape: f32[128,32], index: 0, kind: input, shape index: {}]
  %s1 = inlined_call_operand.vmem [shape: bf16[32,128], index: 1, kind: input, shape index: {}]
  %s2 = inlined_call_operand.vmem [shape: f32[1,128], index: 2, kind: input, shape index: {}]
  %s3 = inlined_call_operand.vmem [shape: bf16[32,32], index: 3, kind: input, shape index: {}]
  %s4 = inlined_call_operand.vmem [shape: f32[1,32], index: 4, kind: input, shape index: {}]
  %s5 = inlined_call_operand.vmem [shape: f32[4,16,128], index: 5, kind: input, shape index: {}]
  %s6 = inlined_call_operand.vmem [shape: f32[4,32], index: 6, kind: input, shape index: {}]
  %s7 = inlined_call_operand.vmem [shape: f32[1,32], index: 7, kind: input, shape index: {}]
  %s8 = inlined_call_operand.vmem [shape: f32[1,32], index: 8, kind: input, shape index: {}]
  %s9 = inlined_call_operand.vmem [shape: f32[1,32], index: 9, kind: input, shape index: {}]
  %s10 = inlined_call_operand.vmem [shape: f32[1,32], index: 10, kind: input, shape index: {}]
  %s11 = inlined_call_operand.vmem [shape: bf16[32,128], index: 11, kind: input, shape index: {}]
  %s12 = inlined_call_operand.vmem [shape: f32[1,128], index: 12, kind: input, shape index: {}]
  %s13 = inlined_call_operand.vmem [shape: bf16[128,32], index: 13, kind: input, shape index: {}]
  %s14 = inlined_call_operand.vmem [shape: f32[1,32], index: 14, kind: input, shape index: {}]
  %s15 = inlined_call_operand.vmem [shape: f32[128,32], index: 15, kind: output, shape index: {}]
  %s16 = sld [smem:[#allocation0]]
  $region70: #{tpu_custom_call.1} parent=0
    _
  %s18 = ssub.s32 1, %s16
  %s19 = scalar_select 0, %s18, %s16
  // Predicated region
  $region2: #{tpu_custom_call.1} parent=0 // pred_check
    _
  $region3: #{tpu_custom_call.1} parent=0 // pred_check_branch
    %21 = sbr.rel (0) target = $region5
  $region4: #{tpu_custom_call.1} parent=0 // pred_region
    _
  $region5: #{tpu_custom_call.1} parent=0 // pred_fallthru
    _
  // Predicated region
  $region6: #{tpu_custom_call.1} parent=0 // pred_check
    _
  $region7: #{tpu_custom_call.1} parent=0 // pred_check_branch
    %23 = sbr.rel (0) target = $region9
  $region8: #{tpu_custom_call.1} parent=0 // pred_region
    _
  $region9: #{tpu_custom_call.1} parent=0 // pred_fallthru
    _
  // Predicated region
  $region10: #{tpu_custom_call.1} parent=0 // pred_check
    _
  $region11: #{tpu_custom_call.1} parent=0 // pred_check_branch
    %25 = sbr.rel (0) target = $region13
  $region12: #{tpu_custom_call.1} parent=0 // pred_region
    _
  $region13: #{tpu_custom_call.1} parent=0 // pred_fallthru
    _
  // Predicated region
  $region14: #{tpu_custom_call.1} parent=0 // pred_check
    _
  $region15: #{tpu_custom_call.1} parent=0 // pred_check_branch
    %27 = sbr.rel (0) target = $region17
  $region16: #{tpu_custom_call.1} parent=0 // pred_region
    _
  $region17: #{tpu_custom_call.1} parent=0 // pred_fallthru
    _
  // Predicated region
  $region18: #{tpu_custom_call.1} parent=0 // pred_check
    _
  $region19: #{tpu_custom_call.1} parent=0 // pred_check_branch
    %29 = sbr.rel (0) target = $region21
  $region20: #{tpu_custom_call.1} parent=0 // pred_region
    _
  $region21: #{tpu_custom_call.1} parent=0 // pred_fallthru
    _
  // Predicated region
  $region22: #{tpu_custom_call.1} parent=0 // pred_check
    _
  $region23: #{tpu_custom_call.1} parent=0 // pred_check_branch
    %31 = sbr.rel (0) target = $region25
  $region24: #{tpu_custom_call.1} parent=0 // pred_region
    _
  $region25: #{tpu_custom_call.1} parent=0 // pred_fallthru
    _
  // Predicated region
  $region26: #{tpu_custom_call.1} parent=0 // pred_check
    _
  $region27: #{tpu_custom_call.1} parent=0 // pred_check_branch
    %33 = sbr.rel (0) target = $region29
  $region28: #{tpu_custom_call.1} parent=0 // pred_region
    _
  $region29: #{tpu_custom_call.1} parent=0 // pred_fallthru
    _
  // Predicated region
  $region30: #{tpu_custom_call.1} parent=0 // pred_check
    _
  $region31: #{tpu_custom_call.1} parent=0 // pred_check_branch
    %35 = sbr.rel (0) target = $region33
  $region32: #{tpu_custom_call.1} parent=0 // pred_region
    _
  $region33: #{tpu_custom_call.1} parent=0 // pred_fallthru
    _
  // Predicated region
  $region34: #{tpu_custom_call.1} parent=0 // pred_check
    _
  $region35: #{tpu_custom_call.1} parent=0 // pred_check_branch
    %37 = sbr.rel (0) target = $region37
  $region36: #{tpu_custom_call.1} parent=0 // pred_region
    _
  $region37: #{tpu_custom_call.1} parent=0 // pred_fallthru
    _
  // Predicated region
  $region38: #{tpu_custom_call.1} parent=0 // pred_check
    _
  $region39: #{tpu_custom_call.1} parent=0 // pred_check_branch
    %39 = sbr.rel (0) target = $region41
  $region40: #{tpu_custom_call.1} parent=0 // pred_region
    _
  $region41: #{tpu_custom_call.1} parent=0 // pred_fallthru
    _
  // Predicated region
  $region42: #{tpu_custom_call.1} parent=0 // pred_check
    _
  $region43: #{tpu_custom_call.1} parent=0 // pred_check_branch
    %41 = sbr.rel (0) target = $region45
  $region44: #{tpu_custom_call.1} parent=0 // pred_region
    _
  $region45: #{tpu_custom_call.1} parent=0 // pred_fallthru
    _
  // Predicated region
  $region46: #{tpu_custom_call.1} parent=0 // pred_check
    _
  $region47: #{tpu_custom_call.1} parent=0 // pred_check_branch
    %43 = sbr.rel (0) target = $region49
  $region48: #{tpu_custom_call.1} parent=0 // pred_region
    _
  $region49: #{tpu_custom_call.1} parent=0 // pred_fallthru
    _
  // Predicated region
  $region50: #{tpu_custom_call.1} parent=0 // pred_check
    _
  $region51: #{tpu_custom_call.1} parent=0 // pred_check_branch
    %45 = sbr.rel (0) target = $region53
  $region52: #{tpu_custom_call.1} parent=0 // pred_region
    _
  $region53: #{tpu_custom_call.1} parent=0 // pred_fallthru
    _
  // Predicated region
  $region54: #{tpu_custom_call.1} parent=0 // pred_check
    _
  $region55: #{tpu_custom_call.1} parent=0 // pred_check_branch
    %47 = sbr.rel (0) target = $region57
  $region56: #{tpu_custom_call.1} parent=0 // pred_region
    _
  $region57: #{tpu_custom_call.1} parent=0 // pred_fallthru
    _
  // Predicated region
  $region58: #{tpu_custom_call.1} parent=0 // pred_check
    _
  $region59: #{tpu_custom_call.1} parent=0 // pred_check_branch
    %49 = sbr.rel (0) target = $region61
  $region60: #{tpu_custom_call.1} parent=0 // pred_region
    _
  $region61: #{tpu_custom_call.1} parent=0 // pred_fallthru
    _
  %v51 = vld [vmem:[%s0] sm:$0xff]
  %v52 = vld [vmem:[%s0 + $0x8] sm:$0xff]
  %v53 = vld [vmem:[%s0 + $0x10] sm:$0xff]
  %v54 = vld [vmem:[%s0 + $0x18] sm:$0xff]
  %v55 = vld [vmem:[%s0 + $0x20] sm:$0xff]
  %v56 = vld [vmem:[%s0 + $0x28] sm:$0xff]
  %v57 = vld [vmem:[%s0 + $0x30] sm:$0xff]
  %v58 = vld [vmem:[%s0 + $0x38] sm:$0xff]
  %v59 = vld [vmem:[%s0 + $0x40] sm:$0xff]
  %v60 = vld [vmem:[%s0 + $0x48] sm:$0xff]
  %v61 = vld [vmem:[%s0 + $0x50] sm:$0xff]
  %v62 = vld [vmem:[%s0 + $0x58] sm:$0xff]
  %v63 = vld [vmem:[%s0 + $0x60] sm:$0xff]
  %v64 = vld [vmem:[%s0 + $0x68] sm:$0xff]
  %v65 = vld [vmem:[%s0 + $0x70] sm:$0xff]
  %v66 = vld [vmem:[%s0 + $0x78] sm:$0xff]
  %v67 = vld [vmem:[%s7] sm:$0x1]
  %v68 = vld [vmem:[%s8] sm:$0x1]
  %vm69 = vcmask 261120
  %v70 = vsel %vm69, %v51, 0.0
  %71 = vadd.xlane.f32.xlu0 %v70
  %v72 = vpop.xlane.xlu0 %71
  %v73 = vsel %vm69, %v52, 0.0
  %74 = vadd.xlane.f32.xlu0 %v73
  %v75 = vpop.xlane.xlu0 %74
  %v76 = vsel %vm69, %v53, 0.0
  %77 = vadd.xlane.f32.xlu0 %v76
  %v78 = vpop.xlane.xlu0 %77
  %v79 = vsel %vm69, %v54, 0.0
  %80 = vadd.xlane.f32.xlu0 %v79
  %v81 = vpop.xlane.xlu0 %80
  %v82 = vsel %vm69, %v55, 0.0
  %83 = vadd.xlane.f32.xlu0 %v82
  %v84 = vpop.xlane.xlu0 %83
  %v85 = vsel %vm69, %v56, 0.0
  %86 = vadd.xlane.f32.xlu0 %v85
  %v87 = vpop.xlane.xlu0 %86
  %v88 = vsel %vm69, %v57, 0.0
  %89 = vadd.xlane.f32.xlu0 %v88
  %v90 = vpop.xlane.xlu0 %89
  %v91 = vsel %vm69, %v58, 0.0
  %92 = vadd.xlane.f32.xlu0 %v91
  %v93 = vpop.xlane.xlu0 %92
  %v94 = vsel %vm69, %v59, 0.0
  %95 = vadd.xlane.f32.xlu0 %v94
  %v96 = vpop.xlane.xlu0 %95
  %v97 = vsel %vm69, %v60, 0.0
  %98 = vadd.xlane.f32.xlu0 %v97
  %v99 = vpop.xlane.xlu0 %98
  %v100 = vsel %vm69, %v61, 0.0
  %101 = vadd.xlane.f32.xlu0 %v100
  %v102 = vpop.xlane.xlu0 %101
  %v103 = vsel %vm69, %v62, 0.0
  %104 = vadd.xlane.f32.xlu0 %v103
  %v105 = vpop.xlane.xlu0 %104
  %v106 = vsel %vm69, %v63, 0.0
  %107 = vadd.xlane.f32.xlu0 %v106
  %v108 = vpop.xlane.xlu0 %107
  %v109 = vsel %vm69, %v64, 0.0
  %110 = vadd.xlane.f32.xlu0 %v109
  %v111 = vpop.xlane.xlu0 %110
  %v112 = vsel %vm69, %v65, 0.0
  %113 = vadd.xlane.f32.xlu0 %v112
  %v114 = vpop.xlane.xlu0 %113
  %v115 = vsel %vm69, %v66, 0.0
  %116 = vadd.xlane.f32.xlu0 %v115
  %v117 = vpop.xlane.xlu0 %116
  %v118 = vrcp.pop 32.0
  %v119 = vmul.f32 %v72, %v118
  %v120 = vmul.f32 %v75, %v118
  %v121 = vmul.f32 %v78, %v118
  %v122 = vmul.f32 %v81, %v118
  %v123 = vmul.f32 %v84, %v118
  %v124 = vmul.f32 %v87, %v118
  %v125 = vmul.f32 %v90, %v118
  %v126 = vmul.f32 %v93, %v118
  %v127 = vmul.f32 %v96, %v118
  %v128 = vmul.f32 %v99, %v118
  %v129 = vmul.f32 %v102, %v118
  %v130 = vmul.f32 %v105, %v118
  %v131 = vmul.f32 %v108, %v118
  %v132 = vmul.f32 %v111, %v118
  %v133 = vmul.f32 %v114, %v118
  %v134 = vmul.f32 %v117, %v118
  %v135 = vsub.f32 %v51, %v119
  %v136 = vsub.f32 %v52, %v120
  %v137 = vsub.f32 %v53, %v121
  %v138 = vsub.f32 %v54, %v122
  %v139 = vsub.f32 %v55, %v123
  %v140 = vsub.f32 %v56, %v124
  %v141 = vsub.f32 %v57, %v125
  %v142 = vsub.f32 %v58, %v126
  %v143 = vsub.f32 %v59, %v127
  %v144 = vsub.f32 %v60, %v128
  %v145 = vsub.f32 %v61, %v129
  %v146 = vsub.f32 %v62, %v130
  %v147 = vsub.f32 %v63, %v131
  %v148 = vsub.f32 %v64, %v132
  %v149 = vsub.f32 %v65, %v133
  %v150 = vsub.f32 %v66, %v134
  %v151 = vmul.f32 %v135, %v135
  %v152 = vmul.f32 %v136, %v136
  %v153 = vmul.f32 %v137, %v137
  %v154 = vmul.f32 %v138, %v138
  %v155 = vmul.f32 %v139, %v139
  %v156 = vmul.f32 %v140, %v140
  %v157 = vmul.f32 %v141, %v141
  %v158 = vmul.f32 %v142, %v142
  %v159 = vmul.f32 %v143, %v143
  %v160 = vmul.f32 %v144, %v144
  %v161 = vmul.f32 %v145, %v145
  %v162 = vmul.f32 %v146, %v146
  %v163 = vmul.f32 %v147, %v147
  %v164 = vmul.f32 %v148, %v148
  %v165 = vmul.f32 %v149, %v149
  %v166 = vmul.f32 %v150, %v150
  %v167 = vsel %vm69, %v151, 0.0
  %168 = vadd.xlane.f32.xlu0 %v167
  %v169 = vpop.xlane.xlu0 %168
  %v170 = vsel %vm69, %v152, 0.0
  %171 = vadd.xlane.f32.xlu0 %v170
  %v172 = vpop.xlane.xlu0 %171
  %v173 = vsel %vm69, %v153, 0.0
  %174 = vadd.xlane.f32.xlu0 %v173
  %v175 = vpop.xlane.xlu0 %174
  %v176 = vsel %vm69, %v154, 0.0
  %177 = vadd.xlane.f32.xlu0 %v176
  %v178 = vpop.xlane.xlu0 %177
  %v179 = vsel %vm69, %v155, 0.0
  %180 = vadd.xlane.f32.xlu0 %v179
  %v181 = vpop.xlane.xlu0 %180
  %v182 = vsel %vm69, %v156, 0.0
  %183 = vadd.xlane.f32.xlu0 %v182
  %v184 = vpop.xlane.xlu0 %183
  %v185 = vsel %vm69, %v157, 0.0
  %186 = vadd.xlane.f32.xlu0 %v185
  %v187 = vpop.xlane.xlu0 %186
  %v188 = vsel %vm69, %v158, 0.0
  %189 = vadd.xlane.f32.xlu0 %v188
  %v190 = vpop.xlane.xlu0 %189
  %v191 = vsel %vm69, %v159, 0.0
  %192 = vadd.xlane.f32.xlu0 %v191
  %v193 = vpop.xlane.xlu0 %192
  %v194 = vsel %vm69, %v160, 0.0
  %195 = vadd.xlane.f32.xlu0 %v194
  %v196 = vpop.xlane.xlu0 %195
  %v197 = vsel %vm69, %v161, 0.0
  %198 = vadd.xlane.f32.xlu0 %v197
  %v199 = vpop.xlane.xlu0 %198
  %v200 = vsel %vm69, %v162, 0.0
  %201 = vadd.xlane.f32.xlu0 %v200
  %v202 = vpop.xlane.xlu0 %201
  %v203 = vsel %vm69, %v163, 0.0
  %204 = vadd.xlane.f32.xlu0 %v203
  %v205 = vpop.xlane.xlu0 %204
  %v206 = vsel %vm69, %v164, 0.0
  %207 = vadd.xlane.f32.xlu0 %v206
  %v208 = vpop.xlane.xlu0 %207
  %v209 = vsel %vm69, %v165, 0.0
  %210 = vadd.xlane.f32.xlu0 %v209
  %v211 = vpop.xlane.xlu0 %210
  %v212 = vsel %vm69, %v166, 0.0
  %213 = vadd.xlane.f32.xlu0 %v212
  %v214 = vpop.xlane.xlu0 %213
  %v215 = vmul.f32 %v169, %v118
  %v216 = vmul.f32 %v172, %v118
  %v217 = vmul.f32 %v175, %v118
  %v218 = vmul.f32 %v178, %v118
  %v219 = vmul.f32 %v181, %v118
  %v220 = vmul.f32 %v184, %v118
  %v221 = vmul.f32 %v187, %v118
  %v222 = vmul.f32 %v190, %v118
  %v223 = vmul.f32 %v193, %v118
  %v224 = vmul.f32 %v196, %v118
  %v225 = vmul.f32 %v199, %v118
  %v226 = vmul.f32 %v202, %v118
  %v227 = vmul.f32 %v205, %v118
  %v228 = vmul.f32 %v208, %v118
  %v229 = vmul.f32 %v211, %v118
  %v230 = vmul.f32 %v214, %v118
  %v231 = vadd.f32 %v215, 1e-05
  %v232 = vadd.f32 %v216, 1e-05
  %v233 = vadd.f32 %v217, 1e-05
  %v234 = vadd.f32 %v218, 1e-05
  %v235 = vadd.f32 %v219, 1e-05
  %v236 = vadd.f32 %v220, 1e-05
  %v237 = vadd.f32 %v221, 1e-05
  %v238 = vadd.f32 %v222, 1e-05
  %v239 = vadd.f32 %v223, 1e-05
  %v240 = vadd.f32 %v224, 1e-05
  %v241 = vadd.f32 %v225, 1e-05
  %v242 = vadd.f32 %v226, 1e-05
  %v243 = vadd.f32 %v227, 1e-05
  %v244 = vadd.f32 %v228, 1e-05
  %v245 = vadd.f32 %v229, 1e-05
  %v246 = vadd.f32 %v230, 1e-05
  %v247 = vrsqrt.pop %v231
  %v248 = vrsqrt.pop %v232
  %v249 = vrsqrt.pop %v233
  %v250 = vrsqrt.pop %v234
  %v251 = vrsqrt.pop %v235
  %v252 = vrsqrt.pop %v236
  %v253 = vrsqrt.pop %v237
  %v254 = vrsqrt.pop %v238
  %v255 = vrsqrt.pop %v239
  %v256 = vrsqrt.pop %v240
  %v257 = vrsqrt.pop %v241
  %v258 = vrsqrt.pop %v242
  %v259 = vrsqrt.pop %v243
  %v260 = vrsqrt.pop %v244
  %v261 = vrsqrt.pop %v245
  %v262 = vrsqrt.pop %v246
  %v263 = vmul.f32 %v135, %v247
  %v264 = vmul.f32 %v136, %v248
  %v265 = vmul.f32 %v137, %v249
  %v266 = vmul.f32 %v138, %v250
  %v267 = vmul.f32 %v139, %v251
  %v268 = vmul.f32 %v140, %v252
  %v269 = vmul.f32 %v141, %v253
  %v270 = vmul.f32 %v142, %v254
  %v271 = vmul.f32 %v143, %v255
  %v272 = vmul.f32 %v144, %v256
  %v273 = vmul.f32 %v145, %v257
  %v274 = vmul.f32 %v146, %v258
  %v275 = vmul.f32 %v147, %v259
  %v276 = vmul.f32 %v148, %v260
  %v277 = vmul.f32 %v149, %v261
  %v278 = vmul.f32 %v150, %v262
  %v280 = vlaneseq
  %v281 = vshrl.u32 %v280, 7
  %v282 = vsub.s32 0, %v281
  %v283 = vrot.slane %v67, %v282
  %v285 = vmul.f32 %v263, %v283
  %v286 = vmul.f32 %v264, %v283
  %v287 = vmul.f32 %v265, %v283
  %v288 = vmul.f32 %v266, %v283
  %v289 = vmul.f32 %v267, %v283
  %v290 = vmul.f32 %v268, %v283
  %v291 = vmul.f32 %v269, %v283
  %v292 = vmul.f32 %v270, %v283
  %v293 = vmul.f32 %v271, %v283
  %v294 = vmul.f32 %v272, %v283
  %v295 = vmul.f32 %v273, %v283
  %v296 = vmul.f32 %v274, %v283
  %v297 = vmul.f32 %v275, %v283
  %v298 = vmul.f32 %v276, %v283
  %v299 = vmul.f32 %v277, %v283
  %v300 = vmul.f32 %v278, %v283
  %v302 = vlaneseq
  %v303 = vshrl.u32 %v302, 7
  %v304 = vsub.s32 0, %v303
  %v305 = vrot.slane %v68, %v304
  %v307 = vadd.f32 %v285, %v305
  %v308 = vadd.f32 %v286, %v305
  %v309 = vadd.f32 %v287, %v305
  %v310 = vadd.f32 %v288, %v305
  %v311 = vadd.f32 %v289, %v305
  %v312 = vadd.f32 %v290, %v305
  %v313 = vadd.f32 %v291, %v305
  %v314 = vadd.f32 %v292, %v305
  %v315 = vadd.f32 %v293, %v305
  %v316 = vadd.f32 %v294, %v305
  %v317 = vadd.f32 %v295, %v305
  %v318 = vadd.f32 %v296, %v305
  %v319 = vadd.f32 %v297, %v305
  %v320 = vadd.f32 %v298, %v305
  %v321 = vadd.f32 %v299, %v305
  %v322 = vadd.f32 %v300, %v305
  %v323 = vpack.c.bf16 %v308, %v307
  %v324 = vpack.c.bf16 %v310, %v309
  %v325 = vpack.c.bf16 %v312, %v311
  %v326 = vpack.c.bf16 %v314, %v313
  %v327 = vpack.c.bf16 %v316, %v315
  %v328 = vpack.c.bf16 %v318, %v317
  %v329 = vpack.c.bf16 %v320, %v319
  %v330 = vpack.c.bf16 %v322, %v321
  %v331 = vld [vmem:[%s1] sm:$0xf]
  %v332 = vld [vmem:[%s1 + $0x4] sm:$0xf]
  %v333 = vld [vmem:[%s1 + $0x8] sm:$0xf]
  %v334 = vld [vmem:[%s1 + $0xc] sm:$0xf]
  %v335 = vld [vmem:[%s2] sm:$0x1]
  %v337 = vlaneseq
  %v338 = vshrl.u32 %v337, 7
  %v339 = vsub.s32 0, %v338
  %v340 = vrot.slane %v335, %v339
  %v346 = vunpack.c.l.b16 %v331
  %v347 = vunpack.c.l.b16 %v332
  %v348 = vunpack.c.l.b16 %v333
  %v349 = vunpack.c.l.b16 %v334
  %v350 = vpack.c.b16 %v347, %v346
  %v351 = vpack.c.b16 %v349, %v348
  %v355 = vsel %vm69, %v323, 0
  %v358 = vsel %vm69, %v324, 0
  %v361 = vsel %vm69, %v325, 0
  %v364 = vsel %vm69, %v326, 0
  %v367 = vsel %vm69, %v327, 0
  %v370 = vsel %vm69, %v328, 0
  %v373 = vsel %vm69, %v329, 0
  %v376 = vsel %vm69, %v330, 0
  %378 = vmatprep.subr.bf16.mxu0 0
  %379 = vmatpush1.bf16.msra.mxu0 %v350
  %380 = vmatprep.subr.bf16.mxu0 0
  %381 = vmatpush1.bf16.msra.mxu0 %v351
  %382 = vmatprep.subr.bf16.mxu0 0
  %383 = vmatpush1.bf16.msra.mxu0 0
  %384 = vmatprep.subr.bf16.mxu0 0
  %385 = vmatpush1.bf16.msra.mxu0 0
  %386 = vmatprep.subr.bf16.mxu0 0
  %387 = vmatpush1.bf16.msra.mxu0 0
  %388 = vmatprep.subr.bf16.mxu0 0
  %389 = vmatpush1.bf16.msra.mxu0 0
  %390 = vmatprep.subr.bf16.mxu0 0
  %391 = vmatpush1.bf16.msra.mxu0 0
  %392 = vmatprep.subr.bf16.mxu0 0
  %393 = vmatpush1.bf16.msra.mxu0 0
  %394 = vmatprep.subr.bf16.mxu0 0
  %395 = vmatpush1.bf16.msra.mxu0 0
  %396 = vmatprep.subr.bf16.mxu0 0
  %397 = vmatpush1.bf16.msra.mxu0 0
  %398 = vmatprep.subr.bf16.mxu0 0
  %399 = vmatpush1.bf16.msra.mxu0 0
  %400 = vmatprep.subr.bf16.mxu0 0
  %401 = vmatpush1.bf16.msra.mxu0 0
  %402 = vmatprep.subr.bf16.mxu0 0
  %403 = vmatpush1.bf16.msra.mxu0 0
  %404 = vmatprep.subr.bf16.mxu0 0
  %405 = vmatpush1.bf16.msra.mxu0 0
  %406 = vmatprep.subr.bf16.mxu0 0
  %407 = vmatpush1.bf16.msra.mxu0 0
  %408 = vmatprep.subr.bf16.mxu0 0
  %409 = vmatpush1.bf16.msra.mxu0 0
  %410 = vmatprep.mubr.bf16.mxu0 0
  %411 = vmatmul.mubr.bf16.gmra.mrb[0].mxu0 %v355
  %v412 = vpop.f32.mrb[0].mxu0
  %v413 = vadd.f32 %v340, %v412
  %v414 = vpop.f32.mrb[0].mxu0
  %v415 = vpop.f32.mrb[0].mxu0
  %v416 = vadd.f32 %v340, %v415
  %v417 = vpop.f32.mrb[0].mxu0
  %418 = vmatprep.mubr.bf16.mxu0 0
  %419 = vmatmul.mubr.bf16.gmra.mrb[0].mxu0 %v358
  %v420 = vpop.f32.mrb[0].mxu0
  %v421 = vadd.f32 %v340, %v420
  %v422 = vpop.f32.mrb[0].mxu0
  %v423 = vpop.f32.mrb[0].mxu0
  %v424 = vadd.f32 %v340, %v423
  %v425 = vpop.f32.mrb[0].mxu0
  %426 = vmatprep.mubr.bf16.mxu0 0
  %427 = vmatmul.mubr.bf16.gmra.mrb[0].mxu0 %v361
  %v428 = vpop.f32.mrb[0].mxu0
  %v429 = vadd.f32 %v340, %v428
  %v430 = vpop.f32.mrb[0].mxu0
  %v431 = vpop.f32.mrb[0].mxu0
  %v432 = vadd.f32 %v340, %v431
  %v433 = vpop.f32.mrb[0].mxu0
  %434 = vmatprep.mubr.bf16.mxu0 0
  %435 = vmatmul.mubr.bf16.gmra.mrb[0].mxu0 %v364
  %v436 = vpop.f32.mrb[0].mxu0
  %v437 = vadd.f32 %v340, %v436
  %v438 = vpop.f32.mrb[0].mxu0
  %v439 = vpop.f32.mrb[0].mxu0
  %v440 = vadd.f32 %v340, %v439
  %v441 = vpop.f32.mrb[0].mxu0
  %442 = vmatprep.mubr.bf16.mxu0 0
  %443 = vmatmul.mubr.bf16.gmra.mrb[0].mxu0 %v367
  %v444 = vpop.f32.mrb[0].mxu0
  %v445 = vadd.f32 %v340, %v444
  %v446 = vpop.f32.mrb[0].mxu0
  %v447 = vpop.f32.mrb[0].mxu0
  %v448 = vadd.f32 %v340, %v447
  %v449 = vpop.f32.mrb[0].mxu0
  %450 = vmatprep.mubr.bf16.mxu0 0
  %451 = vmatmul.mubr.bf16.gmra.mrb[0].mxu0 %v370
  %v452 = vpop.f32.mrb[0].mxu0
  %v453 = vadd.f32 %v340, %v452
  %v454 = vpop.f32.mrb[0].mxu0
  %v455 = vpop.f32.mrb[0].mxu0
  %v456 = vadd.f32 %v340, %v455
  %v457 = vpop.f32.mrb[0].mxu0
  %458 = vmatprep.mubr.bf16.mxu0 0
  %459 = vmatmul.mubr.bf16.gmra.mrb[0].mxu0 %v373
  %v460 = vpop.f32.mrb[0].mxu0
  %v461 = vadd.f32 %v340, %v460
  %v462 = vpop.f32.mrb[0].mxu0
  %v463 = vpop.f32.mrb[0].mxu0
  %v464 = vadd.f32 %v340, %v463
  %v465 = vpop.f32.mrb[0].mxu0
  %466 = vmatprep.mubr.bf16.mxu0 0
  %467 = vmatmul.mubr.bf16.gmra.mrb[0].mxu0 %v376
  %v468 = vpop.f32.mrb[0].mxu0
  %v469 = vadd.f32 %v340, %v468
  %v470 = vpop.f32.mrb[0].mxu0
  %v471 = vpop.f32.mrb[0].mxu0
  %v472 = vadd.f32 %v340, %v471
  %v473 = vpop.f32.mrb[0].mxu0
  %474 = vdwg.mxu0
  %v475 = vld [vmem:[%s6] sm:$0xf]
  %v478 = vunpack.c.l.s4 1966171168
  %v479 = vunpack.c.0.s8 %v478
  %v480 = vlaneseq
  %v481 = vshrl.u32 %v480, 7
  %v482 = vsub.s32 %v479, %v481
  %v483 = vrot.slane %v475, %v482
  %v484 = vcombine.high %v483, %v483
  %v486 = vunpack.c.l.s4 1966171168
  %v487 = vunpack.c.0.s8 %v486
  %v488 = vlaneseq
  %v489 = vshrl.u32 %v488, 7
  %v490 = vsub.s32 %v487, %v489
  %v491 = vrot.slane %v483, %v490
  %v493 = vunpack.c.l.s4 1966171168
  %v494 = vunpack.c.0.s8 %v493
  %v495 = vlaneseq
  %v496 = vshrl.u32 %v495, 7
  %v497 = vsub.s32 %v494, %v496
  %v498 = vrot.slane %v484, %v497
  %v499 = vcombine.high %v491, %v491
  %v500 = vcombine.high %v498, %v498
  %v501 = vlaneseq
  %v502 = vshrl.u32 %v501, 7
  %v503 = vsub.s32 0, %v502
  %v504 = vrot.slane %v491, %v503
  %v505 = vlaneseq
  %v506 = vshrl.u32 %v505, 7
  %v507 = vsub.s32 0, %v506
  %v508 = vrot.slane %v498, %v507
  %v509 = vlaneseq
  %v510 = vshrl.u32 %v509, 7
  %v511 = vsub.s32 0, %v510
  %v512 = vrot.slane %v499, %v511
  %v513 = vlaneseq
  %v514 = vshrl.u32 %v513, 7
  %v515 = vsub.s32 0, %v514
  %v516 = vrot.slane %v500, %v515
  %v521 = vmul.f32 %v413, %v504
  %v522 = vmul.f32 %v416, %v504
  %v523 = vmul.f32 %v421, %v504
  %v524 = vmul.f32 %v424, %v504
  %v525 = vmul.f32 %v429, %v504
  %v526 = vmul.f32 %v432, %v504
  %v527 = vmul.f32 %v437, %v504
  %v528 = vmul.f32 %v440, %v504
  %v529 = vmul.f32 %v445, %v504
  %v530 = vmul.f32 %v448, %v504
  %v531 = vmul.f32 %v453, %v504
  %v532 = vmul.f32 %v456, %v504
  %v533 = vmul.f32 %v461, %v504
  %v534 = vmul.f32 %v464, %v504
  %v535 = vmul.f32 %v469, %v504
  %v536 = vmul.f32 %v472, %v504
  %v537 = vmul.f32 %v413, %v508
  %v538 = vmul.f32 %v416, %v508
  %v539 = vmul.f32 %v421, %v508
  %v540 = vmul.f32 %v424, %v508
  %v541 = vmul.f32 %v429, %v508
  %v542 = vmul.f32 %v432, %v508
  %v543 = vmul.f32 %v437, %v508
  %v544 = vmul.f32 %v440, %v508
  %v545 = vmul.f32 %v445, %v508
  %v546 = vmul.f32 %v448, %v508
  %v547 = vmul.f32 %v453, %v508
  %v548 = vmul.f32 %v456, %v508
  %v549 = vmul.f32 %v461, %v508
  %v550 = vmul.f32 %v464, %v508
  %v551 = vmul.f32 %v469, %v508
  %v552 = vmul.f32 %v472, %v508
  %v553 = vmul.f32 %v413, %v512
  %v554 = vmul.f32 %v416, %v512
  %v555 = vmul.f32 %v421, %v512
  %v556 = vmul.f32 %v424, %v512
  %v557 = vmul.f32 %v429, %v512
  %v558 = vmul.f32 %v432, %v512
  %v559 = vmul.f32 %v437, %v512
  %v560 = vmul.f32 %v440, %v512
  %v561 = vmul.f32 %v445, %v512
  %v562 = vmul.f32 %v448, %v512
  %v563 = vmul.f32 %v453, %v512
  %v564 = vmul.f32 %v456, %v512
  %v565 = vmul.f32 %v461, %v512
  %v566 = vmul.f32 %v464, %v512
  %v567 = vmul.f32 %v469, %v512
  %v568 = vmul.f32 %v472, %v512
  %v569 = vmul.f32 %v413, %v516
  %v570 = vmul.f32 %v416, %v516
  %v571 = vmul.f32 %v421, %v516
  %v572 = vmul.f32 %v424, %v516
  %v573 = vmul.f32 %v429, %v516
  %v574 = vmul.f32 %v432, %v516
  %v575 = vmul.f32 %v437, %v516
  %v576 = vmul.f32 %v440, %v516
  %v577 = vmul.f32 %v445, %v516
  %v578 = vmul.f32 %v448, %v516
  %v579 = vmul.f32 %v453, %v516
  %v580 = vmul.f32 %v456, %v516
  %v581 = vmul.f32 %v461, %v516
  %v582 = vmul.f32 %v464, %v516
  %v583 = vmul.f32 %v469, %v516
  %v584 = vmul.f32 %v472, %v516
  %v585 = vpack.c.bf16 %v522, %v521
  %v586 = vpack.c.bf16 %v524, %v523
  %v587 = vpack.c.bf16 %v526, %v525
  %v588 = vpack.c.bf16 %v528, %v527
  %v589 = vpack.c.bf16 %v530, %v529
  %v590 = vpack.c.bf16 %v532, %v531
  %v591 = vpack.c.bf16 %v534, %v533
  %v592 = vpack.c.bf16 %v536, %v535
  %v593 = vpack.c.bf16 %v538, %v537
  %v594 = vpack.c.bf16 %v540, %v539
  %v595 = vpack.c.bf16 %v542, %v541
  %v596 = vpack.c.bf16 %v544, %v543
  %v597 = vpack.c.bf16 %v546, %v545
  %v598 = vpack.c.bf16 %v548, %v547
  %v599 = vpack.c.bf16 %v550, %v549
  %v600 = vpack.c.bf16 %v552, %v551
  %v601 = vpack.c.bf16 %v554, %v553
  %v602 = vpack.c.bf16 %v556, %v555
  %v603 = vpack.c.bf16 %v558, %v557
  %v604 = vpack.c.bf16 %v560, %v559
  %v605 = vpack.c.bf16 %v562, %v561
  %v606 = vpack.c.bf16 %v564, %v563
  %v607 = vpack.c.bf16 %v566, %v565
  %v608 = vpack.c.bf16 %v568, %v567
  %v609 = vpack.c.bf16 %v570, %v569
  %v610 = vpack.c.bf16 %v572, %v571
  %v611 = vpack.c.bf16 %v574, %v573
  %v612 = vpack.c.bf16 %v576, %v575
  %v613 = vpack.c.bf16 %v578, %v577
  %v614 = vpack.c.bf16 %v580, %v579
  %v615 = vpack.c.bf16 %v582, %v581
  %v616 = vpack.c.bf16 %v584, %v583
  %617 = vrot.lane.b32.xlu0 %v504, 64
  %v618 = vpop.permute.xlu0 %617
  %619 = vrot.lane.b32.xlu0 %v508, 64
  %v620 = vpop.permute.xlu0 %619
  %621 = vrot.lane.b32.xlu0 %v512, 64
  %v622 = vpop.permute.xlu0 %621
  %623 = vrot.lane.b32.xlu0 %v516, 64
  %v624 = vpop.permute.xlu0 %623
  %v629 = vmul.f32 %v413, %v618
  %v630 = vmul.f32 %v416, %v618
  %v631 = vmul.f32 %v421, %v618
  %v632 = vmul.f32 %v424, %v618
  %v633 = vmul.f32 %v429, %v618
  %v634 = vmul.f32 %v432, %v618
  %v635 = vmul.f32 %v437, %v618
  %v636 = vmul.f32 %v440, %v618
  %v637 = vmul.f32 %v445, %v618
  %v638 = vmul.f32 %v448, %v618
  %v639 = vmul.f32 %v453, %v618
  %v640 = vmul.f32 %v456, %v618
  %v641 = vmul.f32 %v461, %v618
  %v642 = vmul.f32 %v464, %v618
  %v643 = vmul.f32 %v469, %v618
  %v644 = vmul.f32 %v472, %v618
  %v645 = vmul.f32 %v413, %v620
  %v646 = vmul.f32 %v416, %v620
  %v647 = vmul.f32 %v421, %v620
  %v648 = vmul.f32 %v424, %v620
  %v649 = vmul.f32 %v429, %v620
  %v650 = vmul.f32 %v432, %v620
  %v651 = vmul.f32 %v437, %v620
  %v652 = vmul.f32 %v440, %v620
  %v653 = vmul.f32 %v445, %v620
  %v654 = vmul.f32 %v448, %v620
  %v655 = vmul.f32 %v453, %v620
  %v656 = vmul.f32 %v456, %v620
  %v657 = vmul.f32 %v461, %v620
  %v658 = vmul.f32 %v464, %v620
  %v659 = vmul.f32 %v469, %v620
  %v660 = vmul.f32 %v472, %v620
  %v661 = vmul.f32 %v413, %v622
  %v662 = vmul.f32 %v416, %v622
  %v663 = vmul.f32 %v421, %v622
  %v664 = vmul.f32 %v424, %v622
  %v665 = vmul.f32 %v429, %v622
  %v666 = vmul.f32 %v432, %v622
  %v667 = vmul.f32 %v437, %v622
  %v668 = vmul.f32 %v440, %v622
  %v669 = vmul.f32 %v445, %v622
  %v670 = vmul.f32 %v448, %v622
  %v671 = vmul.f32 %v453, %v622
  %v672 = vmul.f32 %v456, %v622
  %v673 = vmul.f32 %v461, %v622
  %v674 = vmul.f32 %v464, %v622
  %v675 = vmul.f32 %v469, %v622
  %v676 = vmul.f32 %v472, %v622
  %v677 = vmul.f32 %v413, %v624
  %v678 = vmul.f32 %v416, %v624
  %v679 = vmul.f32 %v421, %v624
  %v680 = vmul.f32 %v424, %v624
  %v681 = vmul.f32 %v429, %v624
  %v682 = vmul.f32 %v432, %v624
  %v683 = vmul.f32 %v437, %v624
  %v684 = vmul.f32 %v440, %v624
  %v685 = vmul.f32 %v445, %v624
  %v686 = vmul.f32 %v448, %v624
  %v687 = vmul.f32 %v453, %v624
  %v688 = vmul.f32 %v456, %v624
  %v689 = vmul.f32 %v461, %v624
  %v690 = vmul.f32 %v464, %v624
  %v691 = vmul.f32 %v469, %v624
  %v692 = vmul.f32 %v472, %v624
  %v693 = vpack.c.bf16 %v630, %v629
  %v694 = vpack.c.bf16 %v632, %v631
  %v695 = vpack.c.bf16 %v634, %v633
  %v696 = vpack.c.bf16 %v636, %v635
  %v697 = vpack.c.bf16 %v638, %v637
  %v698 = vpack.c.bf16 %v640, %v639
  %v699 = vpack.c.bf16 %v642, %v641
  %v700 = vpack.c.bf16 %v644, %v643
  %v701 = vpack.c.bf16 %v646, %v645
  %v702 = vpack.c.bf16 %v648, %v647
  %v703 = vpack.c.bf16 %v650, %v649
  %v704 = vpack.c.bf16 %v652, %v651
  %v705 = vpack.c.bf16 %v654, %v653
  %v706 = vpack.c.bf16 %v656, %v655
  %v707 = vpack.c.bf16 %v658, %v657
  %v708 = vpack.c.bf16 %v660, %v659
  %v709 = vpack.c.bf16 %v662, %v661
  %v710 = vpack.c.bf16 %v664, %v663
  %v711 = vpack.c.bf16 %v666, %v665
  %v712 = vpack.c.bf16 %v668, %v667
  %v713 = vpack.c.bf16 %v670, %v669
  %v714 = vpack.c.bf16 %v672, %v671
  %v715 = vpack.c.bf16 %v674, %v673
  %v716 = vpack.c.bf16 %v676, %v675
  %v717 = vpack.c.bf16 %v678, %v677
  %v718 = vpack.c.bf16 %v680, %v679
  %v719 = vpack.c.bf16 %v682, %v681
  %v720 = vpack.c.bf16 %v684, %v683
  %v721 = vpack.c.bf16 %v686, %v685
  %v722 = vpack.c.bf16 %v688, %v687
  %v723 = vpack.c.bf16 %v690, %v689
  %v724 = vpack.c.bf16 %v692, %v691
  %v725 = vpack.c.bf16 %v416, %v413
  %v726 = vpack.c.bf16 %v424, %v421
  %v727 = vpack.c.bf16 %v432, %v429
  %v728 = vpack.c.bf16 %v440, %v437
  %v729 = vpack.c.bf16 %v448, %v445
  %v730 = vpack.c.bf16 %v456, %v453
  %v731 = vpack.c.bf16 %v464, %v461
  %v732 = vpack.c.bf16 %v472, %v469
  %741 = vrot.lane.b32.xlu0 %v725, 96
  %v742 = vpop.permute.xlu0 %741
  %743 = vrot.lane.b32.xlu0 %v726, 96
  %v744 = vpop.permute.xlu0 %743
  %745 = vrot.lane.b32.xlu0 %v727, 96
  %v746 = vpop.permute.xlu0 %745
  %747 = vrot.lane.b32.xlu0 %v728, 96
  %v748 = vpop.permute.xlu0 %747
  %749 = vrot.lane.b32.xlu0 %v729, 96
  %v750 = vpop.permute.xlu0 %749
  %751 = vrot.lane.b32.xlu0 %v730, 96
  %v752 = vpop.permute.xlu0 %751
  %753 = vrot.lane.b32.xlu0 %v731, 96
  %v754 = vpop.permute.xlu0 %753
  %755 = vrot.lane.b32.xlu0 %v732, 96
  %v756 = vpop.permute.xlu0 %755
  %v758 = vsel %vm69, %v585, 0
  %v761 = vsel %vm69, %v586, 0
  %v764 = vsel %vm69, %v587, 0
  %v767 = vsel %vm69, %v588, 0
  %v770 = vsel %vm69, %v589, 0
  %v773 = vsel %vm69, %v590, 0
  %v776 = vsel %vm69, %v591, 0
  %v779 = vsel %vm69, %v592, 0
  %v782 = vsel %vm69, %v593, 0
  %v785 = vsel %vm69, %v594, 0
  %v788 = vsel %vm69, %v595, 0
  %v791 = vsel %vm69, %v596, 0
  %v794 = vsel %vm69, %v597, 0
  %v797 = vsel %vm69, %v598, 0
  %v800 = vsel %vm69, %v599, 0
  %v803 = vsel %vm69, %v600, 0
  %v806 = vsel %vm69, %v601, 0
  %v809 = vsel %vm69, %v602, 0
  %v812 = vsel %vm69, %v603, 0
  %v815 = vsel %vm69, %v604, 0
  %v818 = vsel %vm69, %v605, 0
  %v821 = vsel %vm69, %v606, 0
  %v824 = vsel %vm69, %v607, 0
  %v827 = vsel %vm69, %v608, 0
  %v830 = vsel %vm69, %v609, 0
  %v833 = vsel %vm69, %v610, 0
  %v836 = vsel %vm69, %v611, 0
  %v839 = vsel %vm69, %v612, 0
  %v842 = vsel %vm69, %v613, 0
  %v845 = vsel %vm69, %v614, 0
  %v848 = vsel %vm69, %v615, 0
  %v851 = vsel %vm69, %v616, 0
  %v854 = vsel %vm69, %v742, 0
  %v857 = vsel %vm69, %v744, 0
  %v860 = vsel %vm69, %v746, 0
  %v863 = vsel %vm69, %v748, 0
  %v866 = vsel %vm69, %v750, 0
  %v869 = vsel %vm69, %v752, 0
  %v872 = vsel %vm69, %v754, 0
  %v875 = vsel %vm69, %v756, 0
  %877 = vmatprep.subr.bf16.mxu0 0
  %878 = vmatpush1.bf16.xpose.msra.mxu0 %v854
  %879 = vmatprep.subr.bf16.mxu0 0
  %880 = vmatpush1.bf16.xpose.msra.mxu0 %v857
  %881 = vmatprep.subr.bf16.mxu0 0
  %882 = vmatpush1.bf16.xpose.msra.mxu0 %v860
  %883 = vmatprep.subr.bf16.mxu0 0
  %884 = vmatpush1.bf16.xpose.msra.mxu0 %v863
  %885 = vmatprep.subr.bf16.mxu0 0
  %886 = vmatpush1.bf16.xpose.msra.mxu0 %v866
  %887 = vmatprep.subr.bf16.mxu0 0
  %888 = vmatpush1.bf16.xpose.msra.mxu0 %v869
  %889 = vmatprep.subr.bf16.mxu0 0
  %890 = vmatpush1.bf16.xpose.msra.mxu0 %v872
  %891 = vmatprep.subr.bf16.mxu0 0
  %892 = vmatpush1.bf16.xpose.msra.mxu0 %v875
  %893 = vmatprep.subr.bf16.mxu0 0
  %894 = vmatpush1.bf16.xpose.msra.mxu0 0
  %895 = vmatprep.subr.bf16.mxu0 0
  %896 = vmatpush1.bf16.xpose.msra.mxu0 0
  %897 = vmatprep.subr.bf16.mxu0 0
  %898 = vmatpush1.bf16.xpose.msra.mxu0 0
  %899 = vmatprep.subr.bf16.mxu0 0
  %900 = vmatpush1.bf16.xpose.msra.mxu0 0
  %901 = vmatprep.subr.bf16.mxu0 0
  %902 = vmatpush1.bf16.xpose.msra.mxu0 0
  %903 = vmatprep.subr.bf16.mxu0 0
  %904 = vmatpush1.bf16.xpose.msra.mxu0 0
  %905 = vmatprep.subr.bf16.mxu0 0
  %906 = vmatpush1.bf16.xpose.msra.mxu0 0
  %907 = vmatprep.subr.bf16.mxu0 0
  %908 = vmatpush1.bf16.xpose.msra.mxu0 0
  %909 = vmatprep.mubr.bf16.mxu0 0
  %910 = vmatmul.mubr.bf16.gmra.mrb[0].mxu0 %v758
  %v911 = vpop.f32.mrb[0].mxu0
  %v912 = vadd.f32 0.0, %v911
  %v913 = vpop.f32.mrb[0].mxu0
  %v914 = vpop.f32.mrb[0].mxu0
  %v915 = vadd.f32 0.0, %v914
  %v916 = vpop.f32.mrb[0].mxu0
  %917 = vmatprep.mubr.bf16.mxu0 0
  %918 = vmatmul.mubr.bf16.gmra.mrb[0].mxu0 %v761
  %v919 = vpop.f32.mrb[0].mxu0
  %v920 = vadd.f32 0.0, %v919
  %v921 = vpop.f32.mrb[0].mxu0
  %v922 = vpop.f32.mrb[0].mxu0
  %v923 = vadd.f32 0.0, %v922
  %v924 = vpop.f32.mrb[0].mxu0
  %925 = vmatprep.mubr.bf16.mxu0 0
  %926 = vmatmul.mubr.bf16.gmra.mrb[0].mxu0 %v764
  %v927 = vpop.f32.mrb[0].mxu0
  %v928 = vadd.f32 0.0, %v927
  %v929 = vpop.f32.mrb[0].mxu0
  %v930 = vpop.f32.mrb[0].mxu0
  %v931 = vadd.f32 0.0, %v930
  %v932 = vpop.f32.mrb[0].mxu0
  %933 = vmatprep.mubr.bf16.mxu0 0
  %934 = vmatmul.mubr.bf16.gmra.mrb[0].mxu0 %v767
  %v935 = vpop.f32.mrb[0].mxu0
  %v936 = vadd.f32 0.0, %v935
  %v937 = vpop.f32.mrb[0].mxu0
  %v938 = vpop.f32.mrb[0].mxu0
  %v939 = vadd.f32 0.0, %v938
  %v940 = vpop.f32.mrb[0].mxu0
  %941 = vmatprep.mubr.bf16.mxu0 0
  %942 = vmatmul.mubr.bf16.gmra.mrb[0].mxu0 %v770
  %v943 = vpop.f32.mrb[0].mxu0
  %v944 = vadd.f32 0.0, %v943
  %v945 = vpop.f32.mrb[0].mxu0
  %v946 = vpop.f32.mrb[0].mxu0
  %v947 = vadd.f32 0.0, %v946
  %v948 = vpop.f32.mrb[0].mxu0
  %949 = vmatprep.mubr.bf16.mxu0 0
  %950 = vmatmul.mubr.bf16.gmra.mrb[0].mxu0 %v773
  %v951 = vpop.f32.mrb[0].mxu0
  %v952 = vadd.f32 0.0, %v951
  %v953 = vpop.f32.mrb[0].mxu0
  %v954 = vpop.f32.mrb[0].mxu0
  %v955 = vadd.f32 0.0, %v954
  %v956 = vpop.f32.mrb[0].mxu0
  %957 = vmatprep.mubr.bf16.mxu0 0
  %958 = vmatmul.mubr.bf16.gmra.mrb[0].mxu0 %v776
  %v959 = vpop.f32.mrb[0].mxu0
  %v960 = vadd.f32 0.0, %v959
  %v961 = vpop.f32.mrb[0].mxu0
  %v962 = vpop.f32.mrb[0].mxu0
  %v963 = vadd.f32 0.0, %v962
  %v964 = vpop.f32.mrb[0].mxu0
  %965 = vmatprep.mubr.bf16.mxu0 0
  %966 = vmatmul.mubr.bf16.gmra.mrb[0].mxu0 %v779
  %v967 = vpop.f32.mrb[0].mxu0
  %v968 = vadd.f32 0.0, %v967
  %v969 = vpop.f32.mrb[0].mxu0
  %v970 = vpop.f32.mrb[0].mxu0
  %v971 = vadd.f32 0.0, %v970
  %v972 = vpop.f32.mrb[0].mxu0
  %973 = vmatprep.mubr.bf16.mxu0 0
  %974 = vmatmul.mubr.bf16.gmra.mrb[0].mxu0 %v782
  %v975 = vpop.f32.mrb[0].mxu0
  %v976 = vadd.f32 0.0, %v975
  %v977 = vpop.f32.mrb[0].mxu0
  %v978 = vpop.f32.mrb[0].mxu0
  %v979 = vadd.f32 0.0, %v978
  %v980 = vpop.f32.mrb[0].mxu0
  %981 = vmatprep.mubr.bf16.mxu0 0
  %982 = vmatmul.mubr.bf16.gmra.mrb[0].mxu0 %v785
  %v983 = vpop.f32.mrb[0].mxu0
  %v984 = vadd.f32 0.0, %v983
  %v985 = vpop.f32.mrb[0].mxu0
  %v986 = vpop.f32.mrb[0].mxu0
  %v987 = vadd.f32 0.0, %v986
  %v988 = vpop.f32.mrb[0].mxu0
  %989 = vmatprep.mubr.bf16.mxu0 0
  %990 = vmatmul.mubr.bf16.gmra.mrb[0].mxu0 %v788
  %v991 = vpop.f32.mrb[0].mxu0
  %v992 = vadd.f32 0.0, %v991
  %v993 = vpop.f32.mrb[0].mxu0
  %v994 = vpop.f32.mrb[0].mxu0
  %v995 = vadd.f32 0.0, %v994
  %v996 = vpop.f32.mrb[0].mxu0
  %997 = vmatprep.mubr.bf16.mxu0 0
  %998 = vmatmul.mubr.bf16.gmra.mrb[0].mxu0 %v791
  %v999 = vpop.f32.mrb[0].mxu0
  %v1000 = vadd.f32 0.0, %v999
  %v1001 = vpop.f32.mrb[0].mxu0
  %v1002 = vpop.f32.mrb[0].mxu0
  %v1003 = vadd.f32 0.0, %v1002
  %v1004 = vpop.f32.mrb[0].mxu0
  %1005 = vmatprep.mubr.bf16.mxu0 0
  %1006 = vmatmul.mubr.bf16.gmra.mrb[0].mxu0 %v794
  %v1007 = vpop.f32.mrb[0].mxu0
  %v1008 = vadd.f32 0.0, %v1007
  %v1009 = vpop.f32.mrb[0].mxu0
  %v1010 = vpop.f32.mrb[0].mxu0
  %v1011 = vadd.f32 0.0, %v1010
  %v1012 = vpop.f32.mrb[0].mxu0
  %1013 = vmatprep.mubr.bf16.mxu0 0
  %1014 = vmatmul.mubr.bf16.gmra.mrb[0].mxu0 %v797
  %v1015 = vpop.f32.mrb[0].mxu0
  %v1016 = vadd.f32 0.0, %v1015
  %v1017 = vpop.f32.mrb[0].mxu0
  %v1018 = vpop.f32.mrb[0].mxu0
  %v1019 = vadd.f32 0.0, %v1018
  %v1020 = vpop.f32.mrb[0].mxu0
  %1021 = vmatprep.mubr.bf16.mxu0 0
  %1022 = vmatmul.mubr.bf16.gmra.mrb[0].mxu0 %v800
  %v1023 = vpop.f32.mrb[0].mxu0
  %v1024 = vadd.f32 0.0, %v1023
  %v1025 = vpop.f32.mrb[0].mxu0
  %v1026 = vpop.f32.mrb[0].mxu0
  %v1027 = vadd.f32 0.0, %v1026
  %v1028 = vpop.f32.mrb[0].mxu0
  %1029 = vmatprep.mubr.bf16.mxu0 0
  %1030 = vmatmul.mubr.bf16.gmra.mrb[0].mxu0 %v803
  %v1031 = vpop.f32.mrb[0].mxu0
  %v1032 = vadd.f32 0.0, %v1031
  %v1033 = vpop.f32.mrb[0].mxu0
  %v1034 = vpop.f32.mrb[0].mxu0
  %v1035 = vadd.f32 0.0, %v1034
  %v1036 = vpop.f32.mrb[0].mxu0
  %1037 = vmatprep.mubr.bf16.mxu0 0
  %1038 = vmatmul.mubr.bf16.gmra.mrb[0].mxu0 %v806
  %v1039 = vpop.f32.mrb[0].mxu0
  %v1040 = vadd.f32 0.0, %v1039
  %v1041 = vpop.f32.mrb[0].mxu0
  %v1042 = vpop.f32.mrb[0].mxu0
  %v1043 = vadd.f32 0.0, %v1042
  %v1044 = vpop.f32.mrb[0].mxu0
  %1045 = vmatprep.mubr.bf16.mxu0 0
  %1046 = vmatmul.mubr.bf16.gmra.mrb[0].mxu0 %v809
  %v1047 = vpop.f32.mrb[0].mxu0
  %v1048 = vadd.f32 0.0, %v1047
  %v1049 = vpop.f32.mrb[0].mxu0
  %v1050 = vpop.f32.mrb[0].mxu0
  %v1051 = vadd.f32 0.0, %v1050
  %v1052 = vpop.f32.mrb[0].mxu0
  %1053 = vmatprep.mubr.bf16.mxu0 0
  %1054 = vmatmul.mubr.bf16.gmra.mrb[0].mxu0 %v812
  %v1055 = vpop.f32.mrb[0].mxu0
  %v1056 = vadd.f32 0.0, %v1055
  %v1057 = vpop.f32.mrb[0].mxu0
  %v1058 = vpop.f32.mrb[0].mxu0
  %v1059 = vadd.f32 0.0, %v1058
  %v1060 = vpop.f32.mrb[0].mxu0
  %1061 = vmatprep.mubr.bf16.mxu0 0
  %1062 = vmatmul.mubr.bf16.gmra.mrb[0].mxu0 %v815
  %v1063 = vpop.f32.mrb[0].mxu0
  %v1064 = vadd.f32 0.0, %v1063
  %v1065 = vpop.f32.mrb[0].mxu0
  %v1066 = vpop.f32.mrb[0].mxu0
  %v1067 = vadd.f32 0.0, %v1066
  %v1068 = vpop.f32.mrb[0].mxu0
  %1069 = vmatprep.mubr.bf16.mxu0 0
  %1070 = vmatmul.mubr.bf16.gmra.mrb[0].mxu0 %v818
  %v1071 = vpop.f32.mrb[0].mxu0
  %v1072 = vadd.f32 0.0, %v1071
  %v1073 = vpop.f32.mrb[0].mxu0
  %v1074 = vpop.f32.mrb[0].mxu0
  %v1075 = vadd.f32 0.0, %v1074
  %v1076 = vpop.f32.mrb[0].mxu0
  %1077 = vmatprep.mubr.bf16.mxu0 0
  %1078 = vmatmul.mubr.bf16.gmra.mrb[0].mxu0 %v821
  %v1079 = vpop.f32.mrb[0].mxu0
  %v1080 = vadd.f32 0.0, %v1079
  %v1081 = vpop.f32.mrb[0].mxu0
  %v1082 = vpop.f32.mrb[0].mxu0
  %v1083 = vadd.f32 0.0, %v1082
  %v1084 = vpop.f32.mrb[0].mxu0
  %1085 = vmatprep.mubr.bf16.mxu0 0
  %1086 = vmatmul.mubr.bf16.gmra.mrb[0].mxu0 %v824
  %v1087 = vpop.f32.mrb[0].mxu0
  %v1088 = vadd.f32 0.0, %v1087
  %v1089 = vpop.f32.mrb[0].mxu0
  %v1090 = vpop.f32.mrb[0].mxu0
  %v1091 = vadd.f32 0.0, %v1090
  %v1092 = vpop.f32.mrb[0].mxu0
  %1093 = vmatprep.mubr.bf16.mxu0 0
  %1094 = vmatmul.mubr.bf16.gmra.mrb[0].mxu0 %v827
  %v1095 = vpop.f32.mrb[0].mxu0
  %v1096 = vadd.f32 0.0, %v1095
  %v1097 = vpop.f32.mrb[0].mxu0
  %v1098 = vpop.f32.mrb[0].mxu0
  %v1099 = vadd.f32 0.0, %v1098
  %v1100 = vpop.f32.mrb[0].mxu0
  %1101 = vmatprep.mubr.bf16.mxu0 0
  %1102 = vmatmul.mubr.bf16.gmra.mrb[0].mxu0 %v830
  %v1103 = vpop.f32.mrb[0].mxu0
  %v1104 = vadd.f32 0.0, %v1103
  %v1105 = vpop.f32.mrb[0].mxu0
  %v1106 = vpop.f32.mrb[0].mxu0
  %v1107 = vadd.f32 0.0, %v1106
  %v1108 = vpop.f32.mrb[0].mxu0
  %1109 = vmatprep.mubr.bf16.mxu0 0
  %1110 = vmatmul.mubr.bf16.gmra.mrb[0].mxu0 %v833
  %v1111 = vpop.f32.mrb[0].mxu0
  %v1112 = vadd.f32 0.0, %v1111
  %v1113 = vpop.f32.mrb[0].mxu0
  %v1114 = vpop.f32.mrb[0].mxu0
  %v1115 = vadd.f32 0.0, %v1114
  %v1116 = vpop.f32.mrb[0].mxu0
  %1117 = vmatprep.mubr.bf16.mxu0 0
  %1118 = vmatmul.mubr.bf16.gmra.mrb[0].mxu0 %v836
  %v1119 = vpop.f32.mrb[0].mxu0
  %v1120 = vadd.f32 0.0, %v1119
  %v1121 = vpop.f32.mrb[0].mxu0
  %v1122 = vpop.f32.mrb[0].mxu0
  %v1123 = vadd.f32 0.0, %v1122
  %v1124 = vpop.f32.mrb[0].mxu0
  %1125 = vmatprep.mubr.bf16.mxu0 0
  %1126 = vmatmul.mubr.bf16.gmra.mrb[0].mxu0 %v839
  %v1127 = vpop.f32.mrb[0].mxu0
  %v1128 = vadd.f32 0.0, %v1127
  %v1129 = vpop.f32.mrb[0].mxu0
  %v1130 = vpop.f32.mrb[0].mxu0
  %v1131 = vadd.f32 0.0, %v1130
  %v1132 = vpop.f32.mrb[0].mxu0
  %1133 = vmatprep.mubr.bf16.mxu0 0
  %1134 = vmatmul.mubr.bf16.gmra.mrb[0].mxu0 %v842
  %v1135 = vpop.f32.mrb[0].mxu0
  %v1136 = vadd.f32 0.0, %v1135
  %v1137 = vpop.f32.mrb[0].mxu0
  %v1138 = vpop.f32.mrb[0].mxu0
  %v1139 = vadd.f32 0.0, %v1138
  %v1140 = vpop.f32.mrb[0].mxu0
  %1141 = vmatprep.mubr.bf16.mxu0 0
  %1142 = vmatmul.mubr.bf16.gmra.mrb[0].mxu0 %v845
  %v1143 = vpop.f32.mrb[0].mxu0
  %v1144 = vadd.f32 0.0, %v1143
  %v1145 = vpop.f32.mrb[0].mxu0
  %v1146 = vpop.f32.mrb[0].mxu0
  %v1147 = vadd.f32 0.0, %v1146
  %v1148 = vpop.f32.mrb[0].mxu0
  %1149 = vmatprep.mubr.bf16.mxu0 0
  %1150 = vmatmul.mubr.bf16.gmra.mrb[0].mxu0 %v848
  %v1151 = vpop.f32.mrb[0].mxu0
  %v1152 = vadd.f32 0.0, %v1151
  %v1153 = vpop.f32.mrb[0].mxu0
  %v1154 = vpop.f32.mrb[0].mxu0
  %v1155 = vadd.f32 0.0, %v1154
  %v1156 = vpop.f32.mrb[0].mxu0
  %1157 = vmatprep.mubr.bf16.mxu0 0
  %1158 = vmatmul.mubr.bf16.gmra.mrb[0].mxu0 %v851
  %v1159 = vpop.f32.mrb[0].mxu0
  %v1160 = vadd.f32 0.0, %v1159
  %v1161 = vpop.f32.mrb[0].mxu0
  %v1162 = vpop.f32.mrb[0].mxu0
  %v1163 = vadd.f32 0.0, %v1162
  %v1164 = vpop.f32.mrb[0].mxu0
  %1165 = vdwg.mxu0
  %v1166 = vlaneseq
  %v1167 = vshrl.u32 %v1166, 7
  %v1168 = vlaneseq
  %v1169 = vand.u32 %v1168, 127
  %v1170 = vmul.u32 %v1167, 16
  %vm1171 = vcmp.ge.s32.totalorder %v1169, %v1170
  %v1172 = vadd.s32 %v1167, 1
  %v1173 = vmul.u32 %v1172, 16
  %vm1174 = vcmp.lt.s32.totalorder %v1169, %v1173
  %vm1175 = vmand %vm1171, %vm1174
  %v1176 = vsel %vm1175, 0.0, -1e+09
  %v1177 = vld [vmem:[%s5] sm:$0xff]
  %v1178 = vld [vmem:[%s5 + $0x8] sm:$0xff]
  %v1179 = vld [vmem:[%s5 + $0x10] sm:$0xff]
  %v1180 = vld [vmem:[%s5 + $0x18] sm:$0xff]
  %v1181 = vld [vmem:[%s5 + $0x20] sm:$0xff]
  %v1182 = vld [vmem:[%s5 + $0x28] sm:$0xff]
  %v1183 = vld [vmem:[%s5 + $0x30] sm:$0xff]
  %v1184 = vld [vmem:[%s5 + $0x38] sm:$0xff]
  %v1185 = vadd.f32 %v912, %v1177
  %v1186 = vadd.f32 %v915, %v1178
  %v1187 = vadd.f32 %v920, %v1177
  %v1188 = vadd.f32 %v923, %v1178
  %v1189 = vadd.f32 %v928, %v1177
  %v1190 = vadd.f32 %v931, %v1178
  %v1191 = vadd.f32 %v936, %v1177
  %v1192 = vadd.f32 %v939, %v1178
  %v1193 = vadd.f32 %v944, %v1177
  %v1194 = vadd.f32 %v947, %v1178
  %v1195 = vadd.f32 %v952, %v1177
  %v1196 = vadd.f32 %v955, %v1178
  %v1197 = vadd.f32 %v960, %v1177
  %v1198 = vadd.f32 %v963, %v1178
  %v1199 = vadd.f32 %v968, %v1177
  %v1200 = vadd.f32 %v971, %v1178
  %v1201 = vadd.f32 %v976, %v1179
  %v1202 = vadd.f32 %v979, %v1180
  %v1203 = vadd.f32 %v984, %v1179
  %v1204 = vadd.f32 %v987, %v1180
  %v1205 = vadd.f32 %v992, %v1179
  %v1206 = vadd.f32 %v995, %v1180
  %v1207 = vadd.f32 %v1000, %v1179
  %v1208 = vadd.f32 %v1003, %v1180
  %v1209 = vadd.f32 %v1008, %v1179
  %v1210 = vadd.f32 %v1011, %v1180
  %v1211 = vadd.f32 %v1016, %v1179
  %v1212 = vadd.f32 %v1019, %v1180
  %v1213 = vadd.f32 %v1024, %v1179
  %v1214 = vadd.f32 %v1027, %v1180
  %v1215 = vadd.f32 %v1032, %v1179
  %v1216 = vadd.f32 %v1035, %v1180
  %v1217 = vadd.f32 %v1040, %v1181
  %v1218 = vadd.f32 %v1043, %v1182
  %v1219 = vadd.f32 %v1048, %v1181
  %v1220 = vadd.f32 %v1051, %v1182
  %v1221 = vadd.f32 %v1056, %v1181
  %v1222 = vadd.f32 %v1059, %v1182
  %v1223 = vadd.f32 %v1064, %v1181
  %v1224 = vadd.f32 %v1067, %v1182
  %v1225 = vadd.f32 %v1072, %v1181
  %v1226 = vadd.f32 %v1075, %v1182
  %v1227 = vadd.f32 %v1080, %v1181
  %v1228 = vadd.f32 %v1083, %v1182
  %v1229 = vadd.f32 %v1088, %v1181
  %v1230 = vadd.f32 %v1091, %v1182
  %v1231 = vadd.f32 %v1096, %v1181
  %v1232 = vadd.f32 %v1099, %v1182
  %v1233 = vadd.f32 %v1104, %v1183
  %v1234 = vadd.f32 %v1107, %v1184
  %v1235 = vadd.f32 %v1112, %v1183
  %v1236 = vadd.f32 %v1115, %v1184
  %v1237 = vadd.f32 %v1120, %v1183
  %v1238 = vadd.f32 %v1123, %v1184
  %v1239 = vadd.f32 %v1128, %v1183
  %v1240 = vadd.f32 %v1131, %v1184
  %v1241 = vadd.f32 %v1136, %v1183
  %v1242 = vadd.f32 %v1139, %v1184
  %v1243 = vadd.f32 %v1144, %v1183
  %v1244 = vadd.f32 %v1147, %v1184
  %v1245 = vadd.f32 %v1152, %v1183
  %v1246 = vadd.f32 %v1155, %v1184
  %v1247 = vadd.f32 %v1160, %v1183
  %v1248 = vadd.f32 %v1163, %v1184
  %v1250 = vcombine.high %v1176, %v1176
  %v1252 = vunpack.c.l.s4 1966171168
  %v1253 = vunpack.c.0.s8 %v1252
  %v1254 = vlaneseq
  %v1255 = vshrl.u32 %v1254, 7
  %v1256 = vsub.s32 %v1253, %v1255
  %v1257 = vrot.slane %v1176, %v1256
  %v1259 = vunpack.c.l.s4 1966171168
  %v1260 = vunpack.c.0.s8 %v1259
  %v1261 = vlaneseq
  %v1262 = vshrl.u32 %v1261, 7
  %v1263 = vsub.s32 %v1260, %v1262
  %v1264 = vrot.slane %v1250, %v1263
  %v1265 = vcombine.high %v1257, %v1257
  %v1266 = vcombine.high %v1264, %v1264
  %v1268 = vunpack.c.l.s4 1966171168
  %v1269 = vunpack.c.0.s8 %v1268
  %v1270 = vlaneseq
  %v1271 = vshrl.u32 %v1270, 7
  %v1272 = vsub.s32 %v1269, %v1271
  %v1273 = vrot.slane %v1257, %v1272
  %v1275 = vunpack.c.l.s4 1966171168
  %v1276 = vunpack.c.0.s8 %v1275
  %v1277 = vlaneseq
  %v1278 = vshrl.u32 %v1277, 7
  %v1279 = vsub.s32 %v1276, %v1278
  %v1280 = vrot.slane %v1264, %v1279
  %v1282 = vunpack.c.l.s4 1966171168
  %v1283 = vunpack.c.0.s8 %v1282
  %v1284 = vlaneseq
  %v1285 = vshrl.u32 %v1284, 7
  %v1286 = vsub.s32 %v1283, %v1285
  %v1287 = vrot.slane %v1265, %v1286
  %v1289 = vunpack.c.l.s4 1966171168
  %v1290 = vunpack.c.0.s8 %v1289
  %v1291 = vlaneseq
  %v1292 = vshrl.u32 %v1291, 7
  %v1293 = vsub.s32 %v1290, %v1292
  %v1294 = vrot.slane %v1266, %v1293
  %v1295 = vcombine.high %v1273, %v1273
  %v1296 = vcombine.high %v1280, %v1280
  %v1297 = vcombine.high %v1287, %v1287
  %v1298 = vcombine.high %v1294, %v1294
  %v1299 = vlaneseq
  %v1300 = vshrl.u32 %v1299, 7
  %v1301 = vsub.s32 0, %v1300
  %v1302 = vrot.slane %v1273, %v1301
  %v1303 = vlaneseq
  %v1304 = vshrl.u32 %v1303, 7
  %v1305 = vsub.s32 0, %v1304
  %v1306 = vrot.slane %v1287, %v1305
  %v1307 = vlaneseq
  %v1308 = vshrl.u32 %v1307, 7
  %v1309 = vsub.s32 0, %v1308
  %v1310 = vrot.slane %v1295, %v1309
  %v1311 = vlaneseq
  %v1312 = vshrl.u32 %v1311, 7
  %v1313 = vsub.s32 0, %v1312
  %v1314 = vrot.slane %v1297, %v1313
  %v1315 = vlaneseq
  %v1316 = vshrl.u32 %v1315, 7
  %v1317 = vsub.s32 0, %v1316
  %v1318 = vrot.slane %v1280, %v1317
  %v1319 = vlaneseq
  %v1320 = vshrl.u32 %v1319, 7
  %v1321 = vsub.s32 0, %v1320
  %v1322 = vrot.slane %v1294, %v1321
  %v1323 = vlaneseq
  %v1324 = vshrl.u32 %v1323, 7
  %v1325 = vsub.s32 0, %v1324
  %v1326 = vrot.slane %v1296, %v1325
  %v1327 = vlaneseq
  %v1328 = vshrl.u32 %v1327, 7
  %v1329 = vsub.s32 0, %v1328
  %v1330 = vrot.slane %v1298, %v1329
  %v1339 = vadd.f32 %v1185, %v1302
  %v1340 = vadd.f32 %v1186, %v1302
  %v1341 = vadd.f32 %v1187, %v1306
  %v1342 = vadd.f32 %v1188, %v1306
  %v1343 = vadd.f32 %v1189, %v1310
  %v1344 = vadd.f32 %v1190, %v1310
  %v1345 = vadd.f32 %v1191, %v1314
  %v1346 = vadd.f32 %v1192, %v1314
  %v1347 = vadd.f32 %v1193, %v1318
  %v1348 = vadd.f32 %v1194, %v1318
  %v1349 = vadd.f32 %v1195, %v1322
  %v1350 = vadd.f32 %v1196, %v1322
  %v1351 = vadd.f32 %v1197, %v1326
  %v1352 = vadd.f32 %v1198, %v1326
  %v1353 = vadd.f32 %v1199, %v1330
  %v1354 = vadd.f32 %v1200, %v1330
  %v1355 = vadd.f32 %v1201, %v1302
  %v1356 = vadd.f32 %v1202, %v1302
  %v1357 = vadd.f32 %v1203, %v1306
  %v1358 = vadd.f32 %v1204, %v1306
  %v1359 = vadd.f32 %v1205, %v1310
  %v1360 = vadd.f32 %v1206, %v1310
  %v1361 = vadd.f32 %v1207, %v1314
  %v1362 = vadd.f32 %v1208, %v1314
  %v1363 = vadd.f32 %v1209, %v1318
  %v1364 = vadd.f32 %v1210, %v1318
  %v1365 = vadd.f32 %v1211, %v1322
  %v1366 = vadd.f32 %v1212, %v1322
  %v1367 = vadd.f32 %v1213, %v1326
  %v1368 = vadd.f32 %v1214, %v1326
  %v1369 = vadd.f32 %v1215, %v1330
  %v1370 = vadd.f32 %v1216, %v1330
  %v1371 = vadd.f32 %v1217, %v1302
  %v1372 = vadd.f32 %v1218, %v1302
  %v1373 = vadd.f32 %v1219, %v1306
  %v1374 = vadd.f32 %v1220, %v1306
  %v1375 = vadd.f32 %v1221, %v1310
  %v1376 = vadd.f32 %v1222, %v1310
  %v1377 = vadd.f32 %v1223, %v1314
  %v1378 = vadd.f32 %v1224, %v1314
  %v1379 = vadd.f32 %v1225, %v1318
  %v1380 = vadd.f32 %v1226, %v1318
  %v1381 = vadd.f32 %v1227, %v1322
  %v1382 = vadd.f32 %v1228, %v1322
  %v1383 = vadd.f32 %v1229, %v1326
  %v1384 = vadd.f32 %v1230, %v1326
  %v1385 = vadd.f32 %v1231, %v1330
  %v1386 = vadd.f32 %v1232, %v1330
  %v1387 = vadd.f32 %v1233, %v1302
  %v1388 = vadd.f32 %v1234, %v1302
  %v1389 = vadd.f32 %v1235, %v1306
  %v1390 = vadd.f32 %v1236, %v1306
  %v1391 = vadd.f32 %v1237, %v1310
  %v1392 = vadd.f32 %v1238, %v1310
  %v1393 = vadd.f32 %v1239, %v1314
  %v1394 = vadd.f32 %v1240, %v1314
  %v1395 = vadd.f32 %v1241, %v1318
  %v1396 = vadd.f32 %v1242, %v1318
  %v1397 = vadd.f32 %v1243, %v1322
  %v1398 = vadd.f32 %v1244, %v1322
  %v1399 = vadd.f32 %v1245, %v1326
  %v1400 = vadd.f32 %v1246, %v1326
  %v1401 = vadd.f32 %v1247, %v1330
  %v1402 = vadd.f32 %v1248, %v1330
  %1403 = vmax.xlane.f32.xlu0 %v1339
  %v1404 = vpop.xlane.xlu0 %1403
  %1405 = vmax.xlane.f32.xlu0 %v1340
  %v1406 = vpop.xlane.xlu0 %1405
  %1407 = vmax.xlane.f32.xlu0 %v1341
  %v1408 = vpop.xlane.xlu0 %1407
  %1409 = vmax.xlane.f32.xlu0 %v1342
  %v1410 = vpop.xlane.xlu0 %1409
  %1411 = vmax.xlane.f32.xlu0 %v1343
  %v1412 = vpop.xlane.xlu0 %1411
  %1413 = vmax.xlane.f32.xlu0 %v1344
  %v1414 = vpop.xlane.xlu0 %1413
  %1415 = vmax.xlane.f32.xlu0 %v1345
  %v1416 = vpop.xlane.xlu0 %1415
  %1417 = vmax.xlane.f32.xlu0 %v1346
  %v1418 = vpop.xlane.xlu0 %1417
  %1419 = vmax.xlane.f32.xlu0 %v1347
  %v1420 = vpop.xlane.xlu0 %1419
  %1421 = vmax.xlane.f32.xlu0 %v1348
  %v1422 = vpop.xlane.xlu0 %1421
  %1423 = vmax.xlane.f32.xlu0 %v1349
  %v1424 = vpop.xlane.xlu0 %1423
  %1425 = vmax.xlane.f32.xlu0 %v1350
  %v1426 = vpop.xlane.xlu0 %1425
  %1427 = vmax.xlane.f32.xlu0 %v1351
  %v1428 = vpop.xlane.xlu0 %1427
  %1429 = vmax.xlane.f32.xlu0 %v1352
  %v1430 = vpop.xlane.xlu0 %1429
  %1431 = vmax.xlane.f32.xlu0 %v1353
  %v1432 = vpop.xlane.xlu0 %1431
  %1433 = vmax.xlane.f32.xlu0 %v1354
  %v1434 = vpop.xlane.xlu0 %1433
  %1435 = vmax.xlane.f32.xlu0 %v1355
  %v1436 = vpop.xlane.xlu0 %1435
  %1437 = vmax.xlane.f32.xlu0 %v1356
  %v1438 = vpop.xlane.xlu0 %1437
  %1439 = vmax.xlane.f32.xlu0 %v1357
  %v1440 = vpop.xlane.xlu0 %1439
  %1441 = vmax.xlane.f32.xlu0 %v1358
  %v1442 = vpop.xlane.xlu0 %1441
  %1443 = vmax.xlane.f32.xlu0 %v1359
  %v1444 = vpop.xlane.xlu0 %1443
  %1445 = vmax.xlane.f32.xlu0 %v1360
  %v1446 = vpop.xlane.xlu0 %1445
  %1447 = vmax.xlane.f32.xlu0 %v1361
  %v1448 = vpop.xlane.xlu0 %1447
  %1449 = vmax.xlane.f32.xlu0 %v1362
  %v1450 = vpop.xlane.xlu0 %1449
  %1451 = vmax.xlane.f32.xlu0 %v1363
  %v1452 = vpop.xlane.xlu0 %1451
  %1453 = vmax.xlane.f32.xlu0 %v1364
  %v1454 = vpop.xlane.xlu0 %1453
  %1455 = vmax.xlane.f32.xlu0 %v1365
  %v1456 = vpop.xlane.xlu0 %1455
  %1457 = vmax.xlane.f32.xlu0 %v1366
  %v1458 = vpop.xlane.xlu0 %1457
  %1459 = vmax.xlane.f32.xlu0 %v1367
  %v1460 = vpop.xlane.xlu0 %1459
  %1461 = vmax.xlane.f32.xlu0 %v1368
  %v1462 = vpop.xlane.xlu0 %1461
  %1463 = vmax.xlane.f32.xlu0 %v1369
  %v1464 = vpop.xlane.xlu0 %1463
  %1465 = vmax.xlane.f32.xlu0 %v1370
  %v1466 = vpop.xlane.xlu0 %1465
  %1467 = vmax.xlane.f32.xlu0 %v1371
  %v1468 = vpop.xlane.xlu0 %1467
  %1469 = vmax.xlane.f32.xlu0 %v1372
  %v1470 = vpop.xlane.xlu0 %1469
  %1471 = vmax.xlane.f32.xlu0 %v1373
  %v1472 = vpop.xlane.xlu0 %1471
  %1473 = vmax.xlane.f32.xlu0 %v1374
  %v1474 = vpop.xlane.xlu0 %1473
  %1475 = vmax.xlane.f32.xlu0 %v1375
  %v1476 = vpop.xlane.xlu0 %1475
  %1477 = vmax.xlane.f32.xlu0 %v1376
  %v1478 = vpop.xlane.xlu0 %1477
  %1479 = vmax.xlane.f32.xlu0 %v1377
  %v1480 = vpop.xlane.xlu0 %1479
  %1481 = vmax.xlane.f32.xlu0 %v1378
  %v1482 = vpop.xlane.xlu0 %1481
  %1483 = vmax.xlane.f32.xlu0 %v1379
  %v1484 = vpop.xlane.xlu0 %1483
  %1485 = vmax.xlane.f32.xlu0 %v1380
  %v1486 = vpop.xlane.xlu0 %1485
  %1487 = vmax.xlane.f32.xlu0 %v1381
  %v1488 = vpop.xlane.xlu0 %1487
  %1489 = vmax.xlane.f32.xlu0 %v1382
  %v1490 = vpop.xlane.xlu0 %1489
  %1491 = vmax.xlane.f32.xlu0 %v1383
  %v1492 = vpop.xlane.xlu0 %1491
  %1493 = vmax.xlane.f32.xlu0 %v1384
  %v1494 = vpop.xlane.xlu0 %1493
  %1495 = vmax.xlane.f32.xlu0 %v1385
  %v1496 = vpop.xlane.xlu0 %1495
  %1497 = vmax.xlane.f32.xlu0 %v1386
  %v1498 = vpop.xlane.xlu0 %1497
  %1499 = vmax.xlane.f32.xlu0 %v1387
  %v1500 = vpop.xlane.xlu0 %1499
  %1501 = vmax.xlane.f32.xlu0 %v1388
  %v1502 = vpop.xlane.xlu0 %1501
  %1503 = vmax.xlane.f32.xlu0 %v1389
  %v1504 = vpop.xlane.xlu0 %1503
  %1505 = vmax.xlane.f32.xlu0 %v1390
  %v1506 = vpop.xlane.xlu0 %1505
  %1507 = vmax.xlane.f32.xlu0 %v1391
  %v1508 = vpop.xlane.xlu0 %1507
  %1509 = vmax.xlane.f32.xlu0 %v1392
  %v1510 = vpop.xlane.xlu0 %1509
  %1511 = vmax.xlane.f32.xlu0 %v1393
  %v1512 = vpop.xlane.xlu0 %1511
  %1513 = vmax.xlane.f32.xlu0 %v1394
  %v1514 = vpop.xlane.xlu0 %1513
  %1515 = vmax.xlane.f32.xlu0 %v1395
  %v1516 = vpop.xlane.xlu0 %1515
  %1517 = vmax.xlane.f32.xlu0 %v1396
  %v1518 = vpop.xlane.xlu0 %1517
  %1519 = vmax.xlane.f32.xlu0 %v1397
  %v1520 = vpop.xlane.xlu0 %1519
  %1521 = vmax.xlane.f32.xlu0 %v1398
  %v1522 = vpop.xlane.xlu0 %1521
  %1523 = vmax.xlane.f32.xlu0 %v1399
  %v1524 = vpop.xlane.xlu0 %1523
  %1525 = vmax.xlane.f32.xlu0 %v1400
  %v1526 = vpop.xlane.xlu0 %1525
  %1527 = vmax.xlane.f32.xlu0 %v1401
  %v1528 = vpop.xlane.xlu0 %1527
  %1529 = vmax.xlane.f32.xlu0 %v1402
  %v1530 = vpop.xlane.xlu0 %1529
  %v1531 = vsub.f32 %v1339, %v1404
  %v1532 = vsub.f32 %v1340, %v1406
  %v1533 = vsub.f32 %v1341, %v1408
  %v1534 = vsub.f32 %v1342, %v1410
  %v1535 = vsub.f32 %v1343, %v1412
  %v1536 = vsub.f32 %v1344, %v1414
  %v1537 = vsub.f32 %v1345, %v1416
  %v1538 = vsub.f32 %v1346, %v1418
  %v1539 = vsub.f32 %v1347, %v1420
  %v1540 = vsub.f32 %v1348, %v1422
  %v1541 = vsub.f32 %v1349, %v1424
  %v1542 = vsub.f32 %v1350, %v1426
  %v1543 = vsub.f32 %v1351, %v1428
  %v1544 = vsub.f32 %v1352, %v1430
  %v1545 = vsub.f32 %v1353, %v1432
  %v1546 = vsub.f32 %v1354, %v1434
  %v1547 = vsub.f32 %v1355, %v1436
  %v1548 = vsub.f32 %v1356, %v1438
  %v1549 = vsub.f32 %v1357, %v1440
  %v1550 = vsub.f32 %v1358, %v1442
  %v1551 = vsub.f32 %v1359, %v1444
  %v1552 = vsub.f32 %v1360, %v1446
  %v1553 = vsub.f32 %v1361, %v1448
  %v1554 = vsub.f32 %v1362, %v1450
  %v1555 = vsub.f32 %v1363, %v1452
  %v1556 = vsub.f32 %v1364, %v1454
  %v1557 = vsub.f32 %v1365, %v1456
  %v1558 = vsub.f32 %v1366, %v1458
  %v1559 = vsub.f32 %v1367, %v1460
  %v1560 = vsub.f32 %v1368, %v1462
  %v1561 = vsub.f32 %v1369, %v1464
  %v1562 = vsub.f32 %v1370, %v1466
  %v1563 = vsub.f32 %v1371, %v1468
  %v1564 = vsub.f32 %v1372, %v1470
  %v1565 = vsub.f32 %v1373, %v1472
  %v1566 = vsub.f32 %v1374, %v1474
  %v1567 = vsub.f32 %v1375, %v1476
  %v1568 = vsub.f32 %v1376, %v1478
  %v1569 = vsub.f32 %v1377, %v1480
  %v1570 = vsub.f32 %v1378, %v1482
  %v1571 = vsub.f32 %v1379, %v1484
  %v1572 = vsub.f32 %v1380, %v1486
  %v1573 = vsub.f32 %v1381, %v1488
  %v1574 = vsub.f32 %v1382, %v1490
  %v1575 = vsub.f32 %v1383, %v1492
  %v1576 = vsub.f32 %v1384, %v1494
  %v1577 = vsub.f32 %v1385, %v1496
  %v1578 = vsub.f32 %v1386, %v1498
  %v1579 = vsub.f32 %v1387, %v1500
  %v1580 = vsub.f32 %v1388, %v1502
  %v1581 = vsub.f32 %v1389, %v1504
  %v1582 = vsub.f32 %v1390, %v1506
  %v1583 = vsub.f32 %v1391, %v1508
  %v1584 = vsub.f32 %v1392, %v1510
  %v1585 = vsub.f32 %v1393, %v1512
  %v1586 = vsub.f32 %v1394, %v1514
  %v1587 = vsub.f32 %v1395, %v1516
  %v1588 = vsub.f32 %v1396, %v1518
  %v1589 = vsub.f32 %v1397, %v1520
  %v1590 = vsub.f32 %v1398, %v1522
  %v1591 = vsub.f32 %v1399, %v1524
  %v1592 = vsub.f32 %v1400, %v1526
  %v1593 = vsub.f32 %v1401, %v1528
  %v1594 = vsub.f32 %v1402, %v1530
  %v1595 = vmul.f32 %v1531, 1.442695
  %v1596 = vpow.pop %v1595
  %v1597 = vmul.f32 %v1532, 1.442695
  %v1598 = vpow.pop %v1597
  %v1599 = vmul.f32 %v1533, 1.442695
  %v1600 = vpow.pop %v1599
  %v1601 = vmul.f32 %v1534, 1.442695
  %v1602 = vpow.pop %v1601
  %v1603 = vmul.f32 %v1535, 1.442695
  %v1604 = vpow.pop %v1603
  %v1605 = vmul.f32 %v1536, 1.442695
  %v1606 = vpow.pop %v1605
  %v1607 = vmul.f32 %v1537, 1.442695
  %v1608 = vpow.pop %v1607
  %v1609 = vmul.f32 %v1538, 1.442695
  %v1610 = vpow.pop %v1609
  %v1611 = vmul.f32 %v1539, 1.442695
  %v1612 = vpow.pop %v1611
  %v1613 = vmul.f32 %v1540, 1.442695
  %v1614 = vpow.pop %v1613
  %v1615 = vmul.f32 %v1541, 1.442695
  %v1616 = vpow.pop %v1615
  %v1617 = vmul.f32 %v1542, 1.442695
  %v1618 = vpow.pop %v1617
  %v1619 = vmul.f32 %v1543, 1.442695
  %v1620 = vpow.pop %v1619
  %v1621 = vmul.f32 %v1544, 1.442695
  %v1622 = vpow.pop %v1621
  %v1623 = vmul.f32 %v1545, 1.442695
  %v1624 = vpow.pop %v1623
  %v1625 = vmul.f32 %v1546, 1.442695
  %v1626 = vpow.pop %v1625
  %v1627 = vmul.f32 %v1547, 1.442695
  %v1628 = vpow.pop %v1627
  %v1629 = vmul.f32 %v1548, 1.442695
  %v1630 = vpow.pop %v1629
  %v1631 = vmul.f32 %v1549, 1.442695
  %v1632 = vpow.pop %v1631
  %v1633 = vmul.f32 %v1550, 1.442695
  %v1634 = vpow.pop %v1633
  %v1635 = vmul.f32 %v1551, 1.442695
  %v1636 = vpow.pop %v1635
  %v1637 = vmul.f32 %v1552, 1.442695
  %v1638 = vpow.pop %v1637
  %v1639 = vmul.f32 %v1553, 1.442695
  %v1640 = vpow.pop %v1639
  %v1641 = vmul.f32 %v1554, 1.442695
  %v1642 = vpow.pop %v1641
  %v1643 = vmul.f32 %v1555, 1.442695
  %v1644 = vpow.pop %v1643
  %v1645 = vmul.f32 %v1556, 1.442695
  %v1646 = vpow.pop %v1645
  %v1647 = vmul.f32 %v1557, 1.442695
  %v1648 = vpow.pop %v1647
  %v1649 = vmul.f32 %v1558, 1.442695
  %v1650 = vpow.pop %v1649
  %v1651 = vmul.f32 %v1559, 1.442695
  %v1652 = vpow.pop %v1651
  %v1653 = vmul.f32 %v1560, 1.442695
  %v1654 = vpow.pop %v1653
  %v1655 = vmul.f32 %v1561, 1.442695
  %v1656 = vpow.pop %v1655
  %v1657 = vmul.f32 %v1562, 1.442695
  %v1658 = vpow.pop %v1657
  %v1659 = vmul.f32 %v1563, 1.442695
  %v1660 = vpow.pop %v1659
  %v1661 = vmul.f32 %v1564, 1.442695
  %v1662 = vpow.pop %v1661
  %v1663 = vmul.f32 %v1565, 1.442695
  %v1664 = vpow.pop %v1663
  %v1665 = vmul.f32 %v1566, 1.442695
  %v1666 = vpow.pop %v1665
  %v1667 = vmul.f32 %v1567, 1.442695
  %v1668 = vpow.pop %v1667
  %v1669 = vmul.f32 %v1568, 1.442695
  %v1670 = vpow.pop %v1669
  %v1671 = vmul.f32 %v1569, 1.442695
  %v1672 = vpow.pop %v1671
  %v1673 = vmul.f32 %v1570, 1.442695
  %v1674 = vpow.pop %v1673
  %v1675 = vmul.f32 %v1571, 1.442695
  %v1676 = vpow.pop %v1675
  %v1677 = vmul.f32 %v1572, 1.442695
  %v1678 = vpow.pop %v1677
  %v1679 = vmul.f32 %v1573, 1.442695
  %v1680 = vpow.pop %v1679
  %v1681 = vmul.f32 %v1574, 1.442695
  %v1682 = vpow.pop %v1681
  %v1683 = vmul.f32 %v1575, 1.442695
  %v1684 = vpow.pop %v1683
  %v1685 = vmul.f32 %v1576, 1.442695
  %v1686 = vpow.pop %v1685
  %v1687 = vmul.f32 %v1577, 1.442695
  %v1688 = vpow.pop %v1687
  %v1689 = vmul.f32 %v1578, 1.442695
  %v1690 = vpow.pop %v1689
  %v1691 = vmul.f32 %v1579, 1.442695
  %v1692 = vpow.pop %v1691
  %v1693 = vmul.f32 %v1580, 1.442695
  %v1694 = vpow.pop %v1693
  %v1695 = vmul.f32 %v1581, 1.442695
  %v1696 = vpow.pop %v1695
  %v1697 = vmul.f32 %v1582, 1.442695
  %v1698 = vpow.pop %v1697
  %v1699 = vmul.f32 %v1583, 1.442695
  %v1700 = vpow.pop %v1699
  %v1701 = vmul.f32 %v1584, 1.442695
  %v1702 = vpow.pop %v1701
  %v1703 = vmul.f32 %v1585, 1.442695
  %v1704 = vpow.pop %v1703
  %v1705 = vmul.f32 %v1586, 1.442695
  %v1706 = vpow.pop %v1705
  %v1707 = vmul.f32 %v1587, 1.442695
  %v1708 = vpow.pop %v1707
  %v1709 = vmul.f32 %v1588, 1.442695
  %v1710 = vpow.pop %v1709
  %v1711 = vmul.f32 %v1589, 1.442695
  %v1712 = vpow.pop %v1711
  %v1713 = vmul.f32 %v1590, 1.442695
  %v1714 = vpow.pop %v1713
  %v1715 = vmul.f32 %v1591, 1.442695
  %v1716 = vpow.pop %v1715
  %v1717 = vmul.f32 %v1592, 1.442695
  %v1718 = vpow.pop %v1717
  %v1719 = vmul.f32 %v1593, 1.442695
  %v1720 = vpow.pop %v1719
  %v1721 = vmul.f32 %v1594, 1.442695
  %v1722 = vpow.pop %v1721
  %1723 = vadd.xlane.f32.xlu0 %v1596
  %v1724 = vpop.xlane.xlu0 %1723
  %1725 = vadd.xlane.f32.xlu0 %v1598
  %v1726 = vpop.xlane.xlu0 %1725
  %1727 = vadd.xlane.f32.xlu0 %v1600
  %v1728 = vpop.xlane.xlu0 %1727
  %1729 = vadd.xlane.f32.xlu0 %v1602
  %v1730 = vpop.xlane.xlu0 %1729
  %1731 = vadd.xlane.f32.xlu0 %v1604
  %v1732 = vpop.xlane.xlu0 %1731
  %1733 = vadd.xlane.f32.xlu0 %v1606
  %v1734 = vpop.xlane.xlu0 %1733
  %1735 = vadd.xlane.f32.xlu0 %v1608
  %v1736 = vpop.xlane.xlu0 %1735
  %1737 = vadd.xlane.f32.xlu0 %v1610
  %v1738 = vpop.xlane.xlu0 %1737
  %1739 = vadd.xlane.f32.xlu0 %v1612
  %v1740 = vpop.xlane.xlu0 %1739
  %1741 = vadd.xlane.f32.xlu0 %v1614
  %v1742 = vpop.xlane.xlu0 %1741
  %1743 = vadd.xlane.f32.xlu0 %v1616
  %v1744 = vpop.xlane.xlu0 %1743
  %1745 = vadd.xlane.f32.xlu0 %v1618
  %v1746 = vpop.xlane.xlu0 %1745
  %1747 = vadd.xlane.f32.xlu0 %v1620
  %v1748 = vpop.xlane.xlu0 %1747
  %1749 = vadd.xlane.f32.xlu0 %v1622
  %v1750 = vpop.xlane.xlu0 %1749
  %1751 = vadd.xlane.f32.xlu0 %v1624
  %v1752 = vpop.xlane.xlu0 %1751
  %1753 = vadd.xlane.f32.xlu0 %v1626
  %v1754 = vpop.xlane.xlu0 %1753
  %1755 = vadd.xlane.f32.xlu0 %v1628
  %v1756 = vpop.xlane.xlu0 %1755
  %1757 = vadd.xlane.f32.xlu0 %v1630
  %v1758 = vpop.xlane.xlu0 %1757
  %1759 = vadd.xlane.f32.xlu0 %v1632
  %v1760 = vpop.xlane.xlu0 %1759
  %1761 = vadd.xlane.f32.xlu0 %v1634
  %v1762 = vpop.xlane.xlu0 %1761
  %1763 = vadd.xlane.f32.xlu0 %v1636
  %v1764 = vpop.xlane.xlu0 %1763
  %1765 = vadd.xlane.f32.xlu0 %v1638
  %v1766 = vpop.xlane.xlu0 %1765
  %1767 = vadd.xlane.f32.xlu0 %v1640
  %v1768 = vpop.xlane.xlu0 %1767
  %1769 = vadd.xlane.f32.xlu0 %v1642
  %v1770 = vpop.xlane.xlu0 %1769
  %1771 = vadd.xlane.f32.xlu0 %v1644
  %v1772 = vpop.xlane.xlu0 %1771
  %1773 = vadd.xlane.f32.xlu0 %v1646
  %v1774 = vpop.xlane.xlu0 %1773
  %1775 = vadd.xlane.f32.xlu0 %v1648
  %v1776 = vpop.xlane.xlu0 %1775
  %1777 = vadd.xlane.f32.xlu0 %v1650
  %v1778 = vpop.xlane.xlu0 %1777
  %1779 = vadd.xlane.f32.xlu0 %v1652
  %v1780 = vpop.xlane.xlu0 %1779
  %1781 = vadd.xlane.f32.xlu0 %v1654
  %v1782 = vpop.xlane.xlu0 %1781
  %1783 = vadd.xlane.f32.xlu0 %v1656
  %v1784 = vpop.xlane.xlu0 %1783
  %1785 = vadd.xlane.f32.xlu0 %v1658
  %v1786 = vpop.xlane.xlu0 %1785
  %1787 = vadd.xlane.f32.xlu0 %v1660
  %v1788 = vpop.xlane.xlu0 %1787
  %1789 = vadd.xlane.f32.xlu0 %v1662
  %v1790 = vpop.xlane.xlu0 %1789
  %1791 = vadd.xlane.f32.xlu0 %v1664
  %v1792 = vpop.xlane.xlu0 %1791
  %1793 = vadd.xlane.f32.xlu0 %v1666
  %v1794 = vpop.xlane.xlu0 %1793
  %1795 = vadd.xlane.f32.xlu0 %v1668
  %v1796 = vpop.xlane.xlu0 %1795
  %1797 = vadd.xlane.f32.xlu0 %v1670
  %v1798 = vpop.xlane.xlu0 %1797
  %1799 = vadd.xlane.f32.xlu0 %v1672
  %v1800 = vpop.xlane.xlu0 %1799
  %1801 = vadd.xlane.f32.xlu0 %v1674
  %v1802 = vpop.xlane.xlu0 %1801
  %1803 = vadd.xlane.f32.xlu0 %v1676
  %v1804 = vpop.xlane.xlu0 %1803
  %1805 = vadd.xlane.f32.xlu0 %v1678
  %v1806 = vpop.xlane.xlu0 %1805
  %1807 = vadd.xlane.f32.xlu0 %v1680
  %v1808 = vpop.xlane.xlu0 %1807
  %1809 = vadd.xlane.f32.xlu0 %v1682
  %v1810 = vpop.xlane.xlu0 %1809
  %1811 = vadd.xlane.f32.xlu0 %v1684
  %v1812 = vpop.xlane.xlu0 %1811
  %1813 = vadd.xlane.f32.xlu0 %v1686
  %v1814 = vpop.xlane.xlu0 %1813
  %1815 = vadd.xlane.f32.xlu0 %v1688
  %v1816 = vpop.xlane.xlu0 %1815
  %1817 = vadd.xlane.f32.xlu0 %v1690
  %v1818 = vpop.xlane.xlu0 %1817
  %1819 = vadd.xlane.f32.xlu0 %v1692
  %v1820 = vpop.xlane.xlu0 %1819
  %1821 = vadd.xlane.f32.xlu0 %v1694
  %v1822 = vpop.xlane.xlu0 %1821
  %1823 = vadd.xlane.f32.xlu0 %v1696
  %v1824 = vpop.xlane.xlu0 %1823
  %1825 = vadd.xlane.f32.xlu0 %v1698
  %v1826 = vpop.xlane.xlu0 %1825
  %1827 = vadd.xlane.f32.xlu0 %v1700
  %v1828 = vpop.xlane.xlu0 %1827
  %1829 = vadd.xlane.f32.xlu0 %v1702
  %v1830 = vpop.xlane.xlu0 %1829
  %1831 = vadd.xlane.f32.xlu0 %v1704
  %v1832 = vpop.xlane.xlu0 %1831
  %1833 = vadd.xlane.f32.xlu0 %v1706
  %v1834 = vpop.xlane.xlu0 %1833
  %1835 = vadd.xlane.f32.xlu0 %v1708
  %v1836 = vpop.xlane.xlu0 %1835
  %1837 = vadd.xlane.f32.xlu0 %v1710
  %v1838 = vpop.xlane.xlu0 %1837
  %1839 = vadd.xlane.f32.xlu0 %v1712
  %v1840 = vpop.xlane.xlu0 %1839
  %1841 = vadd.xlane.f32.xlu0 %v1714
  %v1842 = vpop.xlane.xlu0 %1841
  %1843 = vadd.xlane.f32.xlu0 %v1716
  %v1844 = vpop.xlane.xlu0 %1843
  %1845 = vadd.xlane.f32.xlu0 %v1718
  %v1846 = vpop.xlane.xlu0 %1845
  %1847 = vadd.xlane.f32.xlu0 %v1720
  %v1848 = vpop.xlane.xlu0 %1847
  %1849 = vadd.xlane.f32.xlu0 %v1722
  %v1850 = vpop.xlane.xlu0 %1849
  %v1851 = vrcp.pop %v1724
  %v1852 = vrcp.pop %v1726
  %v1853 = vrcp.pop %v1728
  %v1854 = vrcp.pop %v1730
  %v1855 = vrcp.pop %v1732
  %v1856 = vrcp.pop %v1734
  %v1857 = vrcp.pop %v1736
  %v1858 = vrcp.pop %v1738
  %v1859 = vrcp.pop %v1740
  %v1860 = vrcp.pop %v1742
  %v1861 = vrcp.pop %v1744
  %v1862 = vrcp.pop %v1746
  %v1863 = vrcp.pop %v1748
  %v1864 = vrcp.pop %v1750
  %v1865 = vrcp.pop %v1752
  %v1866 = vrcp.pop %v1754
  %v1867 = vrcp.pop %v1756
  %v1868 = vrcp.pop %v1758
  %v1869 = vrcp.pop %v1760
  %v1870 = vrcp.pop %v1762
  %v1871 = vrcp.pop %v1764
  %v1872 = vrcp.pop %v1766
  %v1873 = vrcp.pop %v1768
  %v1874 = vrcp.pop %v1770
  %v1875 = vrcp.pop %v1772
  %v1876 = vrcp.pop %v1774
  %v1877 = vrcp.pop %v1776
  %v1878 = vrcp.pop %v1778
  %v1879 = vrcp.pop %v1780
  %v1880 = vrcp.pop %v1782
  %v1881 = vrcp.pop %v1784
  %v1882 = vrcp.pop %v1786
  %v1883 = vrcp.pop %v1788
  %v1884 = vrcp.pop %v1790
  %v1885 = vrcp.pop %v1792
  %v1886 = vrcp.pop %v1794
  %v1887 = vrcp.pop %v1796
  %v1888 = vrcp.pop %v1798
  %v1889 = vrcp.pop %v1800
  %v1890 = vrcp.pop %v1802
  %v1891 = vrcp.pop %v1804
  %v1892 = vrcp.pop %v1806
  %v1893 = vrcp.pop %v1808
  %v1894 = vrcp.pop %v1810
  %v1895 = vrcp.pop %v1812
  %v1896 = vrcp.pop %v1814
  %v1897 = vrcp.pop %v1816
  %v1898 = vrcp.pop %v1818
  %v1899 = vrcp.pop %v1820
  %v1900 = vrcp.pop %v1822
  %v1901 = vrcp.pop %v1824
  %v1902 = vrcp.pop %v1826
  %v1903 = vrcp.pop %v1828
  %v1904 = vrcp.pop %v1830
  %v1905 = vrcp.pop %v1832
  %v1906 = vrcp.pop %v1834
  %v1907 = vrcp.pop %v1836
  %v1908 = vrcp.pop %v1838
  %v1909 = vrcp.pop %v1840
  %v1910 = vrcp.pop %v1842
  %v1911 = vrcp.pop %v1844
  %v1912 = vrcp.pop %v1846
  %v1913 = vrcp.pop %v1848
  %v1914 = vrcp.pop %v1850
  %v1915 = vmul.f32 %v1596, %v1851
  %v1916 = vmul.f32 %v1598, %v1852
  %v1917 = vmul.f32 %v1600, %v1853
  %v1918 = vmul.f32 %v1602, %v1854
  %v1919 = vmul.f32 %v1604, %v1855
  %v1920 = vmul.f32 %v1606, %v1856
  %v1921 = vmul.f32 %v1608, %v1857
  %v1922 = vmul.f32 %v1610, %v1858
  %v1923 = vmul.f32 %v1612, %v1859
  %v1924 = vmul.f32 %v1614, %v1860
  %v1925 = vmul.f32 %v1616, %v1861
  %v1926 = vmul.f32 %v1618, %v1862
  %v1927 = vmul.f32 %v1620, %v1863
  %v1928 = vmul.f32 %v1622, %v1864
  %v1929 = vmul.f32 %v1624, %v1865
  %v1930 = vmul.f32 %v1626, %v1866
  %v1931 = vmul.f32 %v1628, %v1867
  %v1932 = vmul.f32 %v1630, %v1868
  %v1933 = vmul.f32 %v1632, %v1869
  %v1934 = vmul.f32 %v1634, %v1870
  %v1935 = vmul.f32 %v1636, %v1871
  %v1936 = vmul.f32 %v1638, %v1872
  %v1937 = vmul.f32 %v1640, %v1873
  %v1938 = vmul.f32 %v1642, %v1874
  %v1939 = vmul.f32 %v1644, %v1875
  %v1940 = vmul.f32 %v1646, %v1876
  %v1941 = vmul.f32 %v1648, %v1877
  %v1942 = vmul.f32 %v1650, %v1878
  %v1943 = vmul.f32 %v1652, %v1879
  %v1944 = vmul.f32 %v1654, %v1880
  %v1945 = vmul.f32 %v1656, %v1881
  %v1946 = vmul.f32 %v1658, %v1882
  %v1947 = vmul.f32 %v1660, %v1883
  %v1948 = vmul.f32 %v1662, %v1884
  %v1949 = vmul.f32 %v1664, %v1885
  %v1950 = vmul.f32 %v1666, %v1886
  %v1951 = vmul.f32 %v1668, %v1887
  %v1952 = vmul.f32 %v1670, %v1888
  %v1953 = vmul.f32 %v1672, %v1889
  %v1954 = vmul.f32 %v1674, %v1890
  %v1955 = vmul.f32 %v1676, %v1891
  %v1956 = vmul.f32 %v1678, %v1892
  %v1957 = vmul.f32 %v1680, %v1893
  %v1958 = vmul.f32 %v1682, %v1894
  %v1959 = vmul.f32 %v1684, %v1895
  %v1960 = vmul.f32 %v1686, %v1896
  %v1961 = vmul.f32 %v1688, %v1897
  %v1962 = vmul.f32 %v1690, %v1898
  %v1963 = vmul.f32 %v1692, %v1899
  %v1964 = vmul.f32 %v1694, %v1900
  %v1965 = vmul.f32 %v1696, %v1901
  %v1966 = vmul.f32 %v1698, %v1902
  %v1967 = vmul.f32 %v1700, %v1903
  %v1968 = vmul.f32 %v1702, %v1904
  %v1969 = vmul.f32 %v1704, %v1905
  %v1970 = vmul.f32 %v1706, %v1906
  %v1971 = vmul.f32 %v1708, %v1907
  %v1972 = vmul.f32 %v1710, %v1908
  %v1973 = vmul.f32 %v1712, %v1909
  %v1974 = vmul.f32 %v1714, %v1910
  %v1975 = vmul.f32 %v1716, %v1911
  %v1976 = vmul.f32 %v1718, %v1912
  %v1977 = vmul.f32 %v1720, %v1913
  %v1978 = vmul.f32 %v1722, %v1914
  %v1979 = vpack.c.bf16 %v1916, %v1915
  %v1980 = vpack.c.bf16 %v1918, %v1917
  %v1981 = vpack.c.bf16 %v1920, %v1919
  %v1982 = vpack.c.bf16 %v1922, %v1921
  %v1983 = vpack.c.bf16 %v1924, %v1923
  %v1984 = vpack.c.bf16 %v1926, %v1925
  %v1985 = vpack.c.bf16 %v1928, %v1927
  %v1986 = vpack.c.bf16 %v1930, %v1929
  %v1987 = vpack.c.bf16 %v1932, %v1931
  %v1988 = vpack.c.bf16 %v1934, %v1933
  %v1989 = vpack.c.bf16 %v1936, %v1935
  %v1990 = vpack.c.bf16 %v1938, %v1937
  %v1991 = vpack.c.bf16 %v1940, %v1939
  %v1992 = vpack.c.bf16 %v1942, %v1941
  %v1993 = vpack.c.bf16 %v1944, %v1943
  %v1994 = vpack.c.bf16 %v1946, %v1945
  %v1995 = vpack.c.bf16 %v1948, %v1947
  %v1996 = vpack.c.bf16 %v1950, %v1949
  %v1997 = vpack.c.bf16 %v1952, %v1951
  %v1998 = vpack.c.bf16 %v1954, %v1953
  %v1999 = vpack.c.bf16 %v1956, %v1955
  %v2000 = vpack.c.bf16 %v1958, %v1957
  %v2001 = vpack.c.bf16 %v1960, %v1959
  %v2002 = vpack.c.bf16 %v1962, %v1961
  %v2003 = vpack.c.bf16 %v1964, %v1963
  %v2004 = vpack.c.bf16 %v1966, %v1965
  %v2005 = vpack.c.bf16 %v1968, %v1967
  %v2006 = vpack.c.bf16 %v1970, %v1969
  %v2007 = vpack.c.bf16 %v1972, %v1971
  %v2008 = vpack.c.bf16 %v1974, %v1973
  %v2009 = vpack.c.bf16 %v1976, %v1975
  %v2010 = vpack.c.bf16 %v1978, %v1977
  %2019 = vrot.lane.b32.xlu0 %v693, 64
  %v2020 = vpop.permute.xlu0 %2019
  %2021 = vrot.lane.b32.xlu0 %v694, 64
  %v2022 = vpop.permute.xlu0 %2021
  %2023 = vrot.lane.b32.xlu0 %v695, 64
  %v2024 = vpop.permute.xlu0 %2023
  %2025 = vrot.lane.b32.xlu0 %v696, 64
  %v2026 = vpop.permute.xlu0 %2025
  %2027 = vrot.lane.b32.xlu0 %v697, 64
  %v2028 = vpop.permute.xlu0 %2027
  %2029 = vrot.lane.b32.xlu0 %v698, 64
  %v2030 = vpop.permute.xlu0 %2029
  %2031 = vrot.lane.b32.xlu0 %v699, 64
  %v2032 = vpop.permute.xlu0 %2031
  %2033 = vrot.lane.b32.xlu0 %v700, 64
  %v2034 = vpop.permute.xlu0 %2033
  %2043 = vmatprep.subr.bf16.mxu0 0
  %2044 = vmatpush1.bf16.msra.mxu0 %v2020
  %2045 = vmatprep.subr.bf16.mxu0 0
  %2046 = vmatpush1.bf16.msra.mxu0 %v2022
  %2047 = vmatprep.subr.bf16.mxu0 0
  %2048 = vmatpush1.bf16.msra.mxu0 %v2024
  %2049 = vmatprep.subr.bf16.mxu0 0
  %2050 = vmatpush1.bf16.msra.mxu0 %v2026
  %2051 = vmatprep.subr.bf16.mxu0 0
  %2052 = vmatpush1.bf16.msra.mxu0 %v2028
  %2053 = vmatprep.subr.bf16.mxu0 0
  %2054 = vmatpush1.bf16.msra.mxu0 %v2030
  %2055 = vmatprep.subr.bf16.mxu0 0
  %2056 = vmatpush1.bf16.msra.mxu0 %v2032
  %2057 = vmatprep.subr.bf16.mxu0 0
  %2058 = vmatpush1.bf16.msra.mxu0 %v2034
  %2059 = vmatprep.subr.bf16.mxu0 0
  %2060 = vmatpush1.bf16.msra.mxu0 0
  %2061 = vmatprep.subr.bf16.mxu0 0
  %2062 = vmatpush1.bf16.msra.mxu0 0
  %2063 = vmatprep.subr.bf16.mxu0 0
  %2064 = vmatpush1.bf16.msra.mxu0 0
  %2065 = vmatprep.subr.bf16.mxu0 0
  %2066 = vmatpush1.bf16.msra.mxu0 0
  %2067 = vmatprep.subr.bf16.mxu0 0
  %2068 = vmatpush1.bf16.msra.mxu0 0
  %2069 = vmatprep.subr.bf16.mxu0 0
  %2070 = vmatpush1.bf16.msra.mxu0 0
  %2071 = vmatprep.subr.bf16.mxu0 0
  %2072 = vmatpush1.bf16.msra.mxu0 0
  %2073 = vmatprep.subr.bf16.mxu0 0
  %2074 = vmatpush1.bf16.msra.mxu0 0
  %2075 = vmatprep.mubr.bf16.mxu0 0
  %2076 = vmatmul.mubr.bf16.gmra.mrb[0].mxu0 %v1979
  %v2077 = vpop.f32.mrb[0].mxu0
  %v2078 = vadd.f32 0.0, %v2077
  %v2079 = vpop.f32.mrb[0].mxu0
  %v2080 = vpop.f32.mrb[0].mxu0
  %v2081 = vadd.f32 0.0, %v2080
  %v2082 = vpop.f32.mrb[0].mxu0
  %2083 = vmatprep.mubr.bf16.mxu0 0
  %2084 = vmatmul.mubr.bf16.gmra.mrb[0].mxu0 %v1980
  %v2085 = vpop.f32.mrb[0].mxu0
  %v2086 = vadd.f32 0.0, %v2085
  %v2087 = vpop.f32.mrb[0].mxu0
  %v2088 = vpop.f32.mrb[0].mxu0
  %v2089 = vadd.f32 0.0, %v2088
  %v2090 = vpop.f32.mrb[0].mxu0
  %2091 = vmatprep.mubr.bf16.mxu0 0
  %2092 = vmatmul.mubr.bf16.gmra.mrb[0].mxu0 %v1981
  %v2093 = vpop.f32.mrb[0].mxu0
  %v2094 = vadd.f32 0.0, %v2093
  %v2095 = vpop.f32.mrb[0].mxu0
  %v2096 = vpop.f32.mrb[0].mxu0
  %v2097 = vadd.f32 0.0, %v2096
  %v2098 = vpop.f32.mrb[0].mxu0
  %2099 = vmatprep.mubr.bf16.mxu0 0
  %2100 = vmatmul.mubr.bf16.gmra.mrb[0].mxu0 %v1982
  %v2101 = vpop.f32.mrb[0].mxu0
  %v2102 = vadd.f32 0.0, %v2101
  %v2103 = vpop.f32.mrb[0].mxu0
  %v2104 = vpop.f32.mrb[0].mxu0
  %v2105 = vadd.f32 0.0, %v2104
  %v2106 = vpop.f32.mrb[0].mxu0
  %2107 = vmatprep.mubr.bf16.mxu0 0
  %2108 = vmatmul.mubr.bf16.gmra.mrb[0].mxu0 %v1983
  %v2109 = vpop.f32.mrb[0].mxu0
  %v2110 = vadd.f32 0.0, %v2109
  %v2111 = vpop.f32.mrb[0].mxu0
  %v2112 = vpop.f32.mrb[0].mxu0
  %v2113 = vadd.f32 0.0, %v2112
  %v2114 = vpop.f32.mrb[0].mxu0
  %2115 = vmatprep.mubr.bf16.mxu0 0
  %2116 = vmatmul.mubr.bf16.gmra.mrb[0].mxu0 %v1984
  %v2117 = vpop.f32.mrb[0].mxu0
  %v2118 = vadd.f32 0.0, %v2117
  %v2119 = vpop.f32.mrb[0].mxu0
  %v2120 = vpop.f32.mrb[0].mxu0
  %v2121 = vadd.f32 0.0, %v2120
  %v2122 = vpop.f32.mrb[0].mxu0
  %2123 = vmatprep.mubr.bf16.mxu0 0
  %2124 = vmatmul.mubr.bf16.gmra.mrb[0].mxu0 %v1985
  %v2125 = vpop.f32.mrb[0].mxu0
  %v2126 = vadd.f32 0.0, %v2125
  %v2127 = vpop.f32.mrb[0].mxu0
  %v2128 = vpop.f32.mrb[0].mxu0
  %v2129 = vadd.f32 0.0, %v2128
  %v2130 = vpop.f32.mrb[0].mxu0
  %2131 = vmatprep.mubr.bf16.mxu0 0
  %2132 = vmatmul.mubr.bf16.gmra.mrb[0].mxu0 %v1986
  %v2133 = vpop.f32.mrb[0].mxu0
  %v2134 = vadd.f32 0.0, %v2133
  %v2135 = vpop.f32.mrb[0].mxu0
  %v2136 = vpop.f32.mrb[0].mxu0
  %v2137 = vadd.f32 0.0, %v2136
  %v2138 = vpop.f32.mrb[0].mxu0
  %2139 = vdwg.mxu0
  %2148 = vrot.lane.b32.xlu0 %v701, 64
  %v2149 = vpop.permute.xlu0 %2148
  %2150 = vrot.lane.b32.xlu0 %v702, 64
  %v2151 = vpop.permute.xlu0 %2150
  %2152 = vrot.lane.b32.xlu0 %v703, 64
  %v2153 = vpop.permute.xlu0 %2152
  %2154 = vrot.lane.b32.xlu0 %v704, 64
  %v2155 = vpop.permute.xlu0 %2154
  %2156 = vrot.lane.b32.xlu0 %v705, 64
  %v2157 = vpop.permute.xlu0 %2156
  %2158 = vrot.lane.b32.xlu0 %v706, 64
  %v2159 = vpop.permute.xlu0 %2158
  %2160 = vrot.lane.b32.xlu0 %v707, 64
  %v2161 = vpop.permute.xlu0 %2160
  %2162 = vrot.lane.b32.xlu0 %v708, 64
  %v2163 = vpop.permute.xlu0 %2162
  %2172 = vmatprep.subr.bf16.mxu0 0
  %2173 = vmatpush1.bf16.msra.mxu0 %v2149
  %2174 = vmatprep.subr.bf16.mxu0 0
  %2175 = vmatpush1.bf16.msra.mxu0 %v2151
  %2176 = vmatprep.subr.bf16.mxu0 0
  %2177 = vmatpush1.bf16.msra.mxu0 %v2153
  %2178 = vmatprep.subr.bf16.mxu0 0
  %2179 = vmatpush1.bf16.msra.mxu0 %v2155
  %2180 = vmatprep.subr.bf16.mxu0 0
  %2181 = vmatpush1.bf16.msra.mxu0 %v2157
  %2182 = vmatprep.subr.bf16.mxu0 0
  %2183 = vmatpush1.bf16.msra.mxu0 %v2159
  %2184 = vmatprep.subr.bf16.mxu0 0
  %2185 = vmatpush1.bf16.msra.mxu0 %v2161
  %2186 = vmatprep.subr.bf16.mxu0 0
  %2187 = vmatpush1.bf16.msra.mxu0 %v2163
  %2188 = vmatprep.subr.bf16.mxu0 0
  %2189 = vmatpush1.bf16.msra.mxu0 0
  %2190 = vmatprep.subr.bf16.mxu0 0
  %2191 = vmatpush1.bf16.msra.mxu0 0
  %2192 = vmatprep.subr.bf16.mxu0 0
  %2193 = vmatpush1.bf16.msra.mxu0 0
  %2194 = vmatprep.subr.bf16.mxu0 0
  %2195 = vmatpush1.bf16.msra.mxu0 0
  %2196 = vmatprep.subr.bf16.mxu0 0
  %2197 = vmatpush1.bf16.msra.mxu0 0
  %2198 = vmatprep.subr.bf16.mxu0 0
  %2199 = vmatpush1.bf16.msra.mxu0 0
  %2200 = vmatprep.subr.bf16.mxu0 0
  %2201 = vmatpush1.bf16.msra.mxu0 0
  %2202 = vmatprep.subr.bf16.mxu0 0
  %2203 = vmatpush1.bf16.msra.mxu0 0
  %2204 = vmatprep.mubr.bf16.mxu0 0
  %2205 = vmatmul.mubr.bf16.gmra.mrb[0].mxu0 %v1987
  %v2206 = vpop.f32.mrb[0].mxu0
  %v2207 = vadd.f32 0.0, %v2206
  %v2208 = vpop.f32.mrb[0].mxu0
  %v2209 = vpop.f32.mrb[0].mxu0
  %v2210 = vadd.f32 0.0, %v2209
  %v2211 = vpop.f32.mrb[0].mxu0
  %2212 = vmatprep.mubr.bf16.mxu0 0
  %2213 = vmatmul.mubr.bf16.gmra.mrb[0].mxu0 %v1988
  %v2214 = vpop.f32.mrb[0].mxu0
  %v2215 = vadd.f32 0.0, %v2214
  %v2216 = vpop.f32.mrb[0].mxu0
  %v2217 = vpop.f32.mrb[0].mxu0
  %v2218 = vadd.f32 0.0, %v2217
  %v2219 = vpop.f32.mrb[0].mxu0
  %2220 = vmatprep.mubr.bf16.mxu0 0
  %2221 = vmatmul.mubr.bf16.gmra.mrb[0].mxu0 %v1989
  %v2222 = vpop.f32.mrb[0].mxu0
  %v2223 = vadd.f32 0.0, %v2222
  %v2224 = vpop.f32.mrb[0].mxu0
  %v2225 = vpop.f32.mrb[0].mxu0
  %v2226 = vadd.f32 0.0, %v2225
  %v2227 = vpop.f32.mrb[0].mxu0
  %2228 = vmatprep.mubr.bf16.mxu0 0
  %2229 = vmatmul.mubr.bf16.gmra.mrb[0].mxu0 %v1990
  %v2230 = vpop.f32.mrb[0].mxu0
  %v2231 = vadd.f32 0.0, %v2230
  %v2232 = vpop.f32.mrb[0].mxu0
  %v2233 = vpop.f32.mrb[0].mxu0
  %v2234 = vadd.f32 0.0, %v2233
  %v2235 = vpop.f32.mrb[0].mxu0
  %2236 = vmatprep.mubr.bf16.mxu0 0
  %2237 = vmatmul.mubr.bf16.gmra.mrb[0].mxu0 %v1991
  %v2238 = vpop.f32.mrb[0].mxu0
  %v2239 = vadd.f32 0.0, %v2238
  %v2240 = vpop.f32.mrb[0].mxu0
  %v2241 = vpop.f32.mrb[0].mxu0
  %v2242 = vadd.f32 0.0, %v2241
  %v2243 = vpop.f32.mrb[0].mxu0
  %2244 = vmatprep.mubr.bf16.mxu0 0
  %2245 = vmatmul.mubr.bf16.gmra.mrb[0].mxu0 %v1992
  %v2246 = vpop.f32.mrb[0].mxu0
  %v2247 = vadd.f32 0.0, %v2246
  %v2248 = vpop.f32.mrb[0].mxu0
  %v2249 = vpop.f32.mrb[0].mxu0
  %v2250 = vadd.f32 0.0, %v2249
  %v2251 = vpop.f32.mrb[0].mxu0
  %2252 = vmatprep.mubr.bf16.mxu0 0
  %2253 = vmatmul.mubr.bf16.gmra.mrb[0].mxu0 %v1993
  %v2254 = vpop.f32.mrb[0].mxu0
  %v2255 = vadd.f32 0.0, %v2254
  %v2256 = vpop.f32.mrb[0].mxu0
  %v2257 = vpop.f32.mrb[0].mxu0
  %v2258 = vadd.f32 0.0, %v2257
  %v2259 = vpop.f32.mrb[0].mxu0
  %2260 = vmatprep.mubr.bf16.mxu0 0
  %2261 = vmatmul.mubr.bf16.gmra.mrb[0].mxu0 %v1994
  %v2262 = vpop.f32.mrb[0].mxu0
  %v2263 = vadd.f32 0.0, %v2262
  %v2264 = vpop.f32.mrb[0].mxu0
  %v2265 = vpop.f32.mrb[0].mxu0
  %v2266 = vadd.f32 0.0, %v2265
  %v2267 = vpop.f32.mrb[0].mxu0
  %2268 = vdwg.mxu0
  %2277 = vrot.lane.b32.xlu0 %v709, 64
  %v2278 = vpop.permute.xlu0 %2277
  %2279 = vrot.lane.b32.xlu0 %v710, 64
  %v2280 = vpop.permute.xlu0 %2279
  %2281 = vrot.lane.b32.xlu0 %v711, 64
  %v2282 = vpop.permute.xlu0 %2281
  %2283 = vrot.lane.b32.xlu0 %v712, 64
  %v2284 = vpop.permute.xlu0 %2283
  %2285 = vrot.lane.b32.xlu0 %v713, 64
  %v2286 = vpop.permute.xlu0 %2285
  %2287 = vrot.lane.b32.xlu0 %v714, 64
  %v2288 = vpop.permute.xlu0 %2287
  %2289 = vrot.lane.b32.xlu0 %v715, 64
  %v2290 = vpop.permute.xlu0 %2289
  %2291 = vrot.lane.b32.xlu0 %v716, 64
  %v2292 = vpop.permute.xlu0 %2291
  %2301 = vmatprep.subr.bf16.mxu0 0
  %2302 = vmatpush1.bf16.msra.mxu0 %v2278
  %2303 = vmatprep.subr.bf16.mxu0 0
  %2304 = vmatpush1.bf16.msra.mxu0 %v2280
  %2305 = vmatprep.subr.bf16.mxu0 0
  %2306 = vmatpush1.bf16.msra.mxu0 %v2282
  %2307 = vmatprep.subr.bf16.mxu0 0
  %2308 = vmatpush1.bf16.msra.mxu0 %v2284
  %2309 = vmatprep.subr.bf16.mxu0 0
  %2310 = vmatpush1.bf16.msra.mxu0 %v2286
  %2311 = vmatprep.subr.bf16.mxu0 0
  %2312 = vmatpush1.bf16.msra.mxu0 %v2288
  %2313 = vmatprep.subr.bf16.mxu0 0
  %2314 = vmatpush1.bf16.msra.mxu0 %v2290
  %2315 = vmatprep.subr.bf16.mxu0 0
  %2316 = vmatpush1.bf16.msra.mxu0 %v2292
  %2317 = vmatprep.subr.bf16.mxu0 0
  %2318 = vmatpush1.bf16.msra.mxu0 0
  %2319 = vmatprep.subr.bf16.mxu0 0
  %2320 = vmatpush1.bf16.msra.mxu0 0
  %2321 = vmatprep.subr.bf16.mxu0 0
  %2322 = vmatpush1.bf16.msra.mxu0 0
  %2323 = vmatprep.subr.bf16.mxu0 0
  %2324 = vmatpush1.bf16.msra.mxu0 0
  %2325 = vmatprep.subr.bf16.mxu0 0
  %2326 = vmatpush1.bf16.msra.mxu0 0
  %2327 = vmatprep.subr.bf16.mxu0 0
  %2328 = vmatpush1.bf16.msra.mxu0 0
  %2329 = vmatprep.subr.bf16.mxu0 0
  %2330 = vmatpush1.bf16.msra.mxu0 0
  %2331 = vmatprep.subr.bf16.mxu0 0
  %2332 = vmatpush1.bf16.msra.mxu0 0
  %2333 = vmatprep.mubr.bf16.mxu0 0
  %2334 = vmatmul.mubr.bf16.gmra.mrb[0].mxu0 %v1995
  %v2335 = vpop.f32.mrb[0].mxu0
  %v2336 = vadd.f32 0.0, %v2335
  %v2337 = vpop.f32.mrb[0].mxu0
  %v2338 = vpop.f32.mrb[0].mxu0
  %v2339 = vadd.f32 0.0, %v2338
  %v2340 = vpop.f32.mrb[0].mxu0
  %2341 = vmatprep.mubr.bf16.mxu0 0
  %2342 = vmatmul.mubr.bf16.gmra.mrb[0].mxu0 %v1996
  %v2343 = vpop.f32.mrb[0].mxu0
  %v2344 = vadd.f32 0.0, %v2343
  %v2345 = vpop.f32.mrb[0].mxu0
  %v2346 = vpop.f32.mrb[0].mxu0
  %v2347 = vadd.f32 0.0, %v2346
  %v2348 = vpop.f32.mrb[0].mxu0
  %2349 = vmatprep.mubr.bf16.mxu0 0
  %2350 = vmatmul.mubr.bf16.gmra.mrb[0].mxu0 %v1997
  %v2351 = vpop.f32.mrb[0].mxu0
  %v2352 = vadd.f32 0.0, %v2351
  %v2353 = vpop.f32.mrb[0].mxu0
  %v2354 = vpop.f32.mrb[0].mxu0
  %v2355 = vadd.f32 0.0, %v2354
  %v2356 = vpop.f32.mrb[0].mxu0
  %2357 = vmatprep.mubr.bf16.mxu0 0
  %2358 = vmatmul.mubr.bf16.gmra.mrb[0].mxu0 %v1998
  %v2359 = vpop.f32.mrb[0].mxu0
  %v2360 = vadd.f32 0.0, %v2359
  %v2361 = vpop.f32.mrb[0].mxu0
  %v2362 = vpop.f32.mrb[0].mxu0
  %v2363 = vadd.f32 0.0, %v2362
  %v2364 = vpop.f32.mrb[0].mxu0
  %2365 = vmatprep.mubr.bf16.mxu0 0
  %2366 = vmatmul.mubr.bf16.gmra.mrb[0].mxu0 %v1999
  %v2367 = vpop.f32.mrb[0].mxu0
  %v2368 = vadd.f32 0.0, %v2367
  %v2369 = vpop.f32.mrb[0].mxu0
  %v2370 = vpop.f32.mrb[0].mxu0
  %v2371 = vadd.f32 0.0, %v2370
  %v2372 = vpop.f32.mrb[0].mxu0
  %2373 = vmatprep.mubr.bf16.mxu0 0
  %2374 = vmatmul.mubr.bf16.gmra.mrb[0].mxu0 %v2000
  %v2375 = vpop.f32.mrb[0].mxu0
  %v2376 = vadd.f32 0.0, %v2375
  %v2377 = vpop.f32.mrb[0].mxu0
  %v2378 = vpop.f32.mrb[0].mxu0
  %v2379 = vadd.f32 0.0, %v2378
  %v2380 = vpop.f32.mrb[0].mxu0
  %2381 = vmatprep.mubr.bf16.mxu0 0
  %2382 = vmatmul.mubr.bf16.gmra.mrb[0].mxu0 %v2001
  %v2383 = vpop.f32.mrb[0].mxu0
  %v2384 = vadd.f32 0.0, %v2383
  %v2385 = vpop.f32.mrb[0].mxu0
  %v2386 = vpop.f32.mrb[0].mxu0
  %v2387 = vadd.f32 0.0, %v2386
  %v2388 = vpop.f32.mrb[0].mxu0
  %2389 = vmatprep.mubr.bf16.mxu0 0
  %2390 = vmatmul.mubr.bf16.gmra.mrb[0].mxu0 %v2002
  %v2391 = vpop.f32.mrb[0].mxu0
  %v2392 = vadd.f32 0.0, %v2391
  %v2393 = vpop.f32.mrb[0].mxu0
  %v2394 = vpop.f32.mrb[0].mxu0
  %v2395 = vadd.f32 0.0, %v2394
  %v2396 = vpop.f32.mrb[0].mxu0
  %2397 = vdwg.mxu0
  %2406 = vrot.lane.b32.xlu0 %v717, 64
  %v2407 = vpop.permute.xlu0 %2406
  %2408 = vrot.lane.b32.xlu0 %v718, 64
  %v2409 = vpop.permute.xlu0 %2408
  %2410 = vrot.lane.b32.xlu0 %v719, 64
  %v2411 = vpop.permute.xlu0 %2410
  %2412 = vrot.lane.b32.xlu0 %v720, 64
  %v2413 = vpop.permute.xlu0 %2412
  %2414 = vrot.lane.b32.xlu0 %v721, 64
  %v2415 = vpop.permute.xlu0 %2414
  %2416 = vrot.lane.b32.xlu0 %v722, 64
  %v2417 = vpop.permute.xlu0 %2416
  %2418 = vrot.lane.b32.xlu0 %v723, 64
  %v2419 = vpop.permute.xlu0 %2418
  %2420 = vrot.lane.b32.xlu0 %v724, 64
  %v2421 = vpop.permute.xlu0 %2420
  %2430 = vmatprep.subr.bf16.mxu0 0
  %2431 = vmatpush1.bf16.msra.mxu0 %v2407
  %2432 = vmatprep.subr.bf16.mxu0 0
  %2433 = vmatpush1.bf16.msra.mxu0 %v2409
  %2434 = vmatprep.subr.bf16.mxu0 0
  %2435 = vmatpush1.bf16.msra.mxu0 %v2411
  %2436 = vmatprep.subr.bf16.mxu0 0
  %2437 = vmatpush1.bf16.msra.mxu0 %v2413
  %2438 = vmatprep.subr.bf16.mxu0 0
  %2439 = vmatpush1.bf16.msra.mxu0 %v2415
  %2440 = vmatprep.subr.bf16.mxu0 0
  %2441 = vmatpush1.bf16.msra.mxu0 %v2417
  %2442 = vmatprep.subr.bf16.mxu0 0
  %2443 = vmatpush1.bf16.msra.mxu0 %v2419
  %2444 = vmatprep.subr.bf16.mxu0 0
  %2445 = vmatpush1.bf16.msra.mxu0 %v2421
  %2446 = vmatprep.subr.bf16.mxu0 0
  %2447 = vmatpush1.bf16.msra.mxu0 0
  %2448 = vmatprep.subr.bf16.mxu0 0
  %2449 = vmatpush1.bf16.msra.mxu0 0
  %2450 = vmatprep.subr.bf16.mxu0 0
  %2451 = vmatpush1.bf16.msra.mxu0 0
  %2452 = vmatprep.subr.bf16.mxu0 0
  %2453 = vmatpush1.bf16.msra.mxu0 0
  %2454 = vmatprep.subr.bf16.mxu0 0
  %2455 = vmatpush1.bf16.msra.mxu0 0
  %2456 = vmatprep.subr.bf16.mxu0 0
  %2457 = vmatpush1.bf16.msra.mxu0 0
  %2458 = vmatprep.subr.bf16.mxu0 0
  %2459 = vmatpush1.bf16.msra.mxu0 0
  %2460 = vmatprep.subr.bf16.mxu0 0
  %2461 = vmatpush1.bf16.msra.mxu0 0
  %2462 = vmatprep.mubr.bf16.mxu0 0
  %2463 = vmatmul.mubr.bf16.gmra.mrb[0].mxu0 %v2003
  %v2464 = vpop.f32.mrb[0].mxu0
  %v2465 = vadd.f32 0.0, %v2464
  %v2466 = vpop.f32.mrb[0].mxu0
  %v2467 = vpop.f32.mrb[0].mxu0
  %v2468 = vadd.f32 0.0, %v2467
  %v2469 = vpop.f32.mrb[0].mxu0
  %2470 = vmatprep.mubr.bf16.mxu0 0
  %2471 = vmatmul.mubr.bf16.gmra.mrb[0].mxu0 %v2004
  %v2472 = vpop.f32.mrb[0].mxu0
  %v2473 = vadd.f32 0.0, %v2472
  %v2474 = vpop.f32.mrb[0].mxu0
  %v2475 = vpop.f32.mrb[0].mxu0
  %v2476 = vadd.f32 0.0, %v2475
  %v2477 = vpop.f32.mrb[0].mxu0
  %2478 = vmatprep.mubr.bf16.mxu0 0
  %2479 = vmatmul.mubr.bf16.gmra.mrb[0].mxu0 %v2005
  %v2480 = vpop.f32.mrb[0].mxu0
  %v2481 = vadd.f32 0.0, %v2480
  %v2482 = vpop.f32.mrb[0].mxu0
  %v2483 = vpop.f32.mrb[0].mxu0
  %v2484 = vadd.f32 0.0, %v2483
  %v2485 = vpop.f32.mrb[0].mxu0
  %2486 = vmatprep.mubr.bf16.mxu0 0
  %2487 = vmatmul.mubr.bf16.gmra.mrb[0].mxu0 %v2006
  %v2488 = vpop.f32.mrb[0].mxu0
  %v2489 = vadd.f32 0.0, %v2488
  %v2490 = vpop.f32.mrb[0].mxu0
  %v2491 = vpop.f32.mrb[0].mxu0
  %v2492 = vadd.f32 0.0, %v2491
  %v2493 = vpop.f32.mrb[0].mxu0
  %2494 = vmatprep.mubr.bf16.mxu0 0
  %2495 = vmatmul.mubr.bf16.gmra.mrb[0].mxu0 %v2007
  %v2496 = vpop.f32.mrb[0].mxu0
  %v2497 = vadd.f32 0.0, %v2496
  %v2498 = vpop.f32.mrb[0].mxu0
  %v2499 = vpop.f32.mrb[0].mxu0
  %v2500 = vadd.f32 0.0, %v2499
  %v2501 = vpop.f32.mrb[0].mxu0
  %2502 = vmatprep.mubr.bf16.mxu0 0
  %2503 = vmatmul.mubr.bf16.gmra.mrb[0].mxu0 %v2008
  %v2504 = vpop.f32.mrb[0].mxu0
  %v2505 = vadd.f32 0.0, %v2504
  %v2506 = vpop.f32.mrb[0].mxu0
  %v2507 = vpop.f32.mrb[0].mxu0
  %v2508 = vadd.f32 0.0, %v2507
  %v2509 = vpop.f32.mrb[0].mxu0
  %2510 = vmatprep.mubr.bf16.mxu0 0
  %2511 = vmatmul.mubr.bf16.gmra.mrb[0].mxu0 %v2009
  %v2512 = vpop.f32.mrb[0].mxu0
  %v2513 = vadd.f32 0.0, %v2512
  %v2514 = vpop.f32.mrb[0].mxu0
  %v2515 = vpop.f32.mrb[0].mxu0
  %v2516 = vadd.f32 0.0, %v2515
  %v2517 = vpop.f32.mrb[0].mxu0
  %2518 = vmatprep.mubr.bf16.mxu0 0
  %2519 = vmatmul.mubr.bf16.gmra.mrb[0].mxu0 %v2010
  %v2520 = vpop.f32.mrb[0].mxu0
  %v2521 = vadd.f32 0.0, %v2520
  %v2522 = vpop.f32.mrb[0].mxu0
  %v2523 = vpop.f32.mrb[0].mxu0
  %v2524 = vadd.f32 0.0, %v2523
  %v2525 = vpop.f32.mrb[0].mxu0
  %2526 = vdwg.mxu0
  %v2527 = vsel %vm69, %v2078, 0.0
  %v2528 = vsel %vm69, %v2207, 0.0
  %v2529 = vadd.f32 %v2527, %v2528
  %v2530 = vsel %vm69, %v2336, 0.0
  %v2531 = vadd.f32 %v2529, %v2530
  %v2532 = vsel %vm69, %v2465, 0.0
  %v2533 = vadd.f32 %v2531, %v2532
  %v2534 = vsel %vm69, %v2081, 0.0
  %v2535 = vsel %vm69, %v2210, 0.0
  %v2536 = vadd.f32 %v2534, %v2535
  %v2537 = vsel %vm69, %v2339, 0.0
  %v2538 = vadd.f32 %v2536, %v2537
  %v2539 = vsel %vm69, %v2468, 0.0
  %v2540 = vadd.f32 %v2538, %v2539
  %v2541 = vsel %vm69, %v2086, 0.0
  %v2542 = vsel %vm69, %v2215, 0.0
  %v2543 = vadd.f32 %v2541, %v2542
  %v2544 = vsel %vm69, %v2344, 0.0
  %v2545 = vadd.f32 %v2543, %v2544
  %v2546 = vsel %vm69, %v2473, 0.0
  %v2547 = vadd.f32 %v2545, %v2546
  %v2548 = vsel %vm69, %v2089, 0.0
  %v2549 = vsel %vm69, %v2218, 0.0
  %v2550 = vadd.f32 %v2548, %v2549
  %v2551 = vsel %vm69, %v2347, 0.0
  %v2552 = vadd.f32 %v2550, %v2551
  %v2553 = vsel %vm69, %v2476, 0.0
  %v2554 = vadd.f32 %v2552, %v2553
  %v2555 = vsel %vm69, %v2094, 0.0
  %v2556 = vsel %vm69, %v2223, 0.0
  %v2557 = vadd.f32 %v2555, %v2556
  %v2558 = vsel %vm69, %v2352, 0.0
  %v2559 = vadd.f32 %v2557, %v2558
  %v2560 = vsel %vm69, %v2481, 0.0
  %v2561 = vadd.f32 %v2559, %v2560
  %v2562 = vsel %vm69, %v2097, 0.0
  %v2563 = vsel %vm69, %v2226, 0.0
  %v2564 = vadd.f32 %v2562, %v2563
  %v2565 = vsel %vm69, %v2355, 0.0
  %v2566 = vadd.f32 %v2564, %v2565
  %v2567 = vsel %vm69, %v2484, 0.0
  %v2568 = vadd.f32 %v2566, %v2567
  %v2569 = vsel %vm69, %v2102, 0.0
  %v2570 = vsel %vm69, %v2231, 0.0
  %v2571 = vadd.f32 %v2569, %v2570
  %v2572 = vsel %vm69, %v2360, 0.0
  %v2573 = vadd.f32 %v2571, %v2572
  %v2574 = vsel %vm69, %v2489, 0.0
  %v2575 = vadd.f32 %v2573, %v2574
  %v2576 = vsel %vm69, %v2105, 0.0
  %v2577 = vsel %vm69, %v2234, 0.0
  %v2578 = vadd.f32 %v2576, %v2577
  %v2579 = vsel %vm69, %v2363, 0.0
  %v2580 = vadd.f32 %v2578, %v2579
  %v2581 = vsel %vm69, %v2492, 0.0
  %v2582 = vadd.f32 %v2580, %v2581
  %v2583 = vsel %vm69, %v2110, 0.0
  %v2584 = vsel %vm69, %v2239, 0.0
  %v2585 = vadd.f32 %v2583, %v2584
  %v2586 = vsel %vm69, %v2368, 0.0
  %v2587 = vadd.f32 %v2585, %v2586
  %v2588 = vsel %vm69, %v2497, 0.0
  %v2589 = vadd.f32 %v2587, %v2588
  %v2590 = vsel %vm69, %v2113, 0.0
  %v2591 = vsel %vm69, %v2242, 0.0
  %v2592 = vadd.f32 %v2590, %v2591
  %v2593 = vsel %vm69, %v2371, 0.0
  %v2594 = vadd.f32 %v2592, %v2593
  %v2595 = vsel %vm69, %v2500, 0.0
  %v2596 = vadd.f32 %v2594, %v2595
  %v2597 = vsel %vm69, %v2118, 0.0
  %v2598 = vsel %vm69, %v2247, 0.0
  %v2599 = vadd.f32 %v2597, %v2598
  %v2600 = vsel %vm69, %v2376, 0.0
  %v2601 = vadd.f32 %v2599, %v2600
  %v2602 = vsel %vm69, %v2505, 0.0
  %v2603 = vadd.f32 %v2601, %v2602
  %v2604 = vsel %vm69, %v2121, 0.0
  %v2605 = vsel %vm69, %v2250, 0.0
  %v2606 = vadd.f32 %v2604, %v2605
  %v2607 = vsel %vm69, %v2379, 0.0
  %v2608 = vadd.f32 %v2606, %v2607
  %v2609 = vsel %vm69, %v2508, 0.0
  %v2610 = vadd.f32 %v2608, %v2609
  %v2611 = vsel %vm69, %v2126, 0.0
  %v2612 = vsel %vm69, %v2255, 0.0
  %v2613 = vadd.f32 %v2611, %v2612
  %v2614 = vsel %vm69, %v2384, 0.0
  %v2615 = vadd.f32 %v2613, %v2614
  %v2616 = vsel %vm69, %v2513, 0.0
  %v2617 = vadd.f32 %v2615, %v2616
  %v2618 = vsel %vm69, %v2129, 0.0
  %v2619 = vsel %vm69, %v2258, 0.0
  %v2620 = vadd.f32 %v2618, %v2619
  %v2621 = vsel %vm69, %v2387, 0.0
  %v2622 = vadd.f32 %v2620, %v2621
  %v2623 = vsel %vm69, %v2516, 0.0
  %v2624 = vadd.f32 %v2622, %v2623
  %v2625 = vsel %vm69, %v2134, 0.0
  %v2626 = vsel %vm69, %v2263, 0.0
  %v2627 = vadd.f32 %v2625, %v2626
  %v2628 = vsel %vm69, %v2392, 0.0
  %v2629 = vadd.f32 %v2627, %v2628
  %v2630 = vsel %vm69, %v2521, 0.0
  %v2631 = vadd.f32 %v2629, %v2630
  %v2632 = vsel %vm69, %v2137, 0.0
  %v2633 = vsel %vm69, %v2266, 0.0
  %v2634 = vadd.f32 %v2632, %v2633
  %v2635 = vsel %vm69, %v2395, 0.0
  %v2636 = vadd.f32 %v2634, %v2635
  %v2637 = vsel %vm69, %v2524, 0.0
  %v2638 = vadd.f32 %v2636, %v2637
  %v2639 = vpack.c.bf16 %v2540, %v2533
  %v2640 = vpack.c.bf16 %v2554, %v2547
  %v2641 = vpack.c.bf16 %v2568, %v2561
  %v2642 = vpack.c.bf16 %v2582, %v2575
  %v2643 = vpack.c.bf16 %v2596, %v2589
  %v2644 = vpack.c.bf16 %v2610, %v2603
  %v2645 = vpack.c.bf16 %v2624, %v2617
  %v2646 = vpack.c.bf16 %v2638, %v2631
  %v2647 = vld [vmem:[%s3] sm:$0xf]
  %v2648 = vld [vmem:[%s3 + $0x4] sm:$0xf]
  %v2649 = vld [vmem:[%s3 + $0x8] sm:$0xf]
  %v2650 = vld [vmem:[%s3 + $0xc] sm:$0xf]
  %v2651 = vld [vmem:[%s4] sm:$0x1]
  %v2653 = vlaneseq
  %v2654 = vshrl.u32 %v2653, 7
  %v2655 = vsub.s32 0, %v2654
  %v2656 = vrot.slane %v2651, %v2655
  %v2662 = vunpack.c.l.b16 %v2647
  %v2663 = vunpack.c.l.b16 %v2648
  %v2664 = vunpack.c.l.b16 %v2649
  %v2665 = vunpack.c.l.b16 %v2650
  %v2666 = vpack.c.b16 %v2663, %v2662
  %v2667 = vpack.c.b16 %v2665, %v2664
  %v2671 = vsel %vm69, %v2639, 0
  %v2674 = vsel %vm69, %v2640, 0
  %v2677 = vsel %vm69, %v2641, 0
  %v2680 = vsel %vm69, %v2642, 0
  %v2683 = vsel %vm69, %v2643, 0
  %v2686 = vsel %vm69, %v2644, 0
  %v2689 = vsel %vm69, %v2645, 0
  %v2692 = vsel %vm69, %v2646, 0
  %2694 = vmatprep.subr.bf16.mxu0 0
  %2695 = vmatpush1.bf16.msra.mxu0 %v2666
  %2696 = vmatprep.subr.bf16.mxu0 0
  %2697 = vmatpush1.bf16.msra.mxu0 %v2667
  %2698 = vmatprep.subr.bf16.mxu0 0
  %2699 = vmatpush1.bf16.msra.mxu0 0
  %2700 = vmatprep.subr.bf16.mxu0 0
  %2701 = vmatpush1.bf16.msra.mxu0 0
  %2702 = vmatprep.subr.bf16.mxu0 0
  %2703 = vmatpush1.bf16.msra.mxu0 0
  %2704 = vmatprep.subr.bf16.mxu0 0
  %2705 = vmatpush1.bf16.msra.mxu0 0
  %2706 = vmatprep.subr.bf16.mxu0 0
  %2707 = vmatpush1.bf16.msra.mxu0 0
  %2708 = vmatprep.subr.bf16.mxu0 0
  %2709 = vmatpush1.bf16.msra.mxu0 0
  %2710 = vmatprep.subr.bf16.mxu0 0
  %2711 = vmatpush1.bf16.msra.mxu0 0
  %2712 = vmatprep.subr.bf16.mxu0 0
  %2713 = vmatpush1.bf16.msra.mxu0 0
  %2714 = vmatprep.subr.bf16.mxu0 0
  %2715 = vmatpush1.bf16.msra.mxu0 0
  %2716 = vmatprep.subr.bf16.mxu0 0
  %2717 = vmatpush1.bf16.msra.mxu0 0
  %2718 = vmatprep.subr.bf16.mxu0 0
  %2719 = vmatpush1.bf16.msra.mxu0 0
  %2720 = vmatprep.subr.bf16.mxu0 0
  %2721 = vmatpush1.bf16.msra.mxu0 0
  %2722 = vmatprep.subr.bf16.mxu0 0
  %2723 = vmatpush1.bf16.msra.mxu0 0
  %2724 = vmatprep.subr.bf16.mxu0 0
  %2725 = vmatpush1.bf16.msra.mxu0 0
  %2726 = vmatprep.mubr.bf16.mxu0 0
  %2727 = vmatmul.mubr.bf16.gmra.mrb[0].mxu0 %v2671
  %v2728 = vpop.f32.mrb[0].mxu0
  %v2729 = vadd.f32 %v2656, %v2728
  %v2730 = vpop.f32.mrb[0].mxu0
  %v2731 = vpop.f32.mrb[0].mxu0
  %v2732 = vadd.f32 %v2656, %v2731
  %v2733 = vpop.f32.mrb[0].mxu0
  %2734 = vmatprep.mubr.bf16.mxu0 0
  %2735 = vmatmul.mubr.bf16.gmra.mrb[0].mxu0 %v2674
  %v2736 = vpop.f32.mrb[0].mxu0
  %v2737 = vadd.f32 %v2656, %v2736
  %v2738 = vpop.f32.mrb[0].mxu0
  %v2739 = vpop.f32.mrb[0].mxu0
  %v2740 = vadd.f32 %v2656, %v2739
  %v2741 = vpop.f32.mrb[0].mxu0
  %2742 = vmatprep.mubr.bf16.mxu0 0
  %2743 = vmatmul.mubr.bf16.gmra.mrb[0].mxu0 %v2677
  %v2744 = vpop.f32.mrb[0].mxu0
  %v2745 = vadd.f32 %v2656, %v2744
  %v2746 = vpop.f32.mrb[0].mxu0
  %v2747 = vpop.f32.mrb[0].mxu0
  %v2748 = vadd.f32 %v2656, %v2747
  %v2749 = vpop.f32.mrb[0].mxu0
  %2750 = vmatprep.mubr.bf16.mxu0 0
  %2751 = vmatmul.mubr.bf16.gmra.mrb[0].mxu0 %v2680
  %v2752 = vpop.f32.mrb[0].mxu0
  %v2753 = vadd.f32 %v2656, %v2752
  %v2754 = vpop.f32.mrb[0].mxu0
  %v2755 = vpop.f32.mrb[0].mxu0
  %v2756 = vadd.f32 %v2656, %v2755
  %v2757 = vpop.f32.mrb[0].mxu0
  %2758 = vmatprep.mubr.bf16.mxu0 0
  %2759 = vmatmul.mubr.bf16.gmra.mrb[0].mxu0 %v2683
  %v2760 = vpop.f32.mrb[0].mxu0
  %v2761 = vadd.f32 %v2656, %v2760
  %v2762 = vpop.f32.mrb[0].mxu0
  %v2763 = vpop.f32.mrb[0].mxu0
  %v2764 = vadd.f32 %v2656, %v2763
  %v2765 = vpop.f32.mrb[0].mxu0
  %2766 = vmatprep.mubr.bf16.mxu0 0
  %2767 = vmatmul.mubr.bf16.gmra.mrb[0].mxu0 %v2686
  %v2768 = vpop.f32.mrb[0].mxu0
  %v2769 = vadd.f32 %v2656, %v2768
  %v2770 = vpop.f32.mrb[0].mxu0
  %v2771 = vpop.f32.mrb[0].mxu0
  %v2772 = vadd.f32 %v2656, %v2771
  %v2773 = vpop.f32.mrb[0].mxu0
  %2774 = vmatprep.mubr.bf16.mxu0 0
  %2775 = vmatmul.mubr.bf16.gmra.mrb[0].mxu0 %v2689
  %v2776 = vpop.f32.mrb[0].mxu0
  %v2777 = vadd.f32 %v2656, %v2776
  %v2778 = vpop.f32.mrb[0].mxu0
  %v2779 = vpop.f32.mrb[0].mxu0
  %v2780 = vadd.f32 %v2656, %v2779
  %v2781 = vpop.f32.mrb[0].mxu0
  %2782 = vmatprep.mubr.bf16.mxu0 0
  %2783 = vmatmul.mubr.bf16.gmra.mrb[0].mxu0 %v2692
  %v2784 = vpop.f32.mrb[0].mxu0
  %v2785 = vadd.f32 %v2656, %v2784
  %v2786 = vpop.f32.mrb[0].mxu0
  %v2787 = vpop.f32.mrb[0].mxu0
  %v2788 = vadd.f32 %v2656, %v2787
  %v2789 = vpop.f32.mrb[0].mxu0
  %2790 = vdwg.mxu0
  %v2791 = vadd.f32 %v51, %v2729
  %v2792 = vadd.f32 %v52, %v2732
  %v2793 = vadd.f32 %v53, %v2737
  %v2794 = vadd.f32 %v54, %v2740
  %v2795 = vadd.f32 %v55, %v2745
  %v2796 = vadd.f32 %v56, %v2748
  %v2797 = vadd.f32 %v57, %v2753
  %v2798 = vadd.f32 %v58, %v2756
  %v2799 = vadd.f32 %v59, %v2761
  %v2800 = vadd.f32 %v60, %v2764
  %v2801 = vadd.f32 %v61, %v2769
  %v2802 = vadd.f32 %v62, %v2772
  %v2803 = vadd.f32 %v63, %v2777
  %v2804 = vadd.f32 %v64, %v2780
  %v2805 = vadd.f32 %v65, %v2785
  %v2806 = vadd.f32 %v66, %v2788
  %v2807 = vld [vmem:[%s9] sm:$0x1]
  %v2808 = vld [vmem:[%s10] sm:$0x1]
  %v2809 = vsel %vm69, %v2791, 0.0
  %2810 = vadd.xlane.f32.xlu0 %v2809
  %v2811 = vpop.xlane.xlu0 %2810
  %v2812 = vsel %vm69, %v2792, 0.0
  %2813 = vadd.xlane.f32.xlu0 %v2812
  %v2814 = vpop.xlane.xlu0 %2813
  %v2815 = vsel %vm69, %v2793, 0.0
  %2816 = vadd.xlane.f32.xlu0 %v2815
  %v2817 = vpop.xlane.xlu0 %2816
  %v2818 = vsel %vm69, %v2794, 0.0
  %2819 = vadd.xlane.f32.xlu0 %v2818
  %v2820 = vpop.xlane.xlu0 %2819
  %v2821 = vsel %vm69, %v2795, 0.0
  %2822 = vadd.xlane.f32.xlu0 %v2821
  %v2823 = vpop.xlane.xlu0 %2822
  %v2824 = vsel %vm69, %v2796, 0.0
  %2825 = vadd.xlane.f32.xlu0 %v2824
  %v2826 = vpop.xlane.xlu0 %2825
  %v2827 = vsel %vm69, %v2797, 0.0
  %2828 = vadd.xlane.f32.xlu0 %v2827
  %v2829 = vpop.xlane.xlu0 %2828
  %v2830 = vsel %vm69, %v2798, 0.0
  %2831 = vadd.xlane.f32.xlu0 %v2830
  %v2832 = vpop.xlane.xlu0 %2831
  %v2833 = vsel %vm69, %v2799, 0.0
  %2834 = vadd.xlane.f32.xlu0 %v2833
  %v2835 = vpop.xlane.xlu0 %2834
  %v2836 = vsel %vm69, %v2800, 0.0
  %2837 = vadd.xlane.f32.xlu0 %v2836
  %v2838 = vpop.xlane.xlu0 %2837
  %v2839 = vsel %vm69, %v2801, 0.0
  %2840 = vadd.xlane.f32.xlu0 %v2839
  %v2841 = vpop.xlane.xlu0 %2840
  %v2842 = vsel %vm69, %v2802, 0.0
  %2843 = vadd.xlane.f32.xlu0 %v2842
  %v2844 = vpop.xlane.xlu0 %2843
  %v2845 = vsel %vm69, %v2803, 0.0
  %2846 = vadd.xlane.f32.xlu0 %v2845
  %v2847 = vpop.xlane.xlu0 %2846
  %v2848 = vsel %vm69, %v2804, 0.0
  %2849 = vadd.xlane.f32.xlu0 %v2848
  %v2850 = vpop.xlane.xlu0 %2849
  %v2851 = vsel %vm69, %v2805, 0.0
  %2852 = vadd.xlane.f32.xlu0 %v2851
  %v2853 = vpop.xlane.xlu0 %2852
  %v2854 = vsel %vm69, %v2806, 0.0
  %2855 = vadd.xlane.f32.xlu0 %v2854
  %v2856 = vpop.xlane.xlu0 %2855
  %v2857 = vmul.f32 %v2811, %v118
  %v2858 = vmul.f32 %v2814, %v118
  %v2859 = vmul.f32 %v2817, %v118
  %v2860 = vmul.f32 %v2820, %v118
  %v2861 = vmul.f32 %v2823, %v118
  %v2862 = vmul.f32 %v2826, %v118
  %v2863 = vmul.f32 %v2829, %v118
  %v2864 = vmul.f32 %v2832, %v118
  %v2865 = vmul.f32 %v2835, %v118
  %v2866 = vmul.f32 %v2838, %v118
  %v2867 = vmul.f32 %v2841, %v118
  %v2868 = vmul.f32 %v2844, %v118
  %v2869 = vmul.f32 %v2847, %v118
  %v2870 = vmul.f32 %v2850, %v118
  %v2871 = vmul.f32 %v2853, %v118
  %v2872 = vmul.f32 %v2856, %v118
  %v2873 = vsub.f32 %v2791, %v2857
  %v2874 = vsub.f32 %v2792, %v2858
  %v2875 = vsub.f32 %v2793, %v2859
  %v2876 = vsub.f32 %v2794, %v2860
  %v2877 = vsub.f32 %v2795, %v2861
  %v2878 = vsub.f32 %v2796, %v2862
  %v2879 = vsub.f32 %v2797, %v2863
  %v2880 = vsub.f32 %v2798, %v2864
  %v2881 = vsub.f32 %v2799, %v2865
  %v2882 = vsub.f32 %v2800, %v2866
  %v2883 = vsub.f32 %v2801, %v2867
  %v2884 = vsub.f32 %v2802, %v2868
  %v2885 = vsub.f32 %v2803, %v2869
  %v2886 = vsub.f32 %v2804, %v2870
  %v2887 = vsub.f32 %v2805, %v2871
  %v2888 = vsub.f32 %v2806, %v2872
  %v2889 = vmul.f32 %v2873, %v2873
  %v2890 = vmul.f32 %v2874, %v2874
  %v2891 = vmul.f32 %v2875, %v2875
  %v2892 = vmul.f32 %v2876, %v2876
  %v2893 = vmul.f32 %v2877, %v2877
  %v2894 = vmul.f32 %v2878, %v2878
  %v2895 = vmul.f32 %v2879, %v2879
  %v2896 = vmul.f32 %v2880, %v2880
  %v2897 = vmul.f32 %v2881, %v2881
  %v2898 = vmul.f32 %v2882, %v2882
  %v2899 = vmul.f32 %v2883, %v2883
  %v2900 = vmul.f32 %v2884, %v2884
  %v2901 = vmul.f32 %v2885, %v2885
  %v2902 = vmul.f32 %v2886, %v2886
  %v2903 = vmul.f32 %v2887, %v2887
  %v2904 = vmul.f32 %v2888, %v2888
  %v2905 = vsel %vm69, %v2889, 0.0
  %2906 = vadd.xlane.f32.xlu0 %v2905
  %v2907 = vpop.xlane.xlu0 %2906
  %v2908 = vsel %vm69, %v2890, 0.0
  %2909 = vadd.xlane.f32.xlu0 %v2908
  %v2910 = vpop.xlane.xlu0 %2909
  %v2911 = vsel %vm69, %v2891, 0.0
  %2912 = vadd.xlane.f32.xlu0 %v2911
  %v2913 = vpop.xlane.xlu0 %2912
  %v2914 = vsel %vm69, %v2892, 0.0
  %2915 = vadd.xlane.f32.xlu0 %v2914
  %v2916 = vpop.xlane.xlu0 %2915
  %v2917 = vsel %vm69, %v2893, 0.0
  %2918 = vadd.xlane.f32.xlu0 %v2917
  %v2919 = vpop.xlane.xlu0 %2918
  %v2920 = vsel %vm69, %v2894, 0.0
  %2921 = vadd.xlane.f32.xlu0 %v2920
  %v2922 = vpop.xlane.xlu0 %2921
  %v2923 = vsel %vm69, %v2895, 0.0
  %2924 = vadd.xlane.f32.xlu0 %v2923
  %v2925 = vpop.xlane.xlu0 %2924
  %v2926 = vsel %vm69, %v2896, 0.0
  %2927 = vadd.xlane.f32.xlu0 %v2926
  %v2928 = vpop.xlane.xlu0 %2927
  %v2929 = vsel %vm69, %v2897, 0.0
  %2930 = vadd.xlane.f32.xlu0 %v2929
  %v2931 = vpop.xlane.xlu0 %2930
  %v2932 = vsel %vm69, %v2898, 0.0
  %2933 = vadd.xlane.f32.xlu0 %v2932
  %v2934 = vpop.xlane.xlu0 %2933
  %v2935 = vsel %vm69, %v2899, 0.0
  %2936 = vadd.xlane.f32.xlu0 %v2935
  %v2937 = vpop.xlane.xlu0 %2936
  %v2938 = vsel %vm69, %v2900, 0.0
  %2939 = vadd.xlane.f32.xlu0 %v2938
  %v2940 = vpop.xlane.xlu0 %2939
  %v2941 = vsel %vm69, %v2901, 0.0
  %2942 = vadd.xlane.f32.xlu0 %v2941
  %v2943 = vpop.xlane.xlu0 %2942
  %v2944 = vsel %vm69, %v2902, 0.0
  %2945 = vadd.xlane.f32.xlu0 %v2944
  %v2946 = vpop.xlane.xlu0 %2945
  %v2947 = vsel %vm69, %v2903, 0.0
  %2948 = vadd.xlane.f32.xlu0 %v2947
  %v2949 = vpop.xlane.xlu0 %2948
  %v2950 = vsel %vm69, %v2904, 0.0
  %2951 = vadd.xlane.f32.xlu0 %v2950
  %v2952 = vpop.xlane.xlu0 %2951
  %v2953 = vmul.f32 %v2907, %v118
  %v2954 = vmul.f32 %v2910, %v118
  %v2955 = vmul.f32 %v2913, %v118
  %v2956 = vmul.f32 %v2916, %v118
  %v2957 = vmul.f32 %v2919, %v118
  %v2958 = vmul.f32 %v2922, %v118
  %v2959 = vmul.f32 %v2925, %v118
  %v2960 = vmul.f32 %v2928, %v118
  %v2961 = vmul.f32 %v2931, %v118
  %v2962 = vmul.f32 %v2934, %v118
  %v2963 = vmul.f32 %v2937, %v118
  %v2964 = vmul.f32 %v2940, %v118
  %v2965 = vmul.f32 %v2943, %v118
  %v2966 = vmul.f32 %v2946, %v118
  %v2967 = vmul.f32 %v2949, %v118
  %v2968 = vmul.f32 %v2952, %v118
  %v2969 = vadd.f32 %v2953, 1e-05
  %v2970 = vadd.f32 %v2954, 1e-05
  %v2971 = vadd.f32 %v2955, 1e-05
  %v2972 = vadd.f32 %v2956, 1e-05
  %v2973 = vadd.f32 %v2957, 1e-05
  %v2974 = vadd.f32 %v2958, 1e-05
  %v2975 = vadd.f32 %v2959, 1e-05
  %v2976 = vadd.f32 %v2960, 1e-05
  %v2977 = vadd.f32 %v2961, 1e-05
  %v2978 = vadd.f32 %v2962, 1e-05
  %v2979 = vadd.f32 %v2963, 1e-05
  %v2980 = vadd.f32 %v2964, 1e-05
  %v2981 = vadd.f32 %v2965, 1e-05
  %v2982 = vadd.f32 %v2966, 1e-05
  %v2983 = vadd.f32 %v2967, 1e-05
  %v2984 = vadd.f32 %v2968, 1e-05
  %v2985 = vrsqrt.pop %v2969
  %v2986 = vrsqrt.pop %v2970
  %v2987 = vrsqrt.pop %v2971
  %v2988 = vrsqrt.pop %v2972
  %v2989 = vrsqrt.pop %v2973
  %v2990 = vrsqrt.pop %v2974
  %v2991 = vrsqrt.pop %v2975
  %v2992 = vrsqrt.pop %v2976
  %v2993 = vrsqrt.pop %v2977
  %v2994 = vrsqrt.pop %v2978
  %v2995 = vrsqrt.pop %v2979
  %v2996 = vrsqrt.pop %v2980
  %v2997 = vrsqrt.pop %v2981
  %v2998 = vrsqrt.pop %v2982
  %v2999 = vrsqrt.pop %v2983
  %v3000 = vrsqrt.pop %v2984
  %v3001 = vmul.f32 %v2873, %v2985
  %v3002 = vmul.f32 %v2874, %v2986
  %v3003 = vmul.f32 %v2875, %v2987
  %v3004 = vmul.f32 %v2876, %v2988
  %v3005 = vmul.f32 %v2877, %v2989
  %v3006 = vmul.f32 %v2878, %v2990
  %v3007 = vmul.f32 %v2879, %v2991
  %v3008 = vmul.f32 %v2880, %v2992
  %v3009 = vmul.f32 %v2881, %v2993
  %v3010 = vmul.f32 %v2882, %v2994
  %v3011 = vmul.f32 %v2883, %v2995
  %v3012 = vmul.f32 %v2884, %v2996
  %v3013 = vmul.f32 %v2885, %v2997
  %v3014 = vmul.f32 %v2886, %v2998
  %v3015 = vmul.f32 %v2887, %v2999
  %v3016 = vmul.f32 %v2888, %v3000
  %v3018 = vlaneseq
  %v3019 = vshrl.u32 %v3018, 7
  %v3020 = vsub.s32 0, %v3019
  %v3021 = vrot.slane %v2807, %v3020
  %v3023 = vmul.f32 %v3001, %v3021
  %v3024 = vmul.f32 %v3002, %v3021
  %v3025 = vmul.f32 %v3003, %v3021
  %v3026 = vmul.f32 %v3004, %v3021
  %v3027 = vmul.f32 %v3005, %v3021
  %v3028 = vmul.f32 %v3006, %v3021
  %v3029 = vmul.f32 %v3007, %v3021
  %v3030 = vmul.f32 %v3008, %v3021
  %v3031 = vmul.f32 %v3009, %v3021
  %v3032 = vmul.f32 %v3010, %v3021
  %v3033 = vmul.f32 %v3011, %v3021
  %v3034 = vmul.f32 %v3012, %v3021
  %v3035 = vmul.f32 %v3013, %v3021
  %v3036 = vmul.f32 %v3014, %v3021
  %v3037 = vmul.f32 %v3015, %v3021
  %v3038 = vmul.f32 %v3016, %v3021
  %v3040 = vlaneseq
  %v3041 = vshrl.u32 %v3040, 7
  %v3042 = vsub.s32 0, %v3041
  %v3043 = vrot.slane %v2808, %v3042
  %v3045 = vadd.f32 %v3023, %v3043
  %v3046 = vadd.f32 %v3024, %v3043
  %v3047 = vadd.f32 %v3025, %v3043
  %v3048 = vadd.f32 %v3026, %v3043
  %v3049 = vadd.f32 %v3027, %v3043
  %v3050 = vadd.f32 %v3028, %v3043
  %v3051 = vadd.f32 %v3029, %v3043
  %v3052 = vadd.f32 %v3030, %v3043
  %v3053 = vadd.f32 %v3031, %v3043
  %v3054 = vadd.f32 %v3032, %v3043
  %v3055 = vadd.f32 %v3033, %v3043
  %v3056 = vadd.f32 %v3034, %v3043
  %v3057 = vadd.f32 %v3035, %v3043
  %v3058 = vadd.f32 %v3036, %v3043
  %v3059 = vadd.f32 %v3037, %v3043
  %v3060 = vadd.f32 %v3038, %v3043
  %v3061 = vpack.c.bf16 %v3046, %v3045
  %v3062 = vpack.c.bf16 %v3048, %v3047
  %v3063 = vpack.c.bf16 %v3050, %v3049
  %v3064 = vpack.c.bf16 %v3052, %v3051
  %v3065 = vpack.c.bf16 %v3054, %v3053
  %v3066 = vpack.c.bf16 %v3056, %v3055
  %v3067 = vpack.c.bf16 %v3058, %v3057
  %v3068 = vpack.c.bf16 %v3060, %v3059
  %v3069 = vld [vmem:[%s11] sm:$0xf]
  %v3070 = vld [vmem:[%s11 + $0x4] sm:$0xf]
  %v3071 = vld [vmem:[%s11 + $0x8] sm:$0xf]
  %v3072 = vld [vmem:[%s11 + $0xc] sm:$0xf]
  %v3073 = vld [vmem:[%s12] sm:$0x1]
  %v3075 = vlaneseq
  %v3076 = vshrl.u32 %v3075, 7
  %v3077 = vsub.s32 0, %v3076
  %v3078 = vrot.slane %v3073, %v3077
  %v3084 = vunpack.c.l.b16 %v3069
  %v3085 = vunpack.c.l.b16 %v3070
  %v3086 = vunpack.c.l.b16 %v3071
  %v3087 = vunpack.c.l.b16 %v3072
  %v3088 = vpack.c.b16 %v3085, %v3084
  %v3089 = vpack.c.b16 %v3087, %v3086
  %v3093 = vsel %vm69, %v3061, 0
  %v3096 = vsel %vm69, %v3062, 0
  %v3099 = vsel %vm69, %v3063, 0
  %v3102 = vsel %vm69, %v3064, 0
  %v3105 = vsel %vm69, %v3065, 0
  %v3108 = vsel %vm69, %v3066, 0
  %v3111 = vsel %vm69, %v3067, 0
  %v3114 = vsel %vm69, %v3068, 0
  %3116 = vmatprep.subr.bf16.mxu0 0
  %3117 = vmatpush1.bf16.msra.mxu0 %v3088
  %3118 = vmatprep.subr.bf16.mxu0 0
  %3119 = vmatpush1.bf16.msra.mxu0 %v3089
  %3120 = vmatprep.subr.bf16.mxu0 0
  %3121 = vmatpush1.bf16.msra.mxu0 0
  %3122 = vmatprep.subr.bf16.mxu0 0
  %3123 = vmatpush1.bf16.msra.mxu0 0
  %3124 = vmatprep.subr.bf16.mxu0 0
  %3125 = vmatpush1.bf16.msra.mxu0 0
  %3126 = vmatprep.subr.bf16.mxu0 0
  %3127 = vmatpush1.bf16.msra.mxu0 0
  %3128 = vmatprep.subr.bf16.mxu0 0
  %3129 = vmatpush1.bf16.msra.mxu0 0
  %3130 = vmatprep.subr.bf16.mxu0 0
  %3131 = vmatpush1.bf16.msra.mxu0 0
  %3132 = vmatprep.subr.bf16.mxu0 0
  %3133 = vmatpush1.bf16.msra.mxu0 0
  %3134 = vmatprep.subr.bf16.mxu0 0
  %3135 = vmatpush1.bf16.msra.mxu0 0
  %3136 = vmatprep.subr.bf16.mxu0 0
  %3137 = vmatpush1.bf16.msra.mxu0 0
  %3138 = vmatprep.subr.bf16.mxu0 0
  %3139 = vmatpush1.bf16.msra.mxu0 0
  %3140 = vmatprep.subr.bf16.mxu0 0
  %3141 = vmatpush1.bf16.msra.mxu0 0
  %3142 = vmatprep.subr.bf16.mxu0 0
  %3143 = vmatpush1.bf16.msra.mxu0 0
  %3144 = vmatprep.subr.bf16.mxu0 0
  %3145 = vmatpush1.bf16.msra.mxu0 0
  %3146 = vmatprep.subr.bf16.mxu0 0
  %3147 = vmatpush1.bf16.msra.mxu0 0
  %3148 = vmatprep.mubr.bf16.mxu0 0
  %3149 = vmatmul.mubr.bf16.gmra.mrb[0].mxu0 %v3093
  %v3150 = vpop.f32.mrb[0].mxu0
  %v3151 = vadd.f32 %v3078, %v3150
  %v3152 = vpop.f32.mrb[0].mxu0
  %v3153 = vpop.f32.mrb[0].mxu0
  %v3154 = vadd.f32 %v3078, %v3153
  %v3155 = vpop.f32.mrb[0].mxu0
  %3156 = vmatprep.mubr.bf16.mxu0 0
  %3157 = vmatmul.mubr.bf16.gmra.mrb[0].mxu0 %v3096
  %v3158 = vpop.f32.mrb[0].mxu0
  %v3159 = vadd.f32 %v3078, %v3158
  %v3160 = vpop.f32.mrb[0].mxu0
  %v3161 = vpop.f32.mrb[0].mxu0
  %v3162 = vadd.f32 %v3078, %v3161
  %v3163 = vpop.f32.mrb[0].mxu0
  %3164 = vmatprep.mubr.bf16.mxu0 0
  %3165 = vmatmul.mubr.bf16.gmra.mrb[0].mxu0 %v3099
  %v3166 = vpop.f32.mrb[0].mxu0
  %v3167 = vadd.f32 %v3078, %v3166
  %v3168 = vpop.f32.mrb[0].mxu0
  %v3169 = vpop.f32.mrb[0].mxu0
  %v3170 = vadd.f32 %v3078, %v3169
  %v3171 = vpop.f32.mrb[0].mxu0
  %3172 = vmatprep.mubr.bf16.mxu0 0
  %3173 = vmatmul.mubr.bf16.gmra.mrb[0].mxu0 %v3102
  %v3174 = vpop.f32.mrb[0].mxu0
  %v3175 = vadd.f32 %v3078, %v3174
  %v3176 = vpop.f32.mrb[0].mxu0
  %v3177 = vpop.f32.mrb[0].mxu0
  %v3178 = vadd.f32 %v3078, %v3177
  %v3179 = vpop.f32.mrb[0].mxu0
  %3180 = vmatprep.mubr.bf16.mxu0 0
  %3181 = vmatmul.mubr.bf16.gmra.mrb[0].mxu0 %v3105
  %v3182 = vpop.f32.mrb[0].mxu0
  %v3183 = vadd.f32 %v3078, %v3182
  %v3184 = vpop.f32.mrb[0].mxu0
  %v3185 = vpop.f32.mrb[0].mxu0
  %v3186 = vadd.f32 %v3078, %v3185
  %v3187 = vpop.f32.mrb[0].mxu0
  %3188 = vmatprep.mubr.bf16.mxu0 0
  %3189 = vmatmul.mubr.bf16.gmra.mrb[0].mxu0 %v3108
  %v3190 = vpop.f32.mrb[0].mxu0
  %v3191 = vadd.f32 %v3078, %v3190
  %v3192 = vpop.f32.mrb[0].mxu0
  %v3193 = vpop.f32.mrb[0].mxu0
  %v3194 = vadd.f32 %v3078, %v3193
  %v3195 = vpop.f32.mrb[0].mxu0
  %3196 = vmatprep.mubr.bf16.mxu0 0
  %3197 = vmatmul.mubr.bf16.gmra.mrb[0].mxu0 %v3111
  %v3198 = vpop.f32.mrb[0].mxu0
  %v3199 = vadd.f32 %v3078, %v3198
  %v3200 = vpop.f32.mrb[0].mxu0
  %v3201 = vpop.f32.mrb[0].mxu0
  %v3202 = vadd.f32 %v3078, %v3201
  %v3203 = vpop.f32.mrb[0].mxu0
  %3204 = vmatprep.mubr.bf16.mxu0 0
  %3205 = vmatmul.mubr.bf16.gmra.mrb[0].mxu0 %v3114
  %v3206 = vpop.f32.mrb[0].mxu0
  %v3207 = vadd.f32 %v3078, %v3206
  %v3208 = vpop.f32.mrb[0].mxu0
  %v3209 = vpop.f32.mrb[0].mxu0
  %v3210 = vadd.f32 %v3078, %v3209
  %v3211 = vpop.f32.mrb[0].mxu0
  %3212 = vdwg.mxu0
  %v3213 = vmul.f32 %v3151, %v3151
  %v3214 = vmul.f32 %v3154, %v3154
  %v3215 = vmul.f32 %v3159, %v3159
  %v3216 = vmul.f32 %v3162, %v3162
  %v3217 = vmul.f32 %v3167, %v3167
  %v3218 = vmul.f32 %v3170, %v3170
  %v3219 = vmul.f32 %v3175, %v3175
  %v3220 = vmul.f32 %v3178, %v3178
  %v3221 = vmul.f32 %v3183, %v3183
  %v3222 = vmul.f32 %v3186, %v3186
  %v3223 = vmul.f32 %v3191, %v3191
  %v3224 = vmul.f32 %v3194, %v3194
  %v3225 = vmul.f32 %v3199, %v3199
  %v3226 = vmul.f32 %v3202, %v3202
  %v3227 = vmul.f32 %v3207, %v3207
  %v3228 = vmul.f32 %v3210, %v3210
  %v3229 = vmul.f32 %v3151, %v3213
  %v3230 = vmul.f32 %v3154, %v3214
  %v3231 = vmul.f32 %v3159, %v3215
  %v3232 = vmul.f32 %v3162, %v3216
  %v3233 = vmul.f32 %v3167, %v3217
  %v3234 = vmul.f32 %v3170, %v3218
  %v3235 = vmul.f32 %v3175, %v3219
  %v3236 = vmul.f32 %v3178, %v3220
  %v3237 = vmul.f32 %v3183, %v3221
  %v3238 = vmul.f32 %v3186, %v3222
  %v3239 = vmul.f32 %v3191, %v3223
  %v3240 = vmul.f32 %v3194, %v3224
  %v3241 = vmul.f32 %v3199, %v3225
  %v3242 = vmul.f32 %v3202, %v3226
  %v3243 = vmul.f32 %v3207, %v3227
  %v3244 = vmul.f32 %v3210, %v3228
  %v3245 = vmul.f32 %v3229, 0.044715
  %v3246 = vmul.f32 %v3230, 0.044715
  %v3247 = vmul.f32 %v3231, 0.044715
  %v3248 = vmul.f32 %v3232, 0.044715
  %v3249 = vmul.f32 %v3233, 0.044715
  %v3250 = vmul.f32 %v3234, 0.044715
  %v3251 = vmul.f32 %v3235, 0.044715
  %v3252 = vmul.f32 %v3236, 0.044715
  %v3253 = vmul.f32 %v3237, 0.044715
  %v3254 = vmul.f32 %v3238, 0.044715
  %v3255 = vmul.f32 %v3239, 0.044715
  %v3256 = vmul.f32 %v3240, 0.044715
  %v3257 = vmul.f32 %v3241, 0.044715
  %v3258 = vmul.f32 %v3242, 0.044715
  %v3259 = vmul.f32 %v3243, 0.044715
  %v3260 = vmul.f32 %v3244, 0.044715
  %v3261 = vadd.f32 %v3151, %v3245
  %v3262 = vadd.f32 %v3154, %v3246
  %v3263 = vadd.f32 %v3159, %v3247
  %v3264 = vadd.f32 %v3162, %v3248
  %v3265 = vadd.f32 %v3167, %v3249
  %v3266 = vadd.f32 %v3170, %v3250
  %v3267 = vadd.f32 %v3175, %v3251
  %v3268 = vadd.f32 %v3178, %v3252
  %v3269 = vadd.f32 %v3183, %v3253
  %v3270 = vadd.f32 %v3186, %v3254
  %v3271 = vadd.f32 %v3191, %v3255
  %v3272 = vadd.f32 %v3194, %v3256
  %v3273 = vadd.f32 %v3199, %v3257
  %v3274 = vadd.f32 %v3202, %v3258
  %v3275 = vadd.f32 %v3207, %v3259
  %v3276 = vadd.f32 %v3210, %v3260
  %v3277 = vmul.f32 %v3261, 0.7978846
  %v3278 = vmul.f32 %v3262, 0.7978846
  %v3279 = vmul.f32 %v3263, 0.7978846
  %v3280 = vmul.f32 %v3264, 0.7978846
  %v3281 = vmul.f32 %v3265, 0.7978846
  %v3282 = vmul.f32 %v3266, 0.7978846
  %v3283 = vmul.f32 %v3267, 0.7978846
  %v3284 = vmul.f32 %v3268, 0.7978846
  %v3285 = vmul.f32 %v3269, 0.7978846
  %v3286 = vmul.f32 %v3270, 0.7978846
  %v3287 = vmul.f32 %v3271, 0.7978846
  %v3288 = vmul.f32 %v3272, 0.7978846
  %v3289 = vmul.f32 %v3273, 0.7978846
  %v3290 = vmul.f32 %v3274, 0.7978846
  %v3291 = vmul.f32 %v3275, 0.7978846
  %v3292 = vmul.f32 %v3276, 0.7978846
  %v3293 = vtanh.pop %v3277
  %v3294 = vtanh.pop %v3278
  %v3295 = vtanh.pop %v3279
  %v3296 = vtanh.pop %v3280
  %v3297 = vtanh.pop %v3281
  %v3298 = vtanh.pop %v3282
  %v3299 = vtanh.pop %v3283
  %v3300 = vtanh.pop %v3284
  %v3301 = vtanh.pop %v3285
  %v3302 = vtanh.pop %v3286
  %v3303 = vtanh.pop %v3287
  %v3304 = vtanh.pop %v3288
  %v3305 = vtanh.pop %v3289
  %v3306 = vtanh.pop %v3290
  %v3307 = vtanh.pop %v3291
  %v3308 = vtanh.pop %v3292
  %v3309 = vadd.f32 %v3293, 1.0
  %v3310 = vadd.f32 %v3294, 1.0
  %v3311 = vadd.f32 %v3295, 1.0
  %v3312 = vadd.f32 %v3296, 1.0
  %v3313 = vadd.f32 %v3297, 1.0
  %v3314 = vadd.f32 %v3298, 1.0
  %v3315 = vadd.f32 %v3299, 1.0
  %v3316 = vadd.f32 %v3300, 1.0
  %v3317 = vadd.f32 %v3301, 1.0
  %v3318 = vadd.f32 %v3302, 1.0
  %v3319 = vadd.f32 %v3303, 1.0
  %v3320 = vadd.f32 %v3304, 1.0
  %v3321 = vadd.f32 %v3305, 1.0
  %v3322 = vadd.f32 %v3306, 1.0
  %v3323 = vadd.f32 %v3307, 1.0
  %v3324 = vadd.f32 %v3308, 1.0
  %v3325 = vmul.f32 %v3309, 0.5
  %v3326 = vmul.f32 %v3310, 0.5
  %v3327 = vmul.f32 %v3311, 0.5
  %v3328 = vmul.f32 %v3312, 0.5
  %v3329 = vmul.f32 %v3313, 0.5
  %v3330 = vmul.f32 %v3314, 0.5
  %v3331 = vmul.f32 %v3315, 0.5
  %v3332 = vmul.f32 %v3316, 0.5
  %v3333 = vmul.f32 %v3317, 0.5
  %v3334 = vmul.f32 %v3318, 0.5
  %v3335 = vmul.f32 %v3319, 0.5
  %v3336 = vmul.f32 %v3320, 0.5
  %v3337 = vmul.f32 %v3321, 0.5
  %v3338 = vmul.f32 %v3322, 0.5
  %v3339 = vmul.f32 %v3323, 0.5
  %v3340 = vmul.f32 %v3324, 0.5
  %v3341 = vmul.f32 %v3151, %v3325
  %v3342 = vmul.f32 %v3154, %v3326
  %v3343 = vmul.f32 %v3159, %v3327
  %v3344 = vmul.f32 %v3162, %v3328
  %v3345 = vmul.f32 %v3167, %v3329
  %v3346 = vmul.f32 %v3170, %v3330
  %v3347 = vmul.f32 %v3175, %v3331
  %v3348 = vmul.f32 %v3178, %v3332
  %v3349 = vmul.f32 %v3183, %v3333
  %v3350 = vmul.f32 %v3186, %v3334
  %v3351 = vmul.f32 %v3191, %v3335
  %v3352 = vmul.f32 %v3194, %v3336
  %v3353 = vmul.f32 %v3199, %v3337
  %v3354 = vmul.f32 %v3202, %v3338
  %v3355 = vmul.f32 %v3207, %v3339
  %v3356 = vmul.f32 %v3210, %v3340
  %v3357 = vpack.c.bf16 %v3342, %v3341
  %v3358 = vpack.c.bf16 %v3344, %v3343
  %v3359 = vpack.c.bf16 %v3346, %v3345
  %v3360 = vpack.c.bf16 %v3348, %v3347
  %v3361 = vpack.c.bf16 %v3350, %v3349
  %v3362 = vpack.c.bf16 %v3352, %v3351
  %v3363 = vpack.c.bf16 %v3354, %v3353
  %v3364 = vpack.c.bf16 %v3356, %v3355
  %v3365 = vld [vmem:[%s13] sm:$0xf]
  %v3366 = vld [vmem:[%s13 + $0x4] sm:$0xf]
  %v3367 = vld [vmem:[%s13 + $0x8] sm:$0xf]
  %v3368 = vld [vmem:[%s13 + $0xc] sm:$0xf]
  %v3369 = vld [vmem:[%s13 + $0x10] sm:$0xf]
  %v3370 = vld [vmem:[%s13 + $0x14] sm:$0xf]
  %v3371 = vld [vmem:[%s13 + $0x18] sm:$0xf]
  %v3372 = vld [vmem:[%s13 + $0x1c] sm:$0xf]
  %v3373 = vld [vmem:[%s13 + $0x20] sm:$0xf]
  %v3374 = vld [vmem:[%s13 + $0x24] sm:$0xf]
  %v3375 = vld [vmem:[%s13 + $0x28] sm:$0xf]
  %v3376 = vld [vmem:[%s13 + $0x2c] sm:$0xf]
  %v3377 = vld [vmem:[%s13 + $0x30] sm:$0xf]
  %v3378 = vld [vmem:[%s13 + $0x34] sm:$0xf]
  %v3379 = vld [vmem:[%s13 + $0x38] sm:$0xf]
  %v3380 = vld [vmem:[%s13 + $0x3c] sm:$0xf]
  %v3381 = vld [vmem:[%s14] sm:$0x1]
  %v3383 = vlaneseq
  %v3384 = vshrl.u32 %v3383, 7
  %v3385 = vsub.s32 0, %v3384
  %v3386 = vrot.slane %v3381, %v3385
  %v3404 = vunpack.c.l.b16 %v3365
  %v3405 = vunpack.c.l.b16 %v3366
  %v3406 = vunpack.c.l.b16 %v3367
  %v3407 = vunpack.c.l.b16 %v3368
  %v3408 = vunpack.c.l.b16 %v3369
  %v3409 = vunpack.c.l.b16 %v3370
  %v3410 = vunpack.c.l.b16 %v3371
  %v3411 = vunpack.c.l.b16 %v3372
  %v3412 = vunpack.c.l.b16 %v3373
  %v3413 = vunpack.c.l.b16 %v3374
  %v3414 = vunpack.c.l.b16 %v3375
  %v3415 = vunpack.c.l.b16 %v3376
  %v3416 = vunpack.c.l.b16 %v3377
  %v3417 = vunpack.c.l.b16 %v3378
  %v3418 = vunpack.c.l.b16 %v3379
  %v3419 = vunpack.c.l.b16 %v3380
  %v3420 = vpack.c.b16 %v3405, %v3404
  %v3421 = vpack.c.b16 %v3407, %v3406
  %v3422 = vpack.c.b16 %v3409, %v3408
  %v3423 = vpack.c.b16 %v3411, %v3410
  %v3424 = vpack.c.b16 %v3413, %v3412
  %v3425 = vpack.c.b16 %v3415, %v3414
  %v3426 = vpack.c.b16 %v3417, %v3416
  %v3427 = vpack.c.b16 %v3419, %v3418
  %3436 = vmatprep.subr.bf16.mxu0 0
  %3437 = vmatpush1.bf16.msra.mxu0 %v3420
  %3438 = vmatprep.subr.bf16.mxu0 0
  %3439 = vmatpush1.bf16.msra.mxu0 %v3421
  %3440 = vmatprep.subr.bf16.mxu0 0
  %3441 = vmatpush1.bf16.msra.mxu0 %v3422
  %3442 = vmatprep.subr.bf16.mxu0 0
  %3443 = vmatpush1.bf16.msra.mxu0 %v3423
  %3444 = vmatprep.subr.bf16.mxu0 0
  %3445 = vmatpush1.bf16.msra.mxu0 %v3424
  %3446 = vmatprep.subr.bf16.mxu0 0
  %3447 = vmatpush1.bf16.msra.mxu0 %v3425
  %3448 = vmatprep.subr.bf16.mxu0 0
  %3449 = vmatpush1.bf16.msra.mxu0 %v3426
  %3450 = vmatprep.subr.bf16.mxu0 0
  %3451 = vmatpush1.bf16.msra.mxu0 %v3427
  %3452 = vmatprep.subr.bf16.mxu0 0
  %3453 = vmatpush1.bf16.msra.mxu0 0
  %3454 = vmatprep.subr.bf16.mxu0 0
  %3455 = vmatpush1.bf16.msra.mxu0 0
  %3456 = vmatprep.subr.bf16.mxu0 0
  %3457 = vmatpush1.bf16.msra.mxu0 0
  %3458 = vmatprep.subr.bf16.mxu0 0
  %3459 = vmatpush1.bf16.msra.mxu0 0
  %3460 = vmatprep.subr.bf16.mxu0 0
  %3461 = vmatpush1.bf16.msra.mxu0 0
  %3462 = vmatprep.subr.bf16.mxu0 0
  %3463 = vmatpush1.bf16.msra.mxu0 0
  %3464 = vmatprep.subr.bf16.mxu0 0
  %3465 = vmatpush1.bf16.msra.mxu0 0
  %3466 = vmatprep.subr.bf16.mxu0 0
  %3467 = vmatpush1.bf16.msra.mxu0 0
  %3468 = vmatprep.mubr.bf16.mxu0 0
  %3469 = vmatmul.mubr.bf16.gmra.mrb[0].mxu0 %v3357
  %v3470 = vpop.f32.mrb[0].mxu0
  %v3471 = vadd.f32 %v3386, %v3470
  %v3472 = vpop.f32.mrb[0].mxu0
  %v3473 = vpop.f32.mrb[0].mxu0
  %v3474 = vadd.f32 %v3386, %v3473
  %v3475 = vpop.f32.mrb[0].mxu0
  %3476 = vmatprep.mubr.bf16.mxu0 0
  %3477 = vmatmul.mubr.bf16.gmra.mrb[0].mxu0 %v3358
  %v3478 = vpop.f32.mrb[0].mxu0
  %v3479 = vadd.f32 %v3386, %v3478
  %v3480 = vpop.f32.mrb[0].mxu0
  %v3481 = vpop.f32.mrb[0].mxu0
  %v3482 = vadd.f32 %v3386, %v3481
  %v3483 = vpop.f32.mrb[0].mxu0
  %3484 = vmatprep.mubr.bf16.mxu0 0
  %3485 = vmatmul.mubr.bf16.gmra.mrb[0].mxu0 %v3359
  %v3486 = vpop.f32.mrb[0].mxu0
  %v3487 = vadd.f32 %v3386, %v3486
  %v3488 = vpop.f32.mrb[0].mxu0
  %v3489 = vpop.f32.mrb[0].mxu0
  %v3490 = vadd.f32 %v3386, %v3489
  %v3491 = vpop.f32.mrb[0].mxu0
  %3492 = vmatprep.mubr.bf16.mxu0 0
  %3493 = vmatmul.mubr.bf16.gmra.mrb[0].mxu0 %v3360
  %v3494 = vpop.f32.mrb[0].mxu0
  %v3495 = vadd.f32 %v3386, %v3494
  %v3496 = vpop.f32.mrb[0].mxu0
  %v3497 = vpop.f32.mrb[0].mxu0
  %v3498 = vadd.f32 %v3386, %v3497
  %v3499 = vpop.f32.mrb[0].mxu0
  %3500 = vmatprep.mubr.bf16.mxu0 0
  %3501 = vmatmul.mubr.bf16.gmra.mrb[0].mxu0 %v3361
  %v3502 = vpop.f32.mrb[0].mxu0
  %v3503 = vadd.f32 %v3386, %v3502
  %v3504 = vpop.f32.mrb[0].mxu0
  %v3505 = vpop.f32.mrb[0].mxu0
  %v3506 = vadd.f32 %v3386, %v3505
  %v3507 = vpop.f32.mrb[0].mxu0
  %3508 = vmatprep.mubr.bf16.mxu0 0
  %3509 = vmatmul.mubr.bf16.gmra.mrb[0].mxu0 %v3362
  %v3510 = vpop.f32.mrb[0].mxu0
  %v3511 = vadd.f32 %v3386, %v3510
  %v3512 = vpop.f32.mrb[0].mxu0
  %v3513 = vpop.f32.mrb[0].mxu0
  %v3514 = vadd.f32 %v3386, %v3513
  %v3515 = vpop.f32.mrb[0].mxu0
  %3516 = vmatprep.mubr.bf16.mxu0 0
  %3517 = vmatmul.mubr.bf16.gmra.mrb[0].mxu0 %v3363
  %v3518 = vpop.f32.mrb[0].mxu0
  %v3519 = vadd.f32 %v3386, %v3518
  %v3520 = vpop.f32.mrb[0].mxu0
  %v3521 = vpop.f32.mrb[0].mxu0
  %v3522 = vadd.f32 %v3386, %v3521
  %v3523 = vpop.f32.mrb[0].mxu0
  %3524 = vmatprep.mubr.bf16.mxu0 0
  %3525 = vmatmul.mubr.bf16.gmra.mrb[0].mxu0 %v3364
  %v3526 = vpop.f32.mrb[0].mxu0
  %v3527 = vadd.f32 %v3386, %v3526
  %v3528 = vpop.f32.mrb[0].mxu0
  %v3529 = vpop.f32.mrb[0].mxu0
  %v3530 = vadd.f32 %v3386, %v3529
  %v3531 = vpop.f32.mrb[0].mxu0
  %3532 = vdwg.mxu0
  %v3533 = vadd.f32 %v2791, %v3471
  %v3534 = vadd.f32 %v2792, %v3474
  %v3535 = vadd.f32 %v2793, %v3479
  %v3536 = vadd.f32 %v2794, %v3482
  %v3537 = vadd.f32 %v2795, %v3487
  %v3538 = vadd.f32 %v2796, %v3490
  %v3539 = vadd.f32 %v2797, %v3495
  %v3540 = vadd.f32 %v2798, %v3498
  %v3541 = vadd.f32 %v2799, %v3503
  %v3542 = vadd.f32 %v2800, %v3506
  %v3543 = vadd.f32 %v2801, %v3511
  %v3544 = vadd.f32 %v2802, %v3514
  %v3545 = vadd.f32 %v2803, %v3519
  %v3546 = vadd.f32 %v2804, %v3522
  %v3547 = vadd.f32 %v2805, %v3527
  %v3548 = vadd.f32 %v2806, %v3530
  %3549 = vst.msk [vmem:[%s15] sm:$0xff] %vm69, %v3533
  %3550 = vst.msk [vmem:[%s15 + $0x8] sm:$0xff] %vm69, %v3534
  %3551 = vst.msk [vmem:[%s15 + $0x10] sm:$0xff] %vm69, %v3535
  %3552 = vst.msk [vmem:[%s15 + $0x18] sm:$0xff] %vm69, %v3536
  %3553 = vst.msk [vmem:[%s15 + $0x20] sm:$0xff] %vm69, %v3537
  %3554 = vst.msk [vmem:[%s15 + $0x28] sm:$0xff] %vm69, %v3538
  %3555 = vst.msk [vmem:[%s15 + $0x30] sm:$0xff] %vm69, %v3539
  %3556 = vst.msk [vmem:[%s15 + $0x38] sm:$0xff] %vm69, %v3540
  %3557 = vst.msk [vmem:[%s15 + $0x40] sm:$0xff] %vm69, %v3541
  %3558 = vst.msk [vmem:[%s15 + $0x48] sm:$0xff] %vm69, %v3542
  %3559 = vst.msk [vmem:[%s15 + $0x50] sm:$0xff] %vm69, %v3543
  %3560 = vst.msk [vmem:[%s15 + $0x58] sm:$0xff] %vm69, %v3544
  %3561 = vst.msk [vmem:[%s15 + $0x60] sm:$0xff] %vm69, %v3545
  %3562 = vst.msk [vmem:[%s15 + $0x68] sm:$0xff] %vm69, %v3546
  %3563 = vst.msk [vmem:[%s15 + $0x70] sm:$0xff] %vm69, %v3547
  %3564 = vst.msk [vmem:[%s15 + $0x78] sm:$0xff] %vm69, %v3548
  // Predicated region
  $region62: #{tpu_custom_call.1} parent=0 // pred_check
    _
  $region63: #{tpu_custom_call.1} parent=0 // pred_check_branch
    %3566 = sbr.rel (0) target = $region65
  $region64: #{tpu_custom_call.1} parent=0 // pred_region
    _
  $region65: #{tpu_custom_call.1} parent=0 // pred_fallthru
    _
  // Predicated region
  $region66: #{tpu_custom_call.1} parent=0 // pred_check
    _
  $region67: #{tpu_custom_call.1} parent=0 // pred_check_branch
    %3568 = sbr.rel (0) target = $region69
  $region68: #{tpu_custom_call.1} parent=0 // pred_region
    _
  $region69: #{tpu_custom_call.1} parent=0 // pred_fallthru
    _

</llo_original>
